<compile_context>
chip_gen: v6e
topology: v6e:2x2x1
jax: 0.10.0
libtpu: 0.0.40
codegen_flags: <defaults>
</compile_context>

<pallas_src>
import jax
import jax.numpy as jnp
from jax import lax
from jax.experimental import pallas as pl
from jax.experimental.pallas import tpu as pltpu

LN_EPS = 1e-5    # nn.LayerNorm default eps
GN_EPS = 1e-10   # GroupNorm eps from the module

# Set to jnp.bfloat16 on v6e/v7x for ~2-3x MXU throughput at production channel
# widths (re-validate numerics); f32 keeps bit-level agreement with the reference.
MATMUL_DTYPE = jnp.float32


# --------------------------------- helpers -----------------------------------
def _ceil_to(a, m):
    return -(-a // m) * m


def _padded_bytes(shape, itemsize=4):
    """f32 VMEM footprint of an array with last-two-dims (8,128) tile padding."""
    s = (1, 1) + tuple(int(d) for d in shape)
    lead = 1
    for d in s[:-2]:
        lead *= d
    return lead * _ceil_to(s[-2], 8) * _ceil_to(s[-1], 128) * itemsize


# --------------------------- fused TCN kernel body ----------------------------
def _make_tcn_kernel(T, C_in, C_e, C_b, C_s, C_out, K, n_blocks, n_repeats,
                     dil_pad, mm_dtype):
    # packed per-channel columns in VEC:
    #   0:b1  1:g1w  2:g1b  3:a1  4:bd  5:g2w  6:g2b  7:a2  8..8+K-1:wd taps
    def kernel(x_ref, lnw_ref, lnb_ref, win_ref, bin_ref,
               w1_ref, vec_ref, wh_ref, hb_ref,
               aout_ref, wout_ref, bout_ref, o_ref):
        f32 = jnp.float32

        def mm(w, v):
            return jnp.dot(w.astype(mm_dtype), v.astype(mm_dtype),
                           preferred_element_type=f32)

        # ---------------- prologue: LayerNorm(C_in) + 1x1 input conv ----------
        x = x_ref[0]                                        # (C_in, T)
        mu = jnp.mean(x, axis=0, keepdims=True)             # single-pass LN
        ms = jnp.mean(x * x, axis=0, keepdims=True)
        xn = (x - mu) * lax.rsqrt(ms - mu * mu + LN_EPS)
        xn = xn * lnw_ref[...] + lnb_ref[...]               # (C_in, 1) columns
        cur = mm(win_ref[...], xn) + bin_ref[...]           # (C_e, T)
        skip = jnp.zeros((C_s, T), f32)

        # hoisted depthwise validity masks (static per block-in-repeat / tap)
        col = lax.broadcasted_iota(jnp.int32, (1, T), 1)
        masks = [[jnp.logical_and(col + (k * d - pad) >= 0,
                                  col + (k * d - pad) < T)
                  for k in range(K)]
                 for (d, pad) in dil_pad]

        def repeat_body(r, carry):
            cur, skip = carry
            for i in range(n_blocks):                       # static unroll
                d, pad = dil_pad[i]
                n = r * n_blocks + i                        # dynamic block index
                w1 = w1_ref[n]                              # (C_b, C_e)
                vec = vec_ref[n]                            # (C_b, 8+K)
                wh = wh_ref[n]                              # (C_s+C_e, C_b)
                hb = hb_ref[n]                              # (C_s+C_e, 1)
                b1 = vec[:, 0:1]
                g1w = vec[:, 1:2]
                g1b = vec[:, 2:3]
                a1 = vec[:, 3:4]
                bd = vec[:, 4:5]
                g2w = vec[:, 5:6]
                g2b = vec[:, 6:7]
                a2 = vec[:, 7:8]

                # 1x1 embed conv -> PReLU -> GroupNorm(1, C_b)
                h = mm(w1, cur) + b1                        # (C_b, T)
                h = jnp.where(h >= 0, h, h * a1)
                mu1 = jnp.mean(h)
                v1 = jnp.mean(h * h) - mu1 * mu1            # single-pass var
                h = (h - mu1) * lax.rsqrt(v1 + GN_EPS) * g1w + g1b

                # depthwise dilated conv along T: lane rolls + hoisted masks
                y = jnp.zeros((C_b, T), f32)
                for k in range(K):
                    s = k * d - pad                         # tap reads h[:, t+s]
                    wk = vec[:, 8 + k:9 + k]                # (C_b, 1)
                    if s == 0:
                        y = y + h * wk
                    else:
                        sh = (-s) % T
                        tap = h if sh == 0 else pltpu.roll(h, sh, axis=1)
                        y = y + jnp.where(masks[i][k], tap, 0.0) * wk
                y = y + bd

                # PReLU -> GroupNorm(1, C_b)
                y = jnp.where(y >= 0, y, y * a2)
                mu2 = jnp.mean(y)
                v2 = jnp.mean(y * y) - mu2 * mu2
                y = (y - mu2) * lax.rsqrt(v2 + GN_EPS) * g2w + g2b

                # fused [skip | output] heads; row split is a sublane slice
                heads = mm(wh, y) + hb                      # (C_s+C_e, T)
                skip = skip + heads[:C_s]
                cur = heads[C_s:] + cur                     # residual add
            return cur, skip

        cur, skip = lax.fori_loop(0, n_repeats, repeat_body, (cur, skip))

        # ---------------- epilogue: PReLU + 1x1 output conv --------------------
        s = jnp.where(skip >= 0, skip, skip * aout_ref[...])
        o_ref[0] = mm(wout_ref[...], s) + bout_ref[...]     # (C_out, T)

    return kernel


# --------------------------------- wrapper ------------------------------------
def tcn_forward(x_bct, params, K):
    x = x_bct.astype(jnp.float32)                           # PyTorch (B, C_in, T)
    B, C_in, T = x.shape
    blocks = params["blocks"]
    n_blocks, n_repeats = params["n_blocks"], params["n_repeats"]
    N = len(blocks)
    assert N == n_blocks * n_repeats
    C_e = params["w_in"].shape[0]
    C_b = blocks[0]["w1"].shape[0]
    C_s = blocks[0]["ws"].shape[0]
    C_out = params["w_out"].shape[0]
    # the reference module initializes skip with repeats_input's shape, which
    # requires skip_connection_channel_size == embed_channel_size
    assert C_s == C_e
    for blk in blocks:
        # depthwise conv must preserve the sequence length
        assert 2 * blk["padding"] == (K - 1) * blk["dilation"]
        assert blk["wd"].shape[1] == K
    # every repeat uses the same (dilation, padding) schedule
    dil_pad = tuple((blocks[i]["dilation"], blocks[i]["padding"])
                    for i in range(n_blocks))
    for r in range(n_repeats):
        for i in range(n_blocks):
            blk = blocks[r * n_blocks + i]
            assert (blk["dilation"], blk["padding"]) == dil_pad[i]

    def col(v):
        return v.reshape(-1, 1)

    def vec_pack(blk):
        ones = jnp.ones((C_b,), jnp.float32)
        cols = [blk["b1"], blk["g1w"], blk["g1b"], blk["a1"] * ones,
                blk["bd"], blk["g2w"], blk["g2b"], blk["a2"] * ones]
        cols += [blk["wd"][:, k] for k in range(K)]
        return jnp.stack(cols, axis=1)                      # (C_b, 8+K)

    W1 = jnp.stack([blk["w1"] for blk in blocks])           # (N, C_b, C_e)
    VEC = jnp.stack([vec_pack(blk) for blk in blocks])      # (N, C_b, 8+K)
    WH = jnp.stack([jnp.concatenate([blk["ws"], blk["wo"]], axis=0)
                    for blk in blocks])                     # (N, C_s+C_e, C_b)
    HB = jnp.stack([col(jnp.concatenate([blk["bs"], blk["bo"]], axis=0))
                    for blk in blocks])                     # (N, C_s+C_e, 1)

    LNW, LNB = col(params["ln_w"]), col(params["ln_b"])
    WIN, BIN = params["w_in"], col(params["b_in"])
    AOUT = params["a_out"].reshape(1, 1)
    WOUT, BOUT = params["w_out"], col(params["b_out"])

    kern = _make_tcn_kernel(T, C_in, C_e, C_b, C_s, C_out, K,
                            n_blocks, n_repeats, dil_pad, MATMUL_DTYPE)

    def whole(a):
        nd = a.ndim
        return pl.BlockSpec(a.shape, lambda b: (0,) * nd)

    in_arrays = [x, LNW, LNB, WIN, BIN, W1, VEC, WH, HB, AOUT, WOUT, BOUT]
    in_specs = ([pl.BlockSpec((1, C_in, T), lambda b: (b, 0, 0))]
                + [whole(a) for a in in_arrays[1:]])

    # VMEM budget: padded double-buffered operands + working-set margin,
    # clamped so it also fits v7x's 64 MiB physical VMEM.
    op_bytes = sum(_padded_bytes(a.shape) for a in in_arrays[1:])
    op_bytes += _padded_bytes((1, C_in, T)) + _padded_bytes((1, C_out, T))
    work_bytes = 16 * max(C_b, C_s + C_e, C_in) * _ceil_to(T, 128) * 4
    vmem_limit = int(min(max(2 * op_bytes + work_bytes, 16 * 1024 * 1024),
                         48 * 1024 * 1024))

    # advisory cost estimate (params counted once, not per batch element)
    mm_flops = B * (2 * C_e * C_in * T
                    + N * (2 * C_b * C_e * T + 2 * K * C_b * T
                           + 2 * (C_s + C_e) * C_b * T)
                    + 2 * C_out * C_s * T)
    param_elems = sum(int(a.size) for a in in_arrays[1:])
    bytes_acc = 4 * (B * C_in * T + B * C_out * T + param_elems)
    cost = pl.CostEstimate(flops=mm_flops,
                           transcendentals=B * (T + 2 * N),
                           bytes_accessed=bytes_acc)

    out = pl.pallas_call(
        kern,
        grid=(B,),                       # block/repeat loop lives inside the kernel
        in_specs=in_specs,
        out_specs=pl.BlockSpec((1, C_out, T), lambda b: (b, 0, 0)),
        out_shape=jax.ShapeDtypeStruct((B, C_out, T), jnp.float32),
        compiler_params=pltpu.CompilerParams(
            dimension_semantics=("parallel",),
            vmem_limit_bytes=vmem_limit),
        cost_estimate=cost,
    )(*in_arrays)
    return out                                              # (B, C_out, T)


# --------------------------- deterministic parameters --------------------------
def init_tcn_params(key, C_in, C_e, C_b, C_s, C_out, n_blocks, n_repeats, K):
    state = {"key": key}

    def nrm(shape, scale=0.1):
        state["key"], sub = jax.random.split(state["key"])
        return scale * jax.random.normal(sub, shape, jnp.float32)

    params = {
        "n_blocks": n_blocks, "n_repeats": n_repeats,
        "ln_w": jnp.ones((C_in,), jnp.float32),
        "ln_b": jnp.zeros((C_in,), jnp.float32),
        "w_in": nrm((C_e, C_in)), "b_in": nrm((C_e,)),
        "a_out": jnp.asarray(0.25, jnp.float32),
        "w_out": nrm((C_out, C_s)), "b_out": nrm((C_out,)),
        "blocks": [],
    }
    for _ in range(n_repeats):
        for i in range(n_blocks):
            params["blocks"].append({
                "w1": nrm((C_b, C_e)), "b1": nrm((C_b,)),
                "a1": jnp.asarray(0.25, jnp.float32),
                "g1w": jnp.ones((C_b,), jnp.float32) + nrm((C_b,), 0.01),
                "g1b": nrm((C_b,), 0.01),
                "wd": nrm((C_b, K)), "bd": nrm((C_b,)),
                "a2": jnp.asarray(0.25, jnp.float32),
                "g2w": jnp.ones((C_b,), jnp.float32) + nrm((C_b,), 0.01),
                "g2b": nrm((C_b,), 0.01),
                "ws": nrm((C_s, C_b)), "bs": nrm((C_s,)),
                "wo": nrm((C_e, C_b)), "bo": nrm((C_e,)),
                "dilation": 2 ** i, "padding": 2 ** i,
            })
    return params


# --------------------------- pure-JAX reference (check) ------------------------
def tcn_reference(x_bct, params, K):
    x = x_bct.astype(jnp.float32)
    xt = jnp.transpose(x, (0, 2, 1))                        # (B, T, C_in)
    mu = jnp.mean(xt, -1, keepdims=True)
    var = jnp.mean((xt - mu) ** 2, -1, keepdims=True)
    xn = (xt - mu) / jnp.sqrt(var + LN_EPS) * params["ln_w"] + params["ln_b"]
    xn = jnp.transpose(xn, (0, 2, 1))                       # (B, C_in, T)
    cur = jnp.einsum("oc,bct->bot", params["w_in"], xn) + params["b_in"][None, :, None]
    skip = jnp.zeros_like(cur)
    B, _, T = cur.shape
    for p in params["blocks"]:
        d, pad = p["dilation"], p["padding"]
        h = jnp.einsum("oc,bct->bot", p["w1"], cur) + p["b1"][None, :, None]
        h = jnp.where(h >= 0, h, h * p["a1"])
        mu = jnp.mean(h, axis=(1, 2), keepdims=True)
        var = jnp.mean((h - mu) ** 2, axis=(1, 2), keepdims=True)
        h = (h - mu) / jnp.sqrt(var + GN_EPS) * p["g1w"][None, :, None] + p["g1b"][None, :, None]
        hp = jnp.pad(h, ((0, 0), (0, 0), (pad, pad)))
        y = sum(hp[:, :, k * d:k * d + T] * p["wd"][:, k][None, :, None]
                for k in range(K)) + p["bd"][None, :, None]
        y = jnp.where(y >= 0, y, y * p["a2"])
        mu = jnp.mean(y, axis=(1, 2), keepdims=True)
        var = jnp.mean((y - mu) ** 2, axis=(1, 2), keepdims=True)
        y = (y - mu) / jnp.sqrt(var + GN_EPS) * p["g2w"][None, :, None] + p["g2b"][None, :, None]
        skip = skip + jnp.einsum("oc,bct->bot", p["ws"], y) + p["bs"][None, :, None]
        cur = jnp.einsum("oc,bct->bot", p["wo"], y) + p["bo"][None, :, None] + cur
    s = jnp.where(skip >= 0, skip, skip * params["a_out"])
    out = jnp.einsum("oc,bct->bot", params["w_out"], s) + params["b_out"][None, :, None]
    return out


if __name__ == "__main__":
    # small shapes consistent with the module
    B, C_in, T = 2, 16, 16
    C_e, C_b, C_s, C_out = 16, 32, 16, 8      # C_s == C_e required by the module
    n_blocks, n_repeats, K = 3, 2, 3          # padding = dilation keeps length (K=3)

    key = jax.random.PRNGKey(0)
    pkey, xkey = jax.random.split(key)
    params = init_tcn_params(pkey, C_in, C_e, C_b, C_s, C_out,
                             n_blocks, n_repeats, K)
    x = jax.random.normal(xkey, (B, C_in, T), jnp.float32)   # PyTorch (B, C, T)

    fwd = jax.jit(lambda xx: tcn_forward(xx, params, K))
    out = jax.block_until_ready(fwd(x))
    assert out.shape == (B, C_out, T)

    ref = jax.block_until_ready(tcn_reference(x, params, K))
    err = float(jnp.max(jnp.abs(out - ref)))
    assert jnp.allclose(out, ref, atol=2e-3, rtol=2e-3), f"max abs err {err}"

    print("KERNEL_OK")
</pallas_src>

<mosaic_0001>
module attributes {stable_mosaic.version = 11 : i64} {
  func.func @kernel(%arg0: i32, %arg1: memref<1x16x16xf32, #tpu.memory_space<vmem>>, %arg2: memref<16x1xf32, #tpu.memory_space<vmem>>, %arg3: memref<16x1xf32, #tpu.memory_space<vmem>>, %arg4: memref<16x16xf32, #tpu.memory_space<vmem>>, %arg5: memref<16x1xf32, #tpu.memory_space<vmem>>, %arg6: memref<6x32x16xf32, #tpu.memory_space<vmem>>, %arg7: memref<6x32x11xf32, #tpu.memory_space<vmem>>, %arg8: memref<6x32x32xf32, #tpu.memory_space<vmem>>, %arg9: memref<6x32x1xf32, #tpu.memory_space<vmem>>, %arg10: memref<1x1xf32, #tpu.memory_space<vmem>>, %arg11: memref<8x16xf32, #tpu.memory_space<vmem>>, %arg12: memref<8x1xf32, #tpu.memory_space<vmem>>, %arg13: memref<1x8x16xf32, #tpu.memory_space<vmem>>) attributes {dimension_semantics = [#tpu.dimension_semantics<parallel>], iteration_bounds = array<i64: 2>, scalar_prefetch = 0 : i64, scratch_operands = 0 : i64, tpu.core_type = #tpu.core_type<tc>, window_params = [{transform_indices = @transform_0, window_bounds = array<i64: 1, 16, 16>}, {pipeline_mode = #tpu.pipeline_mode<synchronous>, transform_indices = @transform_1, window_bounds = array<i64: 16, 1>}, {pipeline_mode = #tpu.pipeline_mode<synchronous>, transform_indices = @transform_2, window_bounds = array<i64: 16, 1>}, {pipeline_mode = #tpu.pipeline_mode<synchronous>, transform_indices = @transform_3, window_bounds = array<i64: 16, 16>}, {pipeline_mode = #tpu.pipeline_mode<synchronous>, transform_indices = @transform_4, window_bounds = array<i64: 16, 1>}, {pipeline_mode = #tpu.pipeline_mode<synchronous>, transform_indices = @transform_5, window_bounds = array<i64: 6, 32, 16>}, {pipeline_mode = #tpu.pipeline_mode<synchronous>, transform_indices = @transform_6, window_bounds = array<i64: 6, 32, 11>}, {pipeline_mode = #tpu.pipeline_mode<synchronous>, transform_indices = @transform_7, window_bounds = array<i64: 6, 32, 32>}, {pipeline_mode = #tpu.pipeline_mode<synchronous>, transform_indices = @transform_8, window_bounds = array<i64: 6, 32, 1>}, {pipeline_mode = #tpu.pipeline_mode<synchronous>, transform_indices = @transform_9, window_bounds = array<i64: 1, 1>}, {pipeline_mode = #tpu.pipeline_mode<synchronous>, transform_indices = @transform_10, window_bounds = array<i64: 8, 16>}, {pipeline_mode = #tpu.pipeline_mode<synchronous>, transform_indices = @transform_11, window_bounds = array<i64: 8, 1>}, {transform_indices = @transform_12, window_bounds = array<i64: 1, 8, 16>}]} {
    %c0 = arith.constant 0 : index
    %c0_0 = arith.constant 0 : index
    %c0_1 = arith.constant 0 : index
    %0 = vector.load %arg1[%c0, %c0_0, %c0_1] : memref<1x16x16xf32, #tpu.memory_space<vmem>>, vector<1x16x16xf32>
    %1 = vector.shape_cast %0 : vector<1x16x16xf32> to vector<16x16xf32>
    %cst = arith.constant dense<0.000000e+00> : vector<16xf32>
    %2 = vector.multi_reduction <add>, %1, %cst [0] : vector<16x16xf32> to vector<16xf32>
    %3 = vector.shape_cast %2 : vector<16xf32> to vector<1x16xf32>
    %cst_2 = arith.constant 1.600000e+01 : f32
    %4 = vector.broadcast %cst_2 : f32 to vector<1x16xf32>
    %5 = arith.divf %3, %4 : vector<1x16xf32>
    %6 = arith.mulf %1, %1 : vector<16x16xf32>
    %cst_3 = arith.constant dense<0.000000e+00> : vector<16xf32>
    %7 = vector.multi_reduction <add>, %6, %cst_3 [0] : vector<16x16xf32> to vector<16xf32>
    %8 = vector.shape_cast %7 : vector<16xf32> to vector<1x16xf32>
    %cst_4 = arith.constant 1.600000e+01 : f32
    %9 = vector.broadcast %cst_4 : f32 to vector<1x16xf32>
    %10 = arith.divf %8, %9 : vector<1x16xf32>
    %11 = vector.broadcast %5 : vector<1x16xf32> to vector<16x16xf32>
    %12 = arith.subf %1, %11 : vector<16x16xf32>
    %13 = arith.mulf %5, %5 : vector<1x16xf32>
    %14 = arith.subf %10, %13 : vector<1x16xf32>
    %cst_5 = arith.constant 9.99999974E-6 : f32
    %15 = vector.broadcast %cst_5 : f32 to vector<1x16xf32>
    %16 = arith.addf %14, %15 : vector<1x16xf32>
    %17 = math.rsqrt %16 : vector<1x16xf32>
    %18 = vector.broadcast %17 : vector<1x16xf32> to vector<16x16xf32>
    %19 = arith.mulf %12, %18 : vector<16x16xf32>
    %c0_6 = arith.constant 0 : index
    %c0_7 = arith.constant 0 : index
    %20 = vector.load %arg2[%c0_6, %c0_7] : memref<16x1xf32, #tpu.memory_space<vmem>>, vector<16x1xf32>
    %21 = vector.broadcast %20 : vector<16x1xf32> to vector<16x16xf32>
    %22 = arith.mulf %19, %21 : vector<16x16xf32>
    %c0_8 = arith.constant 0 : index
    %c0_9 = arith.constant 0 : index
    %23 = vector.load %arg3[%c0_8, %c0_9] : memref<16x1xf32, #tpu.memory_space<vmem>>, vector<16x1xf32>
    %24 = vector.broadcast %23 : vector<16x1xf32> to vector<16x16xf32>
    %25 = arith.addf %22, %24 : vector<16x16xf32>
    %c0_10 = arith.constant 0 : index
    %c0_11 = arith.constant 0 : index
    %26 = vector.load %arg4[%c0_10, %c0_11] : memref<16x16xf32, #tpu.memory_space<vmem>>, vector<16x16xf32>
    %cst_12 = arith.constant dense<0.000000e+00> : vector<16x16xf32>
    %27 = tpu.matmul %26, %25, %cst_12 {dimension_numbers = #tpu.dot_dimension_numbers<[1], [0], [0], [1], [0, 0, 1, 1], [], []>} : vector<16x16xf32>, vector<16x16xf32>, vector<16x16xf32> -> vector<16x16xf32>
    %c0_13 = arith.constant 0 : index
    %c0_14 = arith.constant 0 : index
    %28 = vector.load %arg5[%c0_13, %c0_14] : memref<16x1xf32, #tpu.memory_space<vmem>>, vector<16x1xf32>
    %29 = vector.broadcast %28 : vector<16x1xf32> to vector<16x16xf32>
    %30 = arith.addf %27, %29 : vector<16x16xf32>
    %cst_15 = arith.constant 0.000000e+00 : f32
    %31 = vector.broadcast %cst_15 : f32 to vector<16x16xf32>
    %32 = tpu.iota {dimensions = array<i32: 1>} : vector<1x16xi32>
    %c-1_i32 = arith.constant -1 : i32
    %33 = vector.broadcast %c-1_i32 : i32 to vector<1x16xi32>
    %34 = arith.addi %32, %33 : vector<1x16xi32>
    %c0_i32 = arith.constant 0 : i32
    %35 = vector.broadcast %c0_i32 : i32 to vector<1x16xi32>
    %36 = arith.cmpi sge, %34, %35 : vector<1x16xi32>
    %c-1_i32_16 = arith.constant -1 : i32
    %37 = vector.broadcast %c-1_i32_16 : i32 to vector<1x16xi32>
    %38 = arith.addi %32, %37 : vector<1x16xi32>
    %c16_i32 = arith.constant 16 : i32
    %39 = vector.broadcast %c16_i32 : i32 to vector<1x16xi32>
    %40 = arith.cmpi slt, %38, %39 : vector<1x16xi32>
    %41 = arith.andi %36, %40 : vector<1x16xi1>
    %c1_i32 = arith.constant 1 : i32
    %42 = vector.broadcast %c1_i32 : i32 to vector<1x16xi32>
    %43 = arith.addi %32, %42 : vector<1x16xi32>
    %c0_i32_17 = arith.constant 0 : i32
    %44 = vector.broadcast %c0_i32_17 : i32 to vector<1x16xi32>
    %45 = arith.cmpi sge, %43, %44 : vector<1x16xi32>
    %c1_i32_18 = arith.constant 1 : i32
    %46 = vector.broadcast %c1_i32_18 : i32 to vector<1x16xi32>
    %47 = arith.addi %32, %46 : vector<1x16xi32>
    %c16_i32_19 = arith.constant 16 : i32
    %48 = vector.broadcast %c16_i32_19 : i32 to vector<1x16xi32>
    %49 = arith.cmpi slt, %47, %48 : vector<1x16xi32>
    %50 = arith.andi %45, %49 : vector<1x16xi1>
    %c-2_i32 = arith.constant -2 : i32
    %51 = vector.broadcast %c-2_i32 : i32 to vector<1x16xi32>
    %52 = arith.addi %32, %51 : vector<1x16xi32>
    %c0_i32_20 = arith.constant 0 : i32
    %53 = vector.broadcast %c0_i32_20 : i32 to vector<1x16xi32>
    %54 = arith.cmpi sge, %52, %53 : vector<1x16xi32>
    %c-2_i32_21 = arith.constant -2 : i32
    %55 = vector.broadcast %c-2_i32_21 : i32 to vector<1x16xi32>
    %56 = arith.addi %32, %55 : vector<1x16xi32>
    %c16_i32_22 = arith.constant 16 : i32
    %57 = vector.broadcast %c16_i32_22 : i32 to vector<1x16xi32>
    %58 = arith.cmpi slt, %56, %57 : vector<1x16xi32>
    %59 = arith.andi %54, %58 : vector<1x16xi1>
    %c2_i32 = arith.constant 2 : i32
    %60 = vector.broadcast %c2_i32 : i32 to vector<1x16xi32>
    %61 = arith.addi %32, %60 : vector<1x16xi32>
    %c0_i32_23 = arith.constant 0 : i32
    %62 = vector.broadcast %c0_i32_23 : i32 to vector<1x16xi32>
    %63 = arith.cmpi sge, %61, %62 : vector<1x16xi32>
    %c2_i32_24 = arith.constant 2 : i32
    %64 = vector.broadcast %c2_i32_24 : i32 to vector<1x16xi32>
    %65 = arith.addi %32, %64 : vector<1x16xi32>
    %c16_i32_25 = arith.constant 16 : i32
    %66 = vector.broadcast %c16_i32_25 : i32 to vector<1x16xi32>
    %67 = arith.cmpi slt, %65, %66 : vector<1x16xi32>
    %68 = arith.andi %63, %67 : vector<1x16xi1>
    %c-4_i32 = arith.constant -4 : i32
    %69 = vector.broadcast %c-4_i32 : i32 to vector<1x16xi32>
    %70 = arith.addi %32, %69 : vector<1x16xi32>
    %c0_i32_26 = arith.constant 0 : i32
    %71 = vector.broadcast %c0_i32_26 : i32 to vector<1x16xi32>
    %72 = arith.cmpi sge, %70, %71 : vector<1x16xi32>
    %c-4_i32_27 = arith.constant -4 : i32
    %73 = vector.broadcast %c-4_i32_27 : i32 to vector<1x16xi32>
    %74 = arith.addi %32, %73 : vector<1x16xi32>
    %c16_i32_28 = arith.constant 16 : i32
    %75 = vector.broadcast %c16_i32_28 : i32 to vector<1x16xi32>
    %76 = arith.cmpi slt, %74, %75 : vector<1x16xi32>
    %77 = arith.andi %72, %76 : vector<1x16xi1>
    %c4_i32 = arith.constant 4 : i32
    %78 = vector.broadcast %c4_i32 : i32 to vector<1x16xi32>
    %79 = arith.addi %32, %78 : vector<1x16xi32>
    %c0_i32_29 = arith.constant 0 : i32
    %80 = vector.broadcast %c0_i32_29 : i32 to vector<1x16xi32>
    %81 = arith.cmpi sge, %79, %80 : vector<1x16xi32>
    %c4_i32_30 = arith.constant 4 : i32
    %82 = vector.broadcast %c4_i32_30 : i32 to vector<1x16xi32>
    %83 = arith.addi %32, %82 : vector<1x16xi32>
    %c16_i32_31 = arith.constant 16 : i32
    %84 = vector.broadcast %c16_i32_31 : i32 to vector<1x16xi32>
    %85 = arith.cmpi slt, %83, %84 : vector<1x16xi32>
    %86 = arith.andi %81, %85 : vector<1x16xi1>
    %c0_i32_32 = arith.constant 0 : i32
    %c2_i32_33 = arith.constant 2 : i32
    %87 = arith.addi %c0_i32_32, %c2_i32_33 : i32
    %c1_i32_34 = arith.constant 1 : i32
    %88:2 = scf.for %arg14 = %c0_i32_32 to %87 step %c1_i32_34 iter_args(%arg15 = %30, %arg16 = %31) -> (vector<16x16xf32>, vector<16x16xf32>)  : i32 {
      %c3_i32 = arith.constant 3 : i32
      %103 = arith.muli %arg14, %c3_i32 : i32
      %c0_i32_47 = arith.constant 0 : i32
      %104 = arith.addi %103, %c0_i32_47 : i32
      %105 = arith.index_cast %104 : i32 to index
      %c0_48 = arith.constant 0 : index
      %c0_49 = arith.constant 0 : index
      %106 = vector.load %arg6[%105, %c0_48, %c0_49] : memref<6x32x16xf32, #tpu.memory_space<vmem>>, vector<1x32x16xf32>
      %107 = vector.shape_cast %106 : vector<1x32x16xf32> to vector<32x16xf32>
      %108 = arith.index_cast %104 : i32 to index
      %c0_50 = arith.constant 0 : index
      %c0_51 = arith.constant 0 : index
      %109 = vector.load %arg7[%108, %c0_50, %c0_51] : memref<6x32x11xf32, #tpu.memory_space<vmem>>, vector<1x32x11xf32>
      %110 = vector.shape_cast %109 : vector<1x32x11xf32> to vector<32x11xf32>
      %111 = arith.index_cast %104 : i32 to index
      %c0_52 = arith.constant 0 : index
      %c0_53 = arith.constant 0 : index
      %112 = vector.load %arg8[%111, %c0_52, %c0_53] : memref<6x32x32xf32, #tpu.memory_space<vmem>>, vector<1x32x32xf32>
      %113 = vector.shape_cast %112 : vector<1x32x32xf32> to vector<32x32xf32>
      %114 = arith.index_cast %104 : i32 to index
      %c0_54 = arith.constant 0 : index
      %c0_55 = arith.constant 0 : index
      %115 = vector.load %arg9[%114, %c0_54, %c0_55] : memref<6x32x1xf32, #tpu.memory_space<vmem>>, vector<1x32x1xf32>
      %116 = vector.shape_cast %115 : vector<1x32x1xf32> to vector<32x1xf32>
      %117 = vector.extract_strided_slice %110 {offsets = [0, 0], sizes = [32, 1], strides = [1, 1]} : vector<32x11xf32> to vector<32x1xf32>
      %118 = vector.extract_strided_slice %110 {offsets = [0, 1], sizes = [32, 1], strides = [1, 1]} : vector<32x11xf32> to vector<32x1xf32>
      %119 = vector.extract_strided_slice %110 {offsets = [0, 2], sizes = [32, 1], strides = [1, 1]} : vector<32x11xf32> to vector<32x1xf32>
      %120 = vector.extract_strided_slice %110 {offsets = [0, 3], sizes = [32, 1], strides = [1, 1]} : vector<32x11xf32> to vector<32x1xf32>
      %121 = vector.extract_strided_slice %110 {offsets = [0, 4], sizes = [32, 1], strides = [1, 1]} : vector<32x11xf32> to vector<32x1xf32>
      %122 = vector.extract_strided_slice %110 {offsets = [0, 5], sizes = [32, 1], strides = [1, 1]} : vector<32x11xf32> to vector<32x1xf32>
      %123 = vector.extract_strided_slice %110 {offsets = [0, 6], sizes = [32, 1], strides = [1, 1]} : vector<32x11xf32> to vector<32x1xf32>
      %124 = vector.extract_strided_slice %110 {offsets = [0, 7], sizes = [32, 1], strides = [1, 1]} : vector<32x11xf32> to vector<32x1xf32>
      %cst_56 = arith.constant dense<0.000000e+00> : vector<32x16xf32>
      %125 = tpu.matmul %107, %arg15, %cst_56 {dimension_numbers = #tpu.dot_dimension_numbers<[1], [0], [0], [1], [0, 0, 1, 1], [], []>} : vector<32x16xf32>, vector<16x16xf32>, vector<32x16xf32> -> vector<32x16xf32>
      %126 = vector.broadcast %117 : vector<32x1xf32> to vector<32x16xf32>
      %127 = arith.addf %125, %126 : vector<32x16xf32>
      %cst_57 = arith.constant 0.000000e+00 : f32
      %128 = vector.broadcast %cst_57 : f32 to vector<32x16xf32>
      %129 = arith.cmpf oge, %127, %128 : vector<32x16xf32>
      %130 = vector.broadcast %120 : vector<32x1xf32> to vector<32x16xf32>
      %131 = arith.mulf %127, %130 : vector<32x16xf32>
      %132 = arith.select %129, %127, %131 : vector<32x16xi1>, vector<32x16xf32>
      %133 = vector.shape_cast %132 : vector<32x16xf32> to vector<1x32x16xf32>
      %cst_58 = arith.constant dense<0.000000e+00> : vector<1xf32>
      %134 = vector.multi_reduction <add>, %133, %cst_58 [1, 2] : vector<1x32x16xf32> to vector<1xf32>
      %135 = vector.shape_cast %134 : vector<1xf32> to vector<1x1x1xf32>
      %136 = vector.extract %135[0, 0, 0] : f32 from vector<1x1x1xf32>
      %cst_59 = arith.constant 5.120000e+02 : f32
      %137 = arith.divf %136, %cst_59 : f32
      %138 = arith.mulf %132, %132 : vector<32x16xf32>
      %139 = vector.shape_cast %138 : vector<32x16xf32> to vector<1x32x16xf32>
      %cst_60 = arith.constant dense<0.000000e+00> : vector<1xf32>
      %140 = vector.multi_reduction <add>, %139, %cst_60 [1, 2] : vector<1x32x16xf32> to vector<1xf32>
      %141 = vector.shape_cast %140 : vector<1xf32> to vector<1x1x1xf32>
      %142 = vector.extract %141[0, 0, 0] : f32 from vector<1x1x1xf32>
      %cst_61 = arith.constant 5.120000e+02 : f32
      %143 = arith.divf %142, %cst_61 : f32
      %144 = arith.mulf %137, %137 : f32
      %145 = arith.subf %143, %144 : f32
      %146 = vector.broadcast %137 : f32 to vector<32x16xf32>
      %147 = arith.subf %132, %146 : vector<32x16xf32>
      %cst_62 = arith.constant 1.000000e-10 : f32
      %148 = arith.addf %145, %cst_62 : f32
      %149 = math.rsqrt %148 : f32
      %150 = vector.broadcast %149 : f32 to vector<32x16xf32>
      %151 = arith.mulf %147, %150 : vector<32x16xf32>
      %152 = vector.broadcast %118 : vector<32x1xf32> to vector<32x16xf32>
      %153 = arith.mulf %151, %152 : vector<32x16xf32>
      %154 = vector.broadcast %119 : vector<32x1xf32> to vector<32x16xf32>
      %155 = arith.addf %153, %154 : vector<32x16xf32>
      %cst_63 = arith.constant 0.000000e+00 : f32
      %156 = vector.broadcast %cst_63 : f32 to vector<32x16xf32>
      %157 = vector.extract_strided_slice %110 {offsets = [0, 8], sizes = [32, 1], strides = [1, 1]} : vector<32x11xf32> to vector<32x1xf32>
      %c1_i32_64 = arith.constant 1 : i32
      %158 = tpu.dynamic_rotate %155 by %c1_i32_64 dim 1 : vector<32x16xf32>, i32 -> vector<32x16xf32>
      %cst_65 = arith.constant 0.000000e+00 : f32
      %159 = vector.shape_cast %41 : vector<1x16xi1> to vector<1x16xi1>
      %160 = vector.broadcast %159 : vector<1x16xi1> to vector<32x16xi1>
      %161 = vector.broadcast %cst_65 : f32 to vector<32x16xf32>
      %162 = arith.select %160, %158, %161 : vector<32x16xi1>, vector<32x16xf32>
      %163 = vector.broadcast %157 : vector<32x1xf32> to vector<32x16xf32>
      %164 = arith.mulf %162, %163 : vector<32x16xf32>
      %165 = arith.addf %156, %164 : vector<32x16xf32>
      %166 = vector.extract_strided_slice %110 {offsets = [0, 9], sizes = [32, 1], strides = [1, 1]} : vector<32x11xf32> to vector<32x1xf32>
      %167 = vector.broadcast %166 : vector<32x1xf32> to vector<32x16xf32>
      %168 = arith.mulf %155, %167 : vector<32x16xf32>
      %169 = arith.addf %165, %168 : vector<32x16xf32>
      %170 = vector.extract_strided_slice %110 {offsets = [0, 10], sizes = [32, 1], strides = [1, 1]} : vector<32x11xf32> to vector<32x1xf32>
      %c15_i32 = arith.constant 15 : i32
      %171 = tpu.dynamic_rotate %155 by %c15_i32 dim 1 : vector<32x16xf32>, i32 -> vector<32x16xf32>
      %cst_66 = arith.constant 0.000000e+00 : f32
      %172 = vector.shape_cast %50 : vector<1x16xi1> to vector<1x16xi1>
      %173 = vector.broadcast %172 : vector<1x16xi1> to vector<32x16xi1>
      %174 = vector.broadcast %cst_66 : f32 to vector<32x16xf32>
      %175 = arith.select %173, %171, %174 : vector<32x16xi1>, vector<32x16xf32>
      %176 = vector.broadcast %170 : vector<32x1xf32> to vector<32x16xf32>
      %177 = arith.mulf %175, %176 : vector<32x16xf32>
      %178 = arith.addf %169, %177 : vector<32x16xf32>
      %179 = vector.broadcast %121 : vector<32x1xf32> to vector<32x16xf32>
      %180 = arith.addf %178, %179 : vector<32x16xf32>
      %cst_67 = arith.constant 0.000000e+00 : f32
      %181 = vector.broadcast %cst_67 : f32 to vector<32x16xf32>
      %182 = arith.cmpf oge, %180, %181 : vector<32x16xf32>
      %183 = vector.broadcast %124 : vector<32x1xf32> to vector<32x16xf32>
      %184 = arith.mulf %180, %183 : vector<32x16xf32>
      %185 = arith.select %182, %180, %184 : vector<32x16xi1>, vector<32x16xf32>
      %186 = vector.shape_cast %185 : vector<32x16xf32> to vector<1x32x16xf32>
      %cst_68 = arith.constant dense<0.000000e+00> : vector<1xf32>
      %187 = vector.multi_reduction <add>, %186, %cst_68 [1, 2] : vector<1x32x16xf32> to vector<1xf32>
      %188 = vector.shape_cast %187 : vector<1xf32> to vector<1x1x1xf32>
      %189 = vector.extract %188[0, 0, 0] : f32 from vector<1x1x1xf32>
      %cst_69 = arith.constant 5.120000e+02 : f32
      %190 = arith.divf %189, %cst_69 : f32
      %191 = arith.mulf %185, %185 : vector<32x16xf32>
      %192 = vector.shape_cast %191 : vector<32x16xf32> to vector<1x32x16xf32>
      %cst_70 = arith.constant dense<0.000000e+00> : vector<1xf32>
      %193 = vector.multi_reduction <add>, %192, %cst_70 [1, 2] : vector<1x32x16xf32> to vector<1xf32>
      %194 = vector.shape_cast %193 : vector<1xf32> to vector<1x1x1xf32>
      %195 = vector.extract %194[0, 0, 0] : f32 from vector<1x1x1xf32>
      %cst_71 = arith.constant 5.120000e+02 : f32
      %196 = arith.divf %195, %cst_71 : f32
      %197 = arith.mulf %190, %190 : f32
      %198 = arith.subf %196, %197 : f32
      %199 = vector.broadcast %190 : f32 to vector<32x16xf32>
      %200 = arith.subf %185, %199 : vector<32x16xf32>
      %cst_72 = arith.constant 1.000000e-10 : f32
      %201 = arith.addf %198, %cst_72 : f32
      %202 = math.rsqrt %201 : f32
      %203 = vector.broadcast %202 : f32 to vector<32x16xf32>
      %204 = arith.mulf %200, %203 : vector<32x16xf32>
      %205 = vector.broadcast %122 : vector<32x1xf32> to vector<32x16xf32>
      %206 = arith.mulf %204, %205 : vector<32x16xf32>
      %207 = vector.broadcast %123 : vector<32x1xf32> to vector<32x16xf32>
      %208 = arith.addf %206, %207 : vector<32x16xf32>
      %cst_73 = arith.constant dense<0.000000e+00> : vector<32x16xf32>
      %209 = tpu.matmul %113, %208, %cst_73 {dimension_numbers = #tpu.dot_dimension_numbers<[1], [0], [0], [1], [0, 0, 1, 1], [], []>} : vector<32x32xf32>, vector<32x16xf32>, vector<32x16xf32> -> vector<32x16xf32>
      %210 = vector.broadcast %116 : vector<32x1xf32> to vector<32x16xf32>
      %211 = arith.addf %209, %210 : vector<32x16xf32>
      %212 = vector.extract_strided_slice %211 {offsets = [0, 0], sizes = [16, 16], strides = [1, 1]} : vector<32x16xf32> to vector<16x16xf32>
      %213 = arith.addf %arg16, %212 : vector<16x16xf32>
      %214 = vector.extract_strided_slice %211 {offsets = [16, 0], sizes = [16, 16], strides = [1, 1]} : vector<32x16xf32> to vector<16x16xf32>
      %215 = arith.addf %214, %arg15 : vector<16x16xf32>
      %c3_i32_74 = arith.constant 3 : i32
      %216 = arith.muli %arg14, %c3_i32_74 : i32
      %c1_i32_75 = arith.constant 1 : i32
      %217 = arith.addi %216, %c1_i32_75 : i32
      %218 = arith.index_cast %217 : i32 to index
      %c0_76 = arith.constant 0 : index
      %c0_77 = arith.constant 0 : index
      %219 = vector.load %arg6[%218, %c0_76, %c0_77] : memref<6x32x16xf32, #tpu.memory_space<vmem>>, vector<1x32x16xf32>
      %220 = vector.shape_cast %219 : vector<1x32x16xf32> to vector<32x16xf32>
      %221 = arith.index_cast %217 : i32 to index
      %c0_78 = arith.constant 0 : index
      %c0_79 = arith.constant 0 : index
      %222 = vector.load %arg7[%221, %c0_78, %c0_79] : memref<6x32x11xf32, #tpu.memory_space<vmem>>, vector<1x32x11xf32>
      %223 = vector.shape_cast %222 : vector<1x32x11xf32> to vector<32x11xf32>
      %224 = arith.index_cast %217 : i32 to index
      %c0_80 = arith.constant 0 : index
      %c0_81 = arith.constant 0 : index
      %225 = vector.load %arg8[%224, %c0_80, %c0_81] : memref<6x32x32xf32, #tpu.memory_space<vmem>>, vector<1x32x32xf32>
      %226 = vector.shape_cast %225 : vector<1x32x32xf32> to vector<32x32xf32>
      %227 = arith.index_cast %217 : i32 to index
      %c0_82 = arith.constant 0 : index
      %c0_83 = arith.constant 0 : index
      %228 = vector.load %arg9[%227, %c0_82, %c0_83] : memref<6x32x1xf32, #tpu.memory_space<vmem>>, vector<1x32x1xf32>
      %229 = vector.shape_cast %228 : vector<1x32x1xf32> to vector<32x1xf32>
      %230 = vector.extract_strided_slice %223 {offsets = [0, 0], sizes = [32, 1], strides = [1, 1]} : vector<32x11xf32> to vector<32x1xf32>
      %231 = vector.extract_strided_slice %223 {offsets = [0, 1], sizes = [32, 1], strides = [1, 1]} : vector<32x11xf32> to vector<32x1xf32>
      %232 = vector.extract_strided_slice %223 {offsets = [0, 2], sizes = [32, 1], strides = [1, 1]} : vector<32x11xf32> to vector<32x1xf32>
      %233 = vector.extract_strided_slice %223 {offsets = [0, 3], sizes = [32, 1], strides = [1, 1]} : vector<32x11xf32> to vector<32x1xf32>
      %234 = vector.extract_strided_slice %223 {offsets = [0, 4], sizes = [32, 1], strides = [1, 1]} : vector<32x11xf32> to vector<32x1xf32>
      %235 = vector.extract_strided_slice %223 {offsets = [0, 5], sizes = [32, 1], strides = [1, 1]} : vector<32x11xf32> to vector<32x1xf32>
      %236 = vector.extract_strided_slice %223 {offsets = [0, 6], sizes = [32, 1], strides = [1, 1]} : vector<32x11xf32> to vector<32x1xf32>
      %237 = vector.extract_strided_slice %223 {offsets = [0, 7], sizes = [32, 1], strides = [1, 1]} : vector<32x11xf32> to vector<32x1xf32>
      %cst_84 = arith.constant dense<0.000000e+00> : vector<32x16xf32>
      %238 = tpu.matmul %220, %215, %cst_84 {dimension_numbers = #tpu.dot_dimension_numbers<[1], [0], [0], [1], [0, 0, 1, 1], [], []>} : vector<32x16xf32>, vector<16x16xf32>, vector<32x16xf32> -> vector<32x16xf32>
      %239 = vector.broadcast %230 : vector<32x1xf32> to vector<32x16xf32>
      %240 = arith.addf %238, %239 : vector<32x16xf32>
      %cst_85 = arith.constant 0.000000e+00 : f32
      %241 = vector.broadcast %cst_85 : f32 to vector<32x16xf32>
      %242 = arith.cmpf oge, %240, %241 : vector<32x16xf32>
      %243 = vector.broadcast %233 : vector<32x1xf32> to vector<32x16xf32>
      %244 = arith.mulf %240, %243 : vector<32x16xf32>
      %245 = arith.select %242, %240, %244 : vector<32x16xi1>, vector<32x16xf32>
      %246 = vector.shape_cast %245 : vector<32x16xf32> to vector<1x32x16xf32>
      %cst_86 = arith.constant dense<0.000000e+00> : vector<1xf32>
      %247 = vector.multi_reduction <add>, %246, %cst_86 [1, 2] : vector<1x32x16xf32> to vector<1xf32>
      %248 = vector.shape_cast %247 : vector<1xf32> to vector<1x1x1xf32>
      %249 = vector.extract %248[0, 0, 0] : f32 from vector<1x1x1xf32>
      %cst_87 = arith.constant 5.120000e+02 : f32
      %250 = arith.divf %249, %cst_87 : f32
      %251 = arith.mulf %245, %245 : vector<32x16xf32>
      %252 = vector.shape_cast %251 : vector<32x16xf32> to vector<1x32x16xf32>
      %cst_88 = arith.constant dense<0.000000e+00> : vector<1xf32>
      %253 = vector.multi_reduction <add>, %252, %cst_88 [1, 2] : vector<1x32x16xf32> to vector<1xf32>
      %254 = vector.shape_cast %253 : vector<1xf32> to vector<1x1x1xf32>
      %255 = vector.extract %254[0, 0, 0] : f32 from vector<1x1x1xf32>
      %cst_89 = arith.constant 5.120000e+02 : f32
      %256 = arith.divf %255, %cst_89 : f32
      %257 = arith.mulf %250, %250 : f32
      %258 = arith.subf %256, %257 : f32
      %259 = vector.broadcast %250 : f32 to vector<32x16xf32>
      %260 = arith.subf %245, %259 : vector<32x16xf32>
      %cst_90 = arith.constant 1.000000e-10 : f32
      %261 = arith.addf %258, %cst_90 : f32
      %262 = math.rsqrt %261 : f32
      %263 = vector.broadcast %262 : f32 to vector<32x16xf32>
      %264 = arith.mulf %260, %263 : vector<32x16xf32>
      %265 = vector.broadcast %231 : vector<32x1xf32> to vector<32x16xf32>
      %266 = arith.mulf %264, %265 : vector<32x16xf32>
      %267 = vector.broadcast %232 : vector<32x1xf32> to vector<32x16xf32>
      %268 = arith.addf %266, %267 : vector<32x16xf32>
      %cst_91 = arith.constant 0.000000e+00 : f32
      %269 = vector.broadcast %cst_91 : f32 to vector<32x16xf32>
      %270 = vector.extract_strided_slice %223 {offsets = [0, 8], sizes = [32, 1], strides = [1, 1]} : vector<32x11xf32> to vector<32x1xf32>
      %c2_i32_92 = arith.constant 2 : i32
      %271 = tpu.dynamic_rotate %268 by %c2_i32_92 dim 1 : vector<32x16xf32>, i32 -> vector<32x16xf32>
      %cst_93 = arith.constant 0.000000e+00 : f32
      %272 = vector.shape_cast %59 : vector<1x16xi1> to vector<1x16xi1>
      %273 = vector.broadcast %272 : vector<1x16xi1> to vector<32x16xi1>
      %274 = vector.broadcast %cst_93 : f32 to vector<32x16xf32>
      %275 = arith.select %273, %271, %274 : vector<32x16xi1>, vector<32x16xf32>
      %276 = vector.broadcast %270 : vector<32x1xf32> to vector<32x16xf32>
      %277 = arith.mulf %275, %276 : vector<32x16xf32>
      %278 = arith.addf %269, %277 : vector<32x16xf32>
      %279 = vector.extract_strided_slice %223 {offsets = [0, 9], sizes = [32, 1], strides = [1, 1]} : vector<32x11xf32> to vector<32x1xf32>
      %280 = vector.broadcast %279 : vector<32x1xf32> to vector<32x16xf32>
      %281 = arith.mulf %268, %280 : vector<32x16xf32>
      %282 = arith.addf %278, %281 : vector<32x16xf32>
      %283 = vector.extract_strided_slice %223 {offsets = [0, 10], sizes = [32, 1], strides = [1, 1]} : vector<32x11xf32> to vector<32x1xf32>
      %c14_i32 = arith.constant 14 : i32
      %284 = tpu.dynamic_rotate %268 by %c14_i32 dim 1 : vector<32x16xf32>, i32 -> vector<32x16xf32>
      %cst_94 = arith.constant 0.000000e+00 : f32
      %285 = vector.shape_cast %68 : vector<1x16xi1> to vector<1x16xi1>
      %286 = vector.broadcast %285 : vector<1x16xi1> to vector<32x16xi1>
      %287 = vector.broadcast %cst_94 : f32 to vector<32x16xf32>
      %288 = arith.select %286, %284, %287 : vector<32x16xi1>, vector<32x16xf32>
      %289 = vector.broadcast %283 : vector<32x1xf32> to vector<32x16xf32>
      %290 = arith.mulf %288, %289 : vector<32x16xf32>
      %291 = arith.addf %282, %290 : vector<32x16xf32>
      %292 = vector.broadcast %234 : vector<32x1xf32> to vector<32x16xf32>
      %293 = arith.addf %291, %292 : vector<32x16xf32>
      %cst_95 = arith.constant 0.000000e+00 : f32
      %294 = vector.broadcast %cst_95 : f32 to vector<32x16xf32>
      %295 = arith.cmpf oge, %293, %294 : vector<32x16xf32>
      %296 = vector.broadcast %237 : vector<32x1xf32> to vector<32x16xf32>
      %297 = arith.mulf %293, %296 : vector<32x16xf32>
      %298 = arith.select %295, %293, %297 : vector<32x16xi1>, vector<32x16xf32>
      %299 = vector.shape_cast %298 : vector<32x16xf32> to vector<1x32x16xf32>
      %cst_96 = arith.constant dense<0.000000e+00> : vector<1xf32>
      %300 = vector.multi_reduction <add>, %299, %cst_96 [1, 2] : vector<1x32x16xf32> to vector<1xf32>
      %301 = vector.shape_cast %300 : vector<1xf32> to vector<1x1x1xf32>
      %302 = vector.extract %301[0, 0, 0] : f32 from vector<1x1x1xf32>
      %cst_97 = arith.constant 5.120000e+02 : f32
      %303 = arith.divf %302, %cst_97 : f32
      %304 = arith.mulf %298, %298 : vector<32x16xf32>
      %305 = vector.shape_cast %304 : vector<32x16xf32> to vector<1x32x16xf32>
      %cst_98 = arith.constant dense<0.000000e+00> : vector<1xf32>
      %306 = vector.multi_reduction <add>, %305, %cst_98 [1, 2] : vector<1x32x16xf32> to vector<1xf32>
      %307 = vector.shape_cast %306 : vector<1xf32> to vector<1x1x1xf32>
      %308 = vector.extract %307[0, 0, 0] : f32 from vector<1x1x1xf32>
      %cst_99 = arith.constant 5.120000e+02 : f32
      %309 = arith.divf %308, %cst_99 : f32
      %310 = arith.mulf %303, %303 : f32
      %311 = arith.subf %309, %310 : f32
      %312 = vector.broadcast %303 : f32 to vector<32x16xf32>
      %313 = arith.subf %298, %312 : vector<32x16xf32>
      %cst_100 = arith.constant 1.000000e-10 : f32
      %314 = arith.addf %311, %cst_100 : f32
      %315 = math.rsqrt %314 : f32
      %316 = vector.broadcast %315 : f32 to vector<32x16xf32>
      %317 = arith.mulf %313, %316 : vector<32x16xf32>
      %318 = vector.broadcast %235 : vector<32x1xf32> to vector<32x16xf32>
      %319 = arith.mulf %317, %318 : vector<32x16xf32>
      %320 = vector.broadcast %236 : vector<32x1xf32> to vector<32x16xf32>
      %321 = arith.addf %319, %320 : vector<32x16xf32>
      %cst_101 = arith.constant dense<0.000000e+00> : vector<32x16xf32>
      %322 = tpu.matmul %226, %321, %cst_101 {dimension_numbers = #tpu.dot_dimension_numbers<[1], [0], [0], [1], [0, 0, 1, 1], [], []>} : vector<32x32xf32>, vector<32x16xf32>, vector<32x16xf32> -> vector<32x16xf32>
      %323 = vector.broadcast %229 : vector<32x1xf32> to vector<32x16xf32>
      %324 = arith.addf %322, %323 : vector<32x16xf32>
      %325 = vector.extract_strided_slice %324 {offsets = [0, 0], sizes = [16, 16], strides = [1, 1]} : vector<32x16xf32> to vector<16x16xf32>
      %326 = arith.addf %213, %325 : vector<16x16xf32>
      %327 = vector.extract_strided_slice %324 {offsets = [16, 0], sizes = [16, 16], strides = [1, 1]} : vector<32x16xf32> to vector<16x16xf32>
      %328 = arith.addf %327, %215 : vector<16x16xf32>
      %c3_i32_102 = arith.constant 3 : i32
      %329 = arith.muli %arg14, %c3_i32_102 : i32
      %c2_i32_103 = arith.constant 2 : i32
      %330 = arith.addi %329, %c2_i32_103 : i32
      %331 = arith.index_cast %330 : i32 to index
      %c0_104 = arith.constant 0 : index
      %c0_105 = arith.constant 0 : index
      %332 = vector.load %arg6[%331, %c0_104, %c0_105] : memref<6x32x16xf32, #tpu.memory_space<vmem>>, vector<1x32x16xf32>
      %333 = vector.shape_cast %332 : vector<1x32x16xf32> to vector<32x16xf32>
      %334 = arith.index_cast %330 : i32 to index
      %c0_106 = arith.constant 0 : index
      %c0_107 = arith.constant 0 : index
      %335 = vector.load %arg7[%334, %c0_106, %c0_107] : memref<6x32x11xf32, #tpu.memory_space<vmem>>, vector<1x32x11xf32>
      %336 = vector.shape_cast %335 : vector<1x32x11xf32> to vector<32x11xf32>
      %337 = arith.index_cast %330 : i32 to index
      %c0_108 = arith.constant 0 : index
      %c0_109 = arith.constant 0 : index
      %338 = vector.load %arg8[%337, %c0_108, %c0_109] : memref<6x32x32xf32, #tpu.memory_space<vmem>>, vector<1x32x32xf32>
      %339 = vector.shape_cast %338 : vector<1x32x32xf32> to vector<32x32xf32>
      %340 = arith.index_cast %330 : i32 to index
      %c0_110 = arith.constant 0 : index
      %c0_111 = arith.constant 0 : index
      %341 = vector.load %arg9[%340, %c0_110, %c0_111] : memref<6x32x1xf32, #tpu.memory_space<vmem>>, vector<1x32x1xf32>
      %342 = vector.shape_cast %341 : vector<1x32x1xf32> to vector<32x1xf32>
      %343 = vector.extract_strided_slice %336 {offsets = [0, 0], sizes = [32, 1], strides = [1, 1]} : vector<32x11xf32> to vector<32x1xf32>
      %344 = vector.extract_strided_slice %336 {offsets = [0, 1], sizes = [32, 1], strides = [1, 1]} : vector<32x11xf32> to vector<32x1xf32>
      %345 = vector.extract_strided_slice %336 {offsets = [0, 2], sizes = [32, 1], strides = [1, 1]} : vector<32x11xf32> to vector<32x1xf32>
      %346 = vector.extract_strided_slice %336 {offsets = [0, 3], sizes = [32, 1], strides = [1, 1]} : vector<32x11xf32> to vector<32x1xf32>
      %347 = vector.extract_strided_slice %336 {offsets = [0, 4], sizes = [32, 1], strides = [1, 1]} : vector<32x11xf32> to vector<32x1xf32>
      %348 = vector.extract_strided_slice %336 {offsets = [0, 5], sizes = [32, 1], strides = [1, 1]} : vector<32x11xf32> to vector<32x1xf32>
      %349 = vector.extract_strided_slice %336 {offsets = [0, 6], sizes = [32, 1], strides = [1, 1]} : vector<32x11xf32> to vector<32x1xf32>
      %350 = vector.extract_strided_slice %336 {offsets = [0, 7], sizes = [32, 1], strides = [1, 1]} : vector<32x11xf32> to vector<32x1xf32>
      %cst_112 = arith.constant dense<0.000000e+00> : vector<32x16xf32>
      %351 = tpu.matmul %333, %328, %cst_112 {dimension_numbers = #tpu.dot_dimension_numbers<[1], [0], [0], [1], [0, 0, 1, 1], [], []>} : vector<32x16xf32>, vector<16x16xf32>, vector<32x16xf32> -> vector<32x16xf32>
      %352 = vector.broadcast %343 : vector<32x1xf32> to vector<32x16xf32>
      %353 = arith.addf %351, %352 : vector<32x16xf32>
      %cst_113 = arith.constant 0.000000e+00 : f32
      %354 = vector.broadcast %cst_113 : f32 to vector<32x16xf32>
      %355 = arith.cmpf oge, %353, %354 : vector<32x16xf32>
      %356 = vector.broadcast %346 : vector<32x1xf32> to vector<32x16xf32>
      %357 = arith.mulf %353, %356 : vector<32x16xf32>
      %358 = arith.select %355, %353, %357 : vector<32x16xi1>, vector<32x16xf32>
      %359 = vector.shape_cast %358 : vector<32x16xf32> to vector<1x32x16xf32>
      %cst_114 = arith.constant dense<0.000000e+00> : vector<1xf32>
      %360 = vector.multi_reduction <add>, %359, %cst_114 [1, 2] : vector<1x32x16xf32> to vector<1xf32>
      %361 = vector.shape_cast %360 : vector<1xf32> to vector<1x1x1xf32>
      %362 = vector.extract %361[0, 0, 0] : f32 from vector<1x1x1xf32>
      %cst_115 = arith.constant 5.120000e+02 : f32
      %363 = arith.divf %362, %cst_115 : f32
      %364 = arith.mulf %358, %358 : vector<32x16xf32>
      %365 = vector.shape_cast %364 : vector<32x16xf32> to vector<1x32x16xf32>
      %cst_116 = arith.constant dense<0.000000e+00> : vector<1xf32>
      %366 = vector.multi_reduction <add>, %365, %cst_116 [1, 2] : vector<1x32x16xf32> to vector<1xf32>
      %367 = vector.shape_cast %366 : vector<1xf32> to vector<1x1x1xf32>
      %368 = vector.extract %367[0, 0, 0] : f32 from vector<1x1x1xf32>
      %cst_117 = arith.constant 5.120000e+02 : f32
      %369 = arith.divf %368, %cst_117 : f32
      %370 = arith.mulf %363, %363 : f32
      %371 = arith.subf %369, %370 : f32
      %372 = vector.broadcast %363 : f32 to vector<32x16xf32>
      %373 = arith.subf %358, %372 : vector<32x16xf32>
      %cst_118 = arith.constant 1.000000e-10 : f32
      %374 = arith.addf %371, %cst_118 : f32
      %375 = math.rsqrt %374 : f32
      %376 = vector.broadcast %375 : f32 to vector<32x16xf32>
      %377 = arith.mulf %373, %376 : vector<32x16xf32>
      %378 = vector.broadcast %344 : vector<32x1xf32> to vector<32x16xf32>
      %379 = arith.mulf %377, %378 : vector<32x16xf32>
      %380 = vector.broadcast %345 : vector<32x1xf32> to vector<32x16xf32>
      %381 = arith.addf %379, %380 : vector<32x16xf32>
      %cst_119 = arith.constant 0.000000e+00 : f32
      %382 = vector.broadcast %cst_119 : f32 to vector<32x16xf32>
      %383 = vector.extract_strided_slice %336 {offsets = [0, 8], sizes = [32, 1], strides = [1, 1]} : vector<32x11xf32> to vector<32x1xf32>
      %c4_i32_120 = arith.constant 4 : i32
      %384 = tpu.dynamic_rotate %381 by %c4_i32_120 dim 1 : vector<32x16xf32>, i32 -> vector<32x16xf32>
      %cst_121 = arith.constant 0.000000e+00 : f32
      %385 = vector.shape_cast %77 : vector<1x16xi1> to vector<1x16xi1>
      %386 = vector.broadcast %385 : vector<1x16xi1> to vector<32x16xi1>
      %387 = vector.broadcast %cst_121 : f32 to vector<32x16xf32>
      %388 = arith.select %386, %384, %387 : vector<32x16xi1>, vector<32x16xf32>
      %389 = vector.broadcast %383 : vector<32x1xf32> to vector<32x16xf32>
      %390 = arith.mulf %388, %389 : vector<32x16xf32>
      %391 = arith.addf %382, %390 : vector<32x16xf32>
      %392 = vector.extract_strided_slice %336 {offsets = [0, 9], sizes = [32, 1], strides = [1, 1]} : vector<32x11xf32> to vector<32x1xf32>
      %393 = vector.broadcast %392 : vector<32x1xf32> to vector<32x16xf32>
      %394 = arith.mulf %381, %393 : vector<32x16xf32>
      %395 = arith.addf %391, %394 : vector<32x16xf32>
      %396 = vector.extract_strided_slice %336 {offsets = [0, 10], sizes = [32, 1], strides = [1, 1]} : vector<32x11xf32> to vector<32x1xf32>
      %c12_i32 = arith.constant 12 : i32
      %397 = tpu.dynamic_rotate %381 by %c12_i32 dim 1 : vector<32x16xf32>, i32 -> vector<32x16xf32>
      %cst_122 = arith.constant 0.000000e+00 : f32
      %398 = vector.shape_cast %86 : vector<1x16xi1> to vector<1x16xi1>
      %399 = vector.broadcast %398 : vector<1x16xi1> to vector<32x16xi1>
      %400 = vector.broadcast %cst_122 : f32 to vector<32x16xf32>
      %401 = arith.select %399, %397, %400 : vector<32x16xi1>, vector<32x16xf32>
      %402 = vector.broadcast %396 : vector<32x1xf32> to vector<32x16xf32>
      %403 = arith.mulf %401, %402 : vector<32x16xf32>
      %404 = arith.addf %395, %403 : vector<32x16xf32>
      %405 = vector.broadcast %347 : vector<32x1xf32> to vector<32x16xf32>
      %406 = arith.addf %404, %405 : vector<32x16xf32>
      %cst_123 = arith.constant 0.000000e+00 : f32
      %407 = vector.broadcast %cst_123 : f32 to vector<32x16xf32>
      %408 = arith.cmpf oge, %406, %407 : vector<32x16xf32>
      %409 = vector.broadcast %350 : vector<32x1xf32> to vector<32x16xf32>
      %410 = arith.mulf %406, %409 : vector<32x16xf32>
      %411 = arith.select %408, %406, %410 : vector<32x16xi1>, vector<32x16xf32>
      %412 = vector.shape_cast %411 : vector<32x16xf32> to vector<1x32x16xf32>
      %cst_124 = arith.constant dense<0.000000e+00> : vector<1xf32>
      %413 = vector.multi_reduction <add>, %412, %cst_124 [1, 2] : vector<1x32x16xf32> to vector<1xf32>
      %414 = vector.shape_cast %413 : vector<1xf32> to vector<1x1x1xf32>
      %415 = vector.extract %414[0, 0, 0] : f32 from vector<1x1x1xf32>
      %cst_125 = arith.constant 5.120000e+02 : f32
      %416 = arith.divf %415, %cst_125 : f32
      %417 = arith.mulf %411, %411 : vector<32x16xf32>
      %418 = vector.shape_cast %417 : vector<32x16xf32> to vector<1x32x16xf32>
      %cst_126 = arith.constant dense<0.000000e+00> : vector<1xf32>
      %419 = vector.multi_reduction <add>, %418, %cst_126 [1, 2] : vector<1x32x16xf32> to vector<1xf32>
      %420 = vector.shape_cast %419 : vector<1xf32> to vector<1x1x1xf32>
      %421 = vector.extract %420[0, 0, 0] : f32 from vector<1x1x1xf32>
      %cst_127 = arith.constant 5.120000e+02 : f32
      %422 = arith.divf %421, %cst_127 : f32
      %423 = arith.mulf %416, %416 : f32
      %424 = arith.subf %422, %423 : f32
      %425 = vector.broadcast %416 : f32 to vector<32x16xf32>
      %426 = arith.subf %411, %425 : vector<32x16xf32>
      %cst_128 = arith.constant 1.000000e-10 : f32
      %427 = arith.addf %424, %cst_128 : f32
      %428 = math.rsqrt %427 : f32
      %429 = vector.broadcast %428 : f32 to vector<32x16xf32>
      %430 = arith.mulf %426, %429 : vector<32x16xf32>
      %431 = vector.broadcast %348 : vector<32x1xf32> to vector<32x16xf32>
      %432 = arith.mulf %430, %431 : vector<32x16xf32>
      %433 = vector.broadcast %349 : vector<32x1xf32> to vector<32x16xf32>
      %434 = arith.addf %432, %433 : vector<32x16xf32>
      %cst_129 = arith.constant dense<0.000000e+00> : vector<32x16xf32>
      %435 = tpu.matmul %339, %434, %cst_129 {dimension_numbers = #tpu.dot_dimension_numbers<[1], [0], [0], [1], [0, 0, 1, 1], [], []>} : vector<32x32xf32>, vector<32x16xf32>, vector<32x16xf32> -> vector<32x16xf32>
      %436 = vector.broadcast %342 : vector<32x1xf32> to vector<32x16xf32>
      %437 = arith.addf %435, %436 : vector<32x16xf32>
      %438 = vector.extract_strided_slice %437 {offsets = [0, 0], sizes = [16, 16], strides = [1, 1]} : vector<32x16xf32> to vector<16x16xf32>
      %439 = arith.addf %326, %438 : vector<16x16xf32>
      %440 = vector.extract_strided_slice %437 {offsets = [16, 0], sizes = [16, 16], strides = [1, 1]} : vector<32x16xf32> to vector<16x16xf32>
      %441 = arith.addf %440, %328 : vector<16x16xf32>
      scf.yield %441, %439 : vector<16x16xf32>, vector<16x16xf32>
    }
    %c2_i32_35 = arith.constant 2 : i32
    %cst_36 = arith.constant 0.000000e+00 : f32
    %89 = vector.broadcast %cst_36 : f32 to vector<16x16xf32>
    %90 = arith.cmpf oge, %88#1, %89 : vector<16x16xf32>
    %c0_37 = arith.constant 0 : index
    %c0_38 = arith.constant 0 : index
    %91 = vector.load %arg10[%c0_37, %c0_38] : memref<1x1xf32, #tpu.memory_space<vmem>>, vector<1x1xf32>
    %92 = vector.broadcast %91 : vector<1x1xf32> to vector<16x16xf32>
    %93 = arith.mulf %88#1, %92 : vector<16x16xf32>
    %94 = arith.select %90, %88#1, %93 : vector<16x16xi1>, vector<16x16xf32>
    %c0_39 = arith.constant 0 : index
    %c0_40 = arith.constant 0 : index
    %95 = vector.load %arg11[%c0_39, %c0_40] : memref<8x16xf32, #tpu.memory_space<vmem>>, vector<8x16xf32>
    %cst_41 = arith.constant dense<0.000000e+00> : vector<8x16xf32>
    %96 = tpu.matmul %95, %94, %cst_41 {dimension_numbers = #tpu.dot_dimension_numbers<[1], [0], [0], [1], [0, 0, 1, 1], [], []>} : vector<8x16xf32>, vector<16x16xf32>, vector<8x16xf32> -> vector<8x16xf32>
    %c0_42 = arith.constant 0 : index
    %c0_43 = arith.constant 0 : index
    %97 = vector.load %arg12[%c0_42, %c0_43] : memref<8x1xf32, #tpu.memory_space<vmem>>, vector<8x1xf32>
    %98 = vector.broadcast %97 : vector<8x1xf32> to vector<8x16xf32>
    %99 = arith.addf %96, %98 : vector<8x16xf32>
    %c0_44 = arith.constant 0 : index
    %c0_45 = arith.constant 0 : index
    %c0_46 = arith.constant 0 : index
    %100 = vector.load %arg13[%c0_44, %c0_45, %c0_46] : memref<1x8x16xf32, #tpu.memory_space<vmem>>, vector<1x8x16xf32>
    %101 = vector.shape_cast %100 : vector<1x8x16xf32> to vector<8x16xf32>
    %102 = vector.shape_cast %99 : vector<8x16xf32> to vector<1x8x16xf32>
    tpu.vector_store %arg13[%c0_44, %c0_45, %c0_46], %102 {strides = array<i32>} : memref<1x8x16xf32, #tpu.memory_space<vmem>>, vector<1x8x16xf32>,
    return
  }
  func.func @transform_0(%arg0: i32) -> (i32, i32, i32) {
    %c0_i32 = arith.constant 0 : i32
    %c0_i32_0 = arith.constant 0 : i32
    %c0_i32_1 = arith.constant 0 : i32
    return %arg0, %c0_i32, %c0_i32_0 : i32, i32, i32
  }
  func.func @transform_1(%arg0: i32) -> (i32, i32) {
    %c0_i32 = arith.constant 0 : i32
    %c0_i32_0 = arith.constant 0 : i32
    %c0_i32_1 = arith.constant 0 : i32
    return %c0_i32, %c0_i32_0 : i32, i32
  }
  func.func @transform_2(%arg0: i32) -> (i32, i32) {
    %c0_i32 = arith.constant 0 : i32
    %c0_i32_0 = arith.constant 0 : i32
    %c0_i32_1 = arith.constant 0 : i32
    return %c0_i32, %c0_i32_0 : i32, i32
  }
  func.func @transform_3(%arg0: i32) -> (i32, i32) {
    %c0_i32 = arith.constant 0 : i32
    %c0_i32_0 = arith.constant 0 : i32
    %c0_i32_1 = arith.constant 0 : i32
    return %c0_i32, %c0_i32_0 : i32, i32
  }
  func.func @transform_4(%arg0: i32) -> (i32, i32) {
    %c0_i32 = arith.constant 0 : i32
    %c0_i32_0 = arith.constant 0 : i32
    %c0_i32_1 = arith.constant 0 : i32
    return %c0_i32, %c0_i32_0 : i32, i32
  }
  func.func @transform_5(%arg0: i32) -> (i32, i32, i32) {
    %c0_i32 = arith.constant 0 : i32
    %c0_i32_0 = arith.constant 0 : i32
    %c0_i32_1 = arith.constant 0 : i32
    %c0_i32_2 = arith.constant 0 : i32
    return %c0_i32, %c0_i32_0, %c0_i32_1 : i32, i32, i32
  }
  func.func @transform_6(%arg0: i32) -> (i32, i32, i32) {
    %c0_i32 = arith.constant 0 : i32
    %c0_i32_0 = arith.constant 0 : i32
    %c0_i32_1 = arith.constant 0 : i32
    %c0_i32_2 = arith.constant 0 : i32
    return %c0_i32, %c0_i32_0, %c0_i32_1 : i32, i32, i32
  }
  func.func @transform_7(%arg0: i32) -> (i32, i32, i32) {
    %c0_i32 = arith.constant 0 : i32
    %c0_i32_0 = arith.constant 0 : i32
    %c0_i32_1 = arith.constant 0 : i32
    %c0_i32_2 = arith.constant 0 : i32
    return %c0_i32, %c0_i32_0, %c0_i32_1 : i32, i32, i32
  }
  func.func @transform_8(%arg0: i32) -> (i32, i32, i32) {
    %c0_i32 = arith.constant 0 : i32
    %c0_i32_0 = arith.constant 0 : i32
    %c0_i32_1 = arith.constant 0 : i32
    %c0_i32_2 = arith.constant 0 : i32
    return %c0_i32, %c0_i32_0, %c0_i32_1 : i32, i32, i32
  }
  func.func @transform_9(%arg0: i32) -> (i32, i32) {
    %c0_i32 = arith.constant 0 : i32
    %c0_i32_0 = arith.constant 0 : i32
    %c0_i32_1 = arith.constant 0 : i32
    return %c0_i32, %c0_i32_0 : i32, i32
  }
  func.func @transform_10(%arg0: i32) -> (i32, i32) {
    %c0_i32 = arith.constant 0 : i32
    %c0_i32_0 = arith.constant 0 : i32
    %c0_i32_1 = arith.constant 0 : i32
    return %c0_i32, %c0_i32_0 : i32, i32
  }
  func.func @transform_11(%arg0: i32) -> (i32, i32) {
    %c0_i32 = arith.constant 0 : i32
    %c0_i32_0 = arith.constant 0 : i32
    %c0_i32_1 = arith.constant 0 : i32
    return %c0_i32, %c0_i32_0 : i32, i32
  }
  func.func @transform_12(%arg0: i32) -> (i32, i32, i32) {
    %c0_i32 = arith.constant 0 : i32
    %c0_i32_0 = arith.constant 0 : i32
    %c0_i32_1 = arith.constant 0 : i32
    return %arg0, %c0_i32, %c0_i32_0 : i32, i32, i32
  }
}

</mosaic_0001>

<llo_original>
// kernel: _lambda_.1
$region0: #{_lambda_.1}
  #allocation0 [shape = 'u32[]', space=smem, size = 0x4, offset = 0x4, fixed_abs, tag = 'smem constant byte address 0x4 - core index']
  #allocation1 [shape = 'u32[144,128]{1,0:T(1,128)}', space=vmem, size = 0x12000, scoped, tag = 'internal scratch']
  #allocation2 [shape = 'f32[1,1]{1,0:T(1,128)S(1)}', space=vmem, size = 0x200, scoped, tag = 'scoped memory for _lambda_.1']
  %s0 = inlined_call_operand.vmem [shape: f32[2,16,16], index: 0, kind: input, shape index: {}]
  %s1 = inlined_call_operand.vmem [shape: f32[16,1], index: 1, kind: input, shape index: {}]
  %s2 = inlined_call_operand.vmem [shape: f32[16,1], index: 2, kind: input, shape index: {}]
  %s3 = inlined_call_operand.hbm [shape: f32[16,16], index: 3, kind: input, shape index: {}]
  %s4 = inlined_call_operand.vmem [shape: f32[16,1], index: 4, kind: input, shape index: {}]
  %s5 = inlined_call_operand.hbm [shape: f32[6,32,16], index: 5, kind: input, shape index: {}]
  %s6 = inlined_call_operand.hbm [shape: f32[6,32,11], index: 6, kind: input, shape index: {}]
  %s7 = inlined_call_operand.hbm [shape: f32[6,32,32], index: 7, kind: input, shape index: {}]
  %s8 = inlined_call_operand.hbm [shape: f32[6,32,1], index: 8, kind: input, shape index: {}]
  %s9 = inlined_call_operand.<no memory space> [shape: f32[1,1], index: 9, kind: input, shape index: {}]
  %s10 = inlined_call_operand.hbm [shape: f32[8,16], index: 10, kind: input, shape index: {}]
  %s11 = inlined_call_operand.hbm [shape: f32[8,1], index: 11, kind: input, shape index: {}]
  %s12 = inlined_call_operand.hbm [shape: f32[2,8,16], index: 12, kind: output, shape index: {}]
  %s13 = sld [smem:[#allocation0]]
  $region116: #{_lambda_.1} parent=0
    _
  %s15 = ssub.s32 1, %s13
  %s16 = scalar_select 0, %s15, %s13
  %v17 = vstv %s9
  %18 = vst [vmem:[#allocation2] sm:$0x1] %v17
  $region1: #{_lambda_.1} parent=0
    #allocation3 [shape = 'u8[8192]{0}', space=vmem, size = 0x2000, scoped, tag = 'input window, operand 3, single buffered']
    #allocation4 [shape = 's32[2]{0}', space=sflag, size = 0x8, scoped, tag = 'scoped memory for _lambda_.1']
    #allocation5 [shape = 's32[2]{0}', space=sflag, size = 0x8, scoped, tag = 'scoped memory for _lambda_.1']
    #allocation6 [shape = 'u8[98304]{0}', space=vmem, size = 0x18000, scoped, tag = 'input window, operand 5, single buffered']
    #allocation7 [shape = 's32[1]{0}', space=sflag, size = 0x4, scoped, tag = 'scoped memory for _lambda_.1']
    #allocation8 [shape = 'u8[98304]{0}', space=vmem, size = 0x18000, scoped, tag = 'input window, operand 6, single buffered']
    #allocation9 [shape = 'u8[98304]{0}', space=vmem, size = 0x18000, scoped, tag = 'input window, operand 7, single buffered']
    #allocation10 [shape = 's32[1]{0}', space=sflag, size = 0x4, scoped, tag = 'scoped memory for _lambda_.1']
    #allocation11 [shape = 'u8[98304]{0}', space=vmem, size = 0x18000, scoped, tag = 'input window, operand 8, single buffered']
    #allocation12 [shape = 'u8[4096]{0}', space=vmem, size = 0x1000, scoped, tag = 'input window, operand 10, single buffered']
    #allocation13 [shape = 's32[1]{0}', space=sflag, size = 0x4, scoped, tag = 'scoped memory for _lambda_.1']
    #allocation14 [shape = 'u8[4096]{0}', space=vmem, size = 0x1000, scoped, tag = 'input window, operand 11, single buffered']
    #allocation15 [shape = 'u8[8192]{0}', space=vmem, size = 0x2000, scoped, tag = 'output window, operand 0']
    %19 = vsyncpa [#allocation4], 0
    %20 = vsyncpa [#allocation7], 0
    %21 = vsyncpa [#allocation10], 0
    %22 = vsyncpa [#allocation13], 0
    %23 = vsyncpa [#allocation5], 0
    %s24 = scalar_lea.sflag [#allocation5], 1
    %25 = vsyncpa %s24, 0
    loop: start=0, step=1, limit=4
    $region2: #{_lambda_.1} parent=1 // loop_pre_header
      _
    $region3: #{_lambda_.1} parent=1 // loop_header
      %s27 = sphi 0, %s31
      %p28 = scmp.ge.s32.totalorder %s27, 4
      %s37 = sphi 0, %s39
      %s40 = sphi 0, %s37
      %s41 = sphi 0, %s40
      %s57 = sphi 0, %s41
      %s61 = sphi 0, %s61
      %s63 = sphi 0, %s61
      %s64 = sphi 0, %s63
      %s78 = sphi 0, %s64
      %s82 = sphi 0, %s82
      %s84 = sphi 0, %s82
      %s85 = sphi 0, %s84
      %s99 = sphi 0, %s85
      %s103 = sphi 0, %s103
      %s105 = sphi 0, %s103
      %s106 = sphi 0, %s105
      %s120 = sphi 0, %s106
      %s124 = sphi 0, %s124
      %s126 = sphi 0, %s124
      %s127 = sphi 0, %s126
      %s141 = sphi 0, %s127
      %s145 = sphi 0, %s145
      %s147 = sphi 0, %s145
      %s148 = sphi 0, %s147
      %s162 = sphi 0, %s148
      %s166 = sphi 0, %s166
      %s168 = sphi 0, %s166
      %s169 = sphi 0, %s168
      %s183 = sphi 0, %s169
      %s187 = sphi 0, %s187
      %s189 = sphi 0, %s187
      %s190 = sphi 0, %s189
      %s204 = sphi 0, %s190
      %s208 = sphi 0, %s208
      %s210 = sphi 0, %s208
      %s211 = sphi 0, %s210
      %s225 = sphi 0, %s211
      %s229 = sphi 0, %s229
      %s231 = sphi 0, %s229
      %s232 = sphi 0, %s231
      %s246 = sphi 0, %s232
      %s250 = sphi 0, %s250
      %s252 = sphi 0, %s250
      %s253 = sphi 0, %s252
      %s267 = sphi 0, %s253
      %s271 = sphi 0, %s271
      %s273 = sphi 0, %s271
      %s274 = sphi 0, %s273
      %s288 = sphi 0, %s274
      %s294 = sphi 0, %s296
      %s297 = sphi 0, %s294
      %s298 = sphi 0, %s297
      %s314 = sphi 0, %s298
    $region4: #{_lambda_.1} parent=1 // loop_header_branch
      %30 = sbr.rel (%p28) target = $region8
    $region5: #{_lambda_.1} parent=1 // loop_body
      %s32 = ssub.s32 %s27, 1
      %s33 = ssub.s32 %s27, 2
      %s34 = sadd.s32 %s27, 1
      %s35 = ssub.s32 %s27, %s34
      %p36 = scmp.eq.s32.totalorder %s35, 0
      %s38 = sadd.s32 %s37, 1
      %s39 = scalar_select %p36, %s37, %s38
      %p42 = pneg %p36
      %p43 = scmp.eq.s32.totalorder %s27, 1
      %p44 = por %p42, %p43
      %p45 = scmp.ne.s32.totalorder %s37, %s40
      %p46 = scmp.eq.s32.totalorder %s27, 0
      %p47 = por %p45, %p46
      %p48 = scmp.ne.s32.totalorder %s37, %s40
      %p49 = scmp.eq.s32.totalorder %s32, 1
      %p50 = por %p48, %p49
      %p51 = scmp.ne.s32.totalorder %s40, %s41
      %p52 = scmp.eq.s32.totalorder %s32, 0
      %p53 = por %p51, %p52
      %p54 = scmp.ne.s32.totalorder %s40, %s41
      %p55 = scmp.eq.s32.totalorder %s33, 1
      %p56 = por %p54, %p55
      %p58 = scmp.ne.s32.totalorder %s41, %s57
      %p59 = scmp.eq.s32.totalorder %s33, 0
      %p60 = por %p58, %p59
      %s62 = sadd.s32 %s61, 1
      %p65 = scmp.eq.s32.totalorder %s27, 1
      %p66 = scmp.ne.s32.totalorder %s61, %s63
      %p67 = scmp.eq.s32.totalorder %s27, 0
      %p68 = por %p66, %p67
      %p69 = scmp.ne.s32.totalorder %s61, %s63
      %p70 = scmp.eq.s32.totalorder %s32, 1
      %p71 = por %p69, %p70
      %p72 = scmp.ne.s32.totalorder %s63, %s64
      %p73 = scmp.eq.s32.totalorder %s32, 0
      %p74 = por %p72, %p73
      %p75 = scmp.ne.s32.totalorder %s63, %s64
      %p76 = scmp.eq.s32.totalorder %s33, 1
      %p77 = por %p75, %p76
      %p79 = scmp.ne.s32.totalorder %s64, %s78
      %p80 = scmp.eq.s32.totalorder %s33, 0
      %p81 = por %p79, %p80
      %s83 = sadd.s32 %s82, 1
      %p86 = scmp.eq.s32.totalorder %s27, 1
      %p87 = scmp.ne.s32.totalorder %s82, %s84
      %p88 = scmp.eq.s32.totalorder %s27, 0
      %p89 = por %p87, %p88
      %p90 = scmp.ne.s32.totalorder %s82, %s84
      %p91 = scmp.eq.s32.totalorder %s32, 1
      %p92 = por %p90, %p91
      %p93 = scmp.ne.s32.totalorder %s84, %s85
      %p94 = scmp.eq.s32.totalorder %s32, 0
      %p95 = por %p93, %p94
      %p96 = scmp.ne.s32.totalorder %s84, %s85
      %p97 = scmp.eq.s32.totalorder %s33, 1
      %p98 = por %p96, %p97
      %p100 = scmp.ne.s32.totalorder %s85, %s99
      %p101 = scmp.eq.s32.totalorder %s33, 0
      %p102 = por %p100, %p101
      %s104 = sadd.s32 %s103, 1
      %p107 = scmp.eq.s32.totalorder %s27, 1
      %p108 = scmp.ne.s32.totalorder %s103, %s105
      %p109 = scmp.eq.s32.totalorder %s27, 0
      %p110 = por %p108, %p109
      %p111 = scmp.ne.s32.totalorder %s103, %s105
      %p112 = scmp.eq.s32.totalorder %s32, 1
      %p113 = por %p111, %p112
      %p114 = scmp.ne.s32.totalorder %s105, %s106
      %p115 = scmp.eq.s32.totalorder %s32, 0
      %p116 = por %p114, %p115
      %p117 = scmp.ne.s32.totalorder %s105, %s106
      %p118 = scmp.eq.s32.totalorder %s33, 1
      %p119 = por %p117, %p118
      %p121 = scmp.ne.s32.totalorder %s106, %s120
      %p122 = scmp.eq.s32.totalorder %s33, 0
      %p123 = por %p121, %p122
      %s125 = sadd.s32 %s124, 1
      %p128 = scmp.eq.s32.totalorder %s27, 1
      %p129 = scmp.ne.s32.totalorder %s124, %s126
      %p130 = scmp.eq.s32.totalorder %s27, 0
      %p131 = por %p129, %p130
      %p132 = scmp.ne.s32.totalorder %s124, %s126
      %p133 = scmp.eq.s32.totalorder %s32, 1
      %p134 = por %p132, %p133
      %p135 = scmp.ne.s32.totalorder %s126, %s127
      %p136 = scmp.eq.s32.totalorder %s32, 0
      %p137 = por %p135, %p136
      %p138 = scmp.ne.s32.totalorder %s126, %s127
      %p139 = scmp.eq.s32.totalorder %s33, 1
      %p140 = por %p138, %p139
      %p142 = scmp.ne.s32.totalorder %s127, %s141
      %p143 = scmp.eq.s32.totalorder %s33, 0
      %p144 = por %p142, %p143
      %s146 = sadd.s32 %s145, 1
      %p149 = scmp.eq.s32.totalorder %s27, 1
      %p150 = scmp.ne.s32.totalorder %s145, %s147
      %p151 = scmp.eq.s32.totalorder %s27, 0
      %p152 = por %p150, %p151
      %p153 = scmp.ne.s32.totalorder %s145, %s147
      %p154 = scmp.eq.s32.totalorder %s32, 1
      %p155 = por %p153, %p154
      %p156 = scmp.ne.s32.totalorder %s147, %s148
      %p157 = scmp.eq.s32.totalorder %s32, 0
      %p158 = por %p156, %p157
      %p159 = scmp.ne.s32.totalorder %s147, %s148
      %p160 = scmp.eq.s32.totalorder %s33, 1
      %p161 = por %p159, %p160
      %p163 = scmp.ne.s32.totalorder %s148, %s162
      %p164 = scmp.eq.s32.totalorder %s33, 0
      %p165 = por %p163, %p164
      %s167 = sadd.s32 %s166, 1
      %p170 = scmp.eq.s32.totalorder %s27, 1
      %p171 = scmp.ne.s32.totalorder %s166, %s168
      %p172 = scmp.eq.s32.totalorder %s27, 0
      %p173 = por %p171, %p172
      %p174 = scmp.ne.s32.totalorder %s166, %s168
      %p175 = scmp.eq.s32.totalorder %s32, 1
      %p176 = por %p174, %p175
      %p177 = scmp.ne.s32.totalorder %s168, %s169
      %p178 = scmp.eq.s32.totalorder %s32, 0
      %p179 = por %p177, %p178
      %p180 = scmp.ne.s32.totalorder %s168, %s169
      %p181 = scmp.eq.s32.totalorder %s33, 1
      %p182 = por %p180, %p181
      %p184 = scmp.ne.s32.totalorder %s169, %s183
      %p185 = scmp.eq.s32.totalorder %s33, 0
      %p186 = por %p184, %p185
      %s188 = sadd.s32 %s187, 1
      %p191 = scmp.eq.s32.totalorder %s27, 1
      %p192 = scmp.ne.s32.totalorder %s187, %s189
      %p193 = scmp.eq.s32.totalorder %s27, 0
      %p194 = por %p192, %p193
      %p195 = scmp.ne.s32.totalorder %s187, %s189
      %p196 = scmp.eq.s32.totalorder %s32, 1
      %p197 = por %p195, %p196
      %p198 = scmp.ne.s32.totalorder %s189, %s190
      %p199 = scmp.eq.s32.totalorder %s32, 0
      %p200 = por %p198, %p199
      %p201 = scmp.ne.s32.totalorder %s189, %s190
      %p202 = scmp.eq.s32.totalorder %s33, 1
      %p203 = por %p201, %p202
      %p205 = scmp.ne.s32.totalorder %s190, %s204
      %p206 = scmp.eq.s32.totalorder %s33, 0
      %p207 = por %p205, %p206
      %s209 = sadd.s32 %s208, 1
      %p212 = scmp.eq.s32.totalorder %s27, 1
      %p213 = scmp.ne.s32.totalorder %s208, %s210
      %p214 = scmp.eq.s32.totalorder %s27, 0
      %p215 = por %p213, %p214
      %p216 = scmp.ne.s32.totalorder %s208, %s210
      %p217 = scmp.eq.s32.totalorder %s32, 1
      %p218 = por %p216, %p217
      %p219 = scmp.ne.s32.totalorder %s210, %s211
      %p220 = scmp.eq.s32.totalorder %s32, 0
      %p221 = por %p219, %p220
      %p222 = scmp.ne.s32.totalorder %s210, %s211
      %p223 = scmp.eq.s32.totalorder %s33, 1
      %p224 = por %p222, %p223
      %p226 = scmp.ne.s32.totalorder %s211, %s225
      %p227 = scmp.eq.s32.totalorder %s33, 0
      %p228 = por %p226, %p227
      %s230 = sadd.s32 %s229, 1
      %p233 = scmp.eq.s32.totalorder %s27, 1
      %p234 = scmp.ne.s32.totalorder %s229, %s231
      %p235 = scmp.eq.s32.totalorder %s27, 0
      %p236 = por %p234, %p235
      %p237 = scmp.ne.s32.totalorder %s229, %s231
      %p238 = scmp.eq.s32.totalorder %s32, 1
      %p239 = por %p237, %p238
      %p240 = scmp.ne.s32.totalorder %s231, %s232
      %p241 = scmp.eq.s32.totalorder %s32, 0
      %p242 = por %p240, %p241
      %p243 = scmp.ne.s32.totalorder %s231, %s232
      %p244 = scmp.eq.s32.totalorder %s33, 1
      %p245 = por %p243, %p244
      %p247 = scmp.ne.s32.totalorder %s232, %s246
      %p248 = scmp.eq.s32.totalorder %s33, 0
      %p249 = por %p247, %p248
      %s251 = sadd.s32 %s250, 1
      %p254 = scmp.eq.s32.totalorder %s27, 1
      %p255 = scmp.ne.s32.totalorder %s250, %s252
      %p256 = scmp.eq.s32.totalorder %s27, 0
      %p257 = por %p255, %p256
      %p258 = scmp.ne.s32.totalorder %s250, %s252
      %p259 = scmp.eq.s32.totalorder %s32, 1
      %p260 = por %p258, %p259
      %p261 = scmp.ne.s32.totalorder %s252, %s253
      %p262 = scmp.eq.s32.totalorder %s32, 0
      %p263 = por %p261, %p262
      %p264 = scmp.ne.s32.totalorder %s252, %s253
      %p265 = scmp.eq.s32.totalorder %s33, 1
      %p266 = por %p264, %p265
      %p268 = scmp.ne.s32.totalorder %s253, %s267
      %p269 = scmp.eq.s32.totalorder %s33, 0
      %p270 = por %p268, %p269
      %s272 = sadd.s32 %s271, 1
      %p275 = scmp.eq.s32.totalorder %s27, 1
      %p276 = scmp.ne.s32.totalorder %s271, %s273
      %p277 = scmp.eq.s32.totalorder %s27, 0
      %p278 = por %p276, %p277
      %p279 = scmp.ne.s32.totalorder %s271, %s273
      %p280 = scmp.eq.s32.totalorder %s32, 1
      %p281 = por %p279, %p280
      %p282 = scmp.ne.s32.totalorder %s273, %s274
      %p283 = scmp.eq.s32.totalorder %s32, 0
      %p284 = por %p282, %p283
      %p285 = scmp.ne.s32.totalorder %s273, %s274
      %p286 = scmp.eq.s32.totalorder %s33, 1
      %p287 = por %p285, %p286
      %p289 = scmp.ne.s32.totalorder %s274, %s288
      %p290 = scmp.eq.s32.totalorder %s33, 0
      %p291 = por %p289, %p290
      %s292 = ssub.s32 %s27, %s34
      %p293 = scmp.eq.s32.totalorder %s292, 0
      %s295 = sadd.s32 %s294, 1
      %s296 = scalar_select %p293, %s294, %s295
      %p299 = pneg %p293
      %p300 = scmp.eq.s32.totalorder %s27, 1
      %p301 = por %p299, %p300
      %p302 = scmp.ne.s32.totalorder %s294, %s297
      %p303 = scmp.eq.s32.totalorder %s27, 0
      %p304 = por %p302, %p303
      %p305 = scmp.ne.s32.totalorder %s294, %s297
      %p306 = scmp.eq.s32.totalorder %s32, 1
      %p307 = por %p305, %p306
      %p308 = scmp.ne.s32.totalorder %s297, %s298
      %p309 = scmp.eq.s32.totalorder %s32, 0
      %p310 = por %p308, %p309
      %p311 = scmp.ne.s32.totalorder %s297, %s298
      %p312 = scmp.eq.s32.totalorder %s33, 1
      %p313 = por %p311, %p312
      %p315 = scmp.ne.s32.totalorder %s298, %s314
      %p316 = scmp.eq.s32.totalorder %s33, 0
      %p317 = por %p315, %p316
      %p318 = scmp.le.s32.totalorder 1, %s27
      %p319 = scmp.lt.s32.totalorder %s27, 3
      %p320 = pnand %p318, %p319
      %p321 = pneg %p320
      // Predicated region
      $region9: #{_lambda_.1} parent=5 // pred_check
        _
      $region10: #{_lambda_.1} parent=5 // pred_check_branch
        %323 = sbr.rel (%p320) target = $region12
      $region11: #{_lambda_.1} parent=5 // pred_region
        %s324 = ssub.s32 %s27, 1
        // Predicated region
        $region13: #{_lambda_.1} parent=11 // pred_check
          %p325 = pneg %p74
        $region14: #{_lambda_.1} parent=11 // pred_check_branch
          %327 = sbr.rel (%p325) target = $region16
        $region15: #{_lambda_.1} parent=11 // pred_region
          _
        $region16: #{_lambda_.1} parent=11 // pred_fallthru
          _
        // Predicated region
        $region17: #{_lambda_.1} parent=11 // pred_check
          %p328 = pneg %p95
        $region18: #{_lambda_.1} parent=11 // pred_check_branch
          %330 = sbr.rel (%p328) target = $region20
        $region19: #{_lambda_.1} parent=11 // pred_region
          _
        $region20: #{_lambda_.1} parent=11 // pred_fallthru
          _
        // Predicated region
        $region21: #{_lambda_.1} parent=11 // pred_check
          %p331 = pneg %p116
        $region22: #{_lambda_.1} parent=11 // pred_check_branch
          %333 = sbr.rel (%p331) target = $region24
        $region23: #{_lambda_.1} parent=11 // pred_region
          %s335 = ssub.s32 256, 256
          %336 = vsyncadd [#allocation4], %s335
          %s337 = sshll.u32 [#allocation3], 4
          %s338 = int_to_ptr.vmem [resolvable:$true] %s337
          %343 = dma.hbm_to_vmem [thread:$0]  %s3, 256, %s338, [#allocation4], 128, 128, 8
        $region24: #{_lambda_.1} parent=11 // pred_fallthru
          _
        // Predicated region
        $region25: #{_lambda_.1} parent=11 // pred_check
          %p344 = pneg %p137
        $region26: #{_lambda_.1} parent=11 // pred_check_branch
          %346 = sbr.rel (%p344) target = $region28
        $region27: #{_lambda_.1} parent=11 // pred_region
          _
        $region28: #{_lambda_.1} parent=11 // pred_fallthru
          _
        // Predicated region
        $region29: #{_lambda_.1} parent=11 // pred_check
          %p347 = pneg %p158
        $region30: #{_lambda_.1} parent=11 // pred_check_branch
          %349 = sbr.rel (%p347) target = $region32
        $region31: #{_lambda_.1} parent=11 // pred_region
          %s351 = ssub.s32 3072, 3072
          %352 = vsyncadd [#allocation7], %s351
          %s353 = sshll.u32 [#allocation6], 4
          %s354 = int_to_ptr.vmem [resolvable:$true] %s353
          %359 = dma.hbm_to_vmem [thread:$0]  %s5, 3072, %s354, [#allocation7], 128, 128, 8
        $region32: #{_lambda_.1} parent=11 // pred_fallthru
          _
        // Predicated region
        $region33: #{_lambda_.1} parent=11 // pred_check
          %p360 = pneg %p179
        $region34: #{_lambda_.1} parent=11 // pred_check_branch
          %362 = sbr.rel (%p360) target = $region36
        $region35: #{_lambda_.1} parent=11 // pred_region
          %s364 = ssub.s32 3072, 3072
          %365 = vsyncadd [#allocation7], %s364
          %s366 = sshll.u32 [#allocation8], 4
          %s367 = int_to_ptr.vmem [resolvable:$true] %s366
          %372 = dma.hbm_to_vmem [thread:$0]  %s6, 3072, %s367, [#allocation7], 128, 128, 8
        $region36: #{_lambda_.1} parent=11 // pred_fallthru
          _
        // Predicated region
        $region37: #{_lambda_.1} parent=11 // pred_check
          %p373 = pneg %p200
        $region38: #{_lambda_.1} parent=11 // pred_check_branch
          %375 = sbr.rel (%p373) target = $region40
        $region39: #{_lambda_.1} parent=11 // pred_region
          %s377 = ssub.s32 3072, 3072
          %378 = vsyncadd [#allocation10], %s377
          %s379 = sshll.u32 [#allocation9], 4
          %s380 = int_to_ptr.vmem [resolvable:$true] %s379
          %385 = dma.hbm_to_vmem [thread:$0]  %s7, 3072, %s380, [#allocation10], 128, 128, 8
        $region40: #{_lambda_.1} parent=11 // pred_fallthru
          _
        // Predicated region
        $region41: #{_lambda_.1} parent=11 // pred_check
          %p386 = pneg %p221
        $region42: #{_lambda_.1} parent=11 // pred_check_branch
          %388 = sbr.rel (%p386) target = $region44
        $region43: #{_lambda_.1} parent=11 // pred_region
          %s390 = ssub.s32 3072, 3072
          %391 = vsyncadd [#allocation10], %s390
          %s392 = sshll.u32 [#allocation11], 4
          %s393 = int_to_ptr.vmem [resolvable:$true] %s392
          %398 = dma.hbm_to_vmem [thread:$0]  %s8, 3072, %s393, [#allocation10], 128, 128, 8
        $region44: #{_lambda_.1} parent=11 // pred_fallthru
          _
        // Predicated region
        $region45: #{_lambda_.1} parent=11 // pred_check
          %p399 = pneg %p242
        $region46: #{_lambda_.1} parent=11 // pred_check_branch
          %401 = sbr.rel (%p399) target = $region48
        $region47: #{_lambda_.1} parent=11 // pred_region
          _
        $region48: #{_lambda_.1} parent=11 // pred_fallthru
          _
        // Predicated region
        $region49: #{_lambda_.1} parent=11 // pred_check
          %p402 = pneg %p263
        $region50: #{_lambda_.1} parent=11 // pred_check_branch
          %404 = sbr.rel (%p402) target = $region52
        $region51: #{_lambda_.1} parent=11 // pred_region
          %s406 = ssub.s32 128, 128
          %407 = vsyncadd [#allocation13], %s406
          %s409 = sshll.u32 [#allocation12], 4
          %s410 = int_to_ptr.vmem [resolvable:$true] %s409
          %412 = dma.hbm_to_vmem [thread:$0]  %s10, 128, %s410, [#allocation13]
        $region52: #{_lambda_.1} parent=11 // pred_fallthru
          _
        // Predicated region
        $region53: #{_lambda_.1} parent=11 // pred_check
          %p413 = pneg %p284
        $region54: #{_lambda_.1} parent=11 // pred_check_branch
          %415 = sbr.rel (%p413) target = $region56
        $region55: #{_lambda_.1} parent=11 // pred_region
          %s417 = ssub.s32 128, 128
          %418 = vsyncadd [#allocation13], %s417
          %s420 = sshll.u32 [#allocation14], 4
          %s421 = int_to_ptr.vmem [resolvable:$true] %s420
          %423 = dma.hbm_to_vmem [thread:$0]  %s11, 128, %s421, [#allocation13]
        $region56: #{_lambda_.1} parent=11 // pred_fallthru
          _
      $region12: #{_lambda_.1} parent=5 // pred_fallthru
        _
      %p424 = scmp.lt.s32.totalorder %s27, 2
      // Predicated region
      $region57: #{_lambda_.1} parent=5 // pred_check
        %p425 = pneg %p424
      $region58: #{_lambda_.1} parent=5 // pred_check_branch
        %427 = sbr.rel (%p425) target = $region60
      $region59: #{_lambda_.1} parent=5 // pred_region
        // Predicated region
        $region61: #{_lambda_.1} parent=59 // pred_check
          %p428 = pneg %p47
        $region62: #{_lambda_.1} parent=59 // pred_check_branch
          %430 = sbr.rel (%p428) target = $region64
        $region63: #{_lambda_.1} parent=59 // pred_region
          %p431 = scmp.lt.s32.totalorder %s27, 1
          %s432 = scalar_select %p431, %s27, 1
          %s433 = smul.addr %s432, 2
          %s434 = smul.addr %s433, 8
          %s435 = scalar_lea.vmem %s0, %s434
        $region64: #{_lambda_.1} parent=59 // pred_fallthru
          _
      $region60: #{_lambda_.1} parent=5 // pred_fallthru
        _
      %p436 = scmp.le.s32.totalorder 1, %s27
      %p437 = scmp.lt.s32.totalorder %s27, 3
      %p438 = pnand %p436, %p437
      %p439 = pneg %p438
      // Predicated region
      $region65: #{_lambda_.1} parent=5 // pred_check
        _
      $region66: #{_lambda_.1} parent=5 // pred_check_branch
        %441 = sbr.rel (%p438) target = $region68
      $region67: #{_lambda_.1} parent=5 // pred_region
        %s442 = ssub.s32 %s27, 1
        // Predicated region
        $region69: #{_lambda_.1} parent=67 // pred_check
          %p443 = pneg %p116
        $region70: #{_lambda_.1} parent=67 // pred_check_branch
          %445 = sbr.rel (%p443) target = $region72
        $region71: #{_lambda_.1} parent=67 // pred_region
          %446 = dma.done [#allocation4], 256
        $region72: #{_lambda_.1} parent=67 // pred_fallthru
          _
        // Predicated region
        $region73: #{_lambda_.1} parent=67 // pred_check
          %p447 = pneg %p158
        $region74: #{_lambda_.1} parent=67 // pred_check_branch
          %449 = sbr.rel (%p447) target = $region76
        $region75: #{_lambda_.1} parent=67 // pred_region
          %450 = dma.done [#allocation7], 3072
        $region76: #{_lambda_.1} parent=67 // pred_fallthru
          _
        // Predicated region
        $region77: #{_lambda_.1} parent=67 // pred_check
          %p451 = pneg %p179
        $region78: #{_lambda_.1} parent=67 // pred_check_branch
          %453 = sbr.rel (%p451) target = $region80
        $region79: #{_lambda_.1} parent=67 // pred_region
          %454 = dma.done [#allocation7], 3072
        $region80: #{_lambda_.1} parent=67 // pred_fallthru
          _
        // Predicated region
        $region81: #{_lambda_.1} parent=67 // pred_check
          %p455 = pneg %p200
        $region82: #{_lambda_.1} parent=67 // pred_check_branch
          %457 = sbr.rel (%p455) target = $region84
        $region83: #{_lambda_.1} parent=67 // pred_region
          %458 = dma.done [#allocation10], 3072
        $region84: #{_lambda_.1} parent=67 // pred_fallthru
          _
        // Predicated region
        $region85: #{_lambda_.1} parent=67 // pred_check
          %p459 = pneg %p221
        $region86: #{_lambda_.1} parent=67 // pred_check_branch
          %461 = sbr.rel (%p459) target = $region88
        $region87: #{_lambda_.1} parent=67 // pred_region
          %462 = dma.done [#allocation10], 3072
        $region88: #{_lambda_.1} parent=67 // pred_fallthru
          _
        // Predicated region
        $region89: #{_lambda_.1} parent=67 // pred_check
          %p463 = pneg %p263
        $region90: #{_lambda_.1} parent=67 // pred_check_branch
          %465 = sbr.rel (%p463) target = $region92
        $region91: #{_lambda_.1} parent=67 // pred_region
          %466 = dma.done [#allocation13], 128
        $region92: #{_lambda_.1} parent=67 // pred_fallthru
          _
        // Predicated region
        $region93: #{_lambda_.1} parent=67 // pred_check
          %p467 = pneg %p284
        $region94: #{_lambda_.1} parent=67 // pred_check_branch
          %469 = sbr.rel (%p467) target = $region96
        $region95: #{_lambda_.1} parent=67 // pred_region
          %470 = dma.done [#allocation13], 128
        $region96: #{_lambda_.1} parent=67 // pred_fallthru
          _
        %p471 = scmp.lt.s32.totalorder %s32, 1
        %s472 = scalar_select %p471, %s32, 1
        %s473 = smul.addr %s472, 2
        %s474 = smul.addr %s473, 8
        %s475 = scalar_lea.vmem %s0, %s474
        %p476 = pneg %p53
        %p477 = pneg %p50
        %p478 = pneg %p74
        %p479 = pneg %p71
        %p480 = pneg %p95
        %p481 = pneg %p92
        %p482 = pneg %p116
        %p483 = pneg %p113
        %p484 = pneg %p137
        %p485 = pneg %p134
        %p486 = pneg %p158
        %p487 = pneg %p155
        %p488 = pneg %p179
        %p489 = pneg %p176
        %p490 = pneg %p200
        %p491 = pneg %p197
        %p492 = pneg %p221
        %p493 = pneg %p218
        %p494 = pneg %p242
        %p495 = pneg %p239
        %p496 = pneg %p263
        %p497 = pneg %p260
        %p498 = pneg %p284
        %p499 = pneg %p281
        %p500 = pneg %p310
        %p501 = pneg %p307
        %s502 = sand.u32 %s297, 1
        %s503 = scalar_lea.sflag [#allocation5], %s502
        %s504 = sand.u32 %s297, 1
        %s505 = smul.addr %s504, 8
        %s506 = scalar_lea.vmem [#allocation15], %s505
        %p507 = scmp.lt.s32.totalorder %s32, 1
        %s508 = scalar_select %p507, %s32, 1
        %s509 = smul.addr %s508, 2
        %s510 = smul.addr %s509, 8
        %s511 = scalar_lea.vmem %s0, %s510
        %v512 = vld [vmem:[%s511] sm:$0xff]
        %v513 = vld [vmem:[%s511 + $0x8] sm:$0xff]
        %vm514 = vcmask 130048
        %v515 = vsel %vm514, %v512, 0.0
        %v516 = vsel %vm514, %v513, 0.0
        %v517 = vadd.f32 %v515, %v516
        %v518 = vrot.slane %v517, 4
        %v519 = vadd.f32 %v517, %v518
        %v520 = vrot.slane %v519, 2
        %v521 = vadd.f32 %v519, %v520
        %v522 = vrot.slane %v521, 1
        %v523 = vadd.f32 %v521, %v522
        %v524 = vrcp.pop 16.0
        %v525 = vmul.f32 %v523, %v524
        %v526 = vmul.f32 %v512, %v512
        %v527 = vmul.f32 %v513, %v513
        %v528 = vsel %vm514, %v526, 0.0
        %v529 = vsel %vm514, %v527, 0.0
        %v530 = vadd.f32 %v528, %v529
        %v531 = vrot.slane %v530, 4
        %v532 = vadd.f32 %v530, %v531
        %v533 = vrot.slane %v532, 2
        %v534 = vadd.f32 %v532, %v533
        %v535 = vrot.slane %v534, 1
        %v536 = vadd.f32 %v534, %v535
        %v537 = vmul.f32 %v536, %v524
        %v538 = vsub.f32 %v512, %v525
        %v539 = vsub.f32 %v513, %v525
        %v540 = vmul.f32 %v525, %v525
        %v541 = vsub.f32 %v537, %v540
        %v542 = vadd.f32 %v541, 1e-05
        %v543 = vrsqrt.pop %v542
        %v544 = vmul.f32 %v538, %v543
        %v545 = vmul.f32 %v539, %v543
        %v546 = vld [vmem:[%s1] sm:$0xff]
        %v547 = vld [vmem:[%s1 + $0x8] sm:$0xff]
        %549 = vset.pattern.permute.xlu0 0
        %550 = vperm.xlu0 %549, %v546
        %v551 = vpop.permute.xlu0 %550
        %554 = vset.pattern.permute.xlu0 0
        %555 = vperm.xlu0 %554, %v547
        %v556 = vpop.permute.xlu0 %555
        %v558 = vmul.f32 %v544, %v551
        %v559 = vmul.f32 %v545, %v556
        %v560 = vld [vmem:[%s2] sm:$0xff]
        %v561 = vld [vmem:[%s2 + $0x8] sm:$0xff]
        %563 = vset.pattern.permute.xlu0 0
        %564 = vperm.xlu0 %563, %v560
        %v565 = vpop.permute.xlu0 %564
        %568 = vset.pattern.permute.xlu0 0
        %569 = vperm.xlu0 %568, %v561
        %v570 = vpop.permute.xlu0 %569
        %v572 = vadd.f32 %v558, %v565
        %v573 = vadd.f32 %v559, %v570
        %v574 = vld [vmem:[#allocation3] sm:$0xff]
        %v575 = vld [vmem:[#allocation3 + $0x8] sm:$0xff]
        %v576 = vld [vmem:[%s4] sm:$0xff]
        %v577 = vld [vmem:[%s4 + $0x8] sm:$0xff]
        %579 = vset.pattern.permute.xlu0 0
        %580 = vperm.xlu0 %579, %v576
        %v581 = vpop.permute.xlu0 %580
        %584 = vset.pattern.permute.xlu0 0
        %585 = vperm.xlu0 %584, %v577
        %v586 = vpop.permute.xlu0 %585
        %v589 = vsel %vm514, %v574, 0
        %v592 = vsel %vm514, %v575, 0
        %594 = vmatprep.subr.mxu0 0.0
        %595 = vmatpush1.msra.mxu0 0.0
        %596 = vmatprep.subr.mxu0 0.0
        %597 = vmatpush1.msra.mxu0 0.0
        %598 = vmatprep.subr.mxu0 0.0
        %599 = vmatpush1.msra.mxu0 0.0
        %600 = vmatprep.subr.mxu0 0.0
        %601 = vmatpush1.msra.mxu0 0.0
        %602 = vmatprep.subr.mxu0 0.0
        %603 = vmatpush1.msra.mxu0 0.0
        %604 = vmatprep.subr.mxu0 0.0
        %605 = vmatpush1.msra.mxu0 0.0
        %606 = vmatprep.subr.mxu0 0.0
        %607 = vmatpush1.msra.mxu0 0.0
        %608 = vmatprep.subr.mxu0 0.0
        %609 = vmatpush1.msra.mxu0 0.0
        %610 = vmatprep.subr.mxu0 0.0
        %611 = vmatpush1.msra.mxu0 0.0
        %612 = vmatprep.subr.mxu0 0.0
        %613 = vmatpush1.msra.mxu0 0.0
        %614 = vmatprep.subr.mxu0 0.0
        %615 = vmatpush1.msra.mxu0 0.0
        %616 = vmatprep.subr.mxu0 0.0
        %617 = vmatpush1.msra.mxu0 0.0
        %618 = vmatprep.subr.mxu0 0.0
        %619 = vmatpush1.msra.mxu0 0.0
        %620 = vmatprep.subr.mxu0 0.0
        %621 = vmatpush1.msra.mxu0 0.0
        %622 = vmatprep.subr.mxu0 0.0
        %623 = vmatpush1.msra.mxu0 %v573
        %624 = vmatprep.subr.mxu0 0.0
        %625 = vmatpush1.msra.mxu0 %v572
        %626 = vmatprep.subr.mxu0 0.0
        %627 = vmatpush2.msra.mxu0 0.0
        %628 = vmatprep.subr.mxu0 0.0
        %629 = vmatpush2.msra.mxu0 0.0
        %630 = vmatprep.subr.mxu0 0.0
        %631 = vmatpush2.msra.mxu0 0.0
        %632 = vmatprep.subr.mxu0 0.0
        %633 = vmatpush2.msra.mxu0 0.0
        %634 = vmatprep.subr.mxu0 0.0
        %635 = vmatpush2.msra.mxu0 0.0
        %636 = vmatprep.subr.mxu0 0.0
        %637 = vmatpush2.msra.mxu0 0.0
        %638 = vmatprep.subr.mxu0 0.0
        %639 = vmatpush2.msra.mxu0 0.0
        %640 = vmatprep.subr.mxu0 0.0
        %641 = vmatpush2.msra.mxu0 0.0
        %642 = vmatprep.subr.mxu0 0.0
        %643 = vmatpush2.msra.mxu0 0.0
        %644 = vmatprep.subr.mxu0 0.0
        %645 = vmatpush2.msra.mxu0 0.0
        %646 = vmatprep.subr.mxu0 0.0
        %647 = vmatpush2.msra.mxu0 0.0
        %648 = vmatprep.subr.mxu0 0.0
        %649 = vmatpush2.msra.mxu0 0.0
        %650 = vmatprep.subr.mxu0 0.0
        %651 = vmatpush2.msra.mxu0 0.0
        %652 = vmatprep.subr.mxu0 0.0
        %653 = vmatpush2.msra.mxu0 0.0
        %654 = vmatprep.subr.mxu0 0.0
        %655 = vmatpush2.msra.mxu0 0.0
        %656 = vmatprep.subr.mxu0 0.0
        %657 = vmatpush2.msra.mxu0 0.0
        %658 = vmatprep.mubr.f32.mxu0 0.0
        %659 = vmatmul.mubr.f32.gmra.mxu0 %v589
        %v660 = vpop.f32.mrf.mxu0
        %v661 = vadd.f32 %v581, %v660
        %v662 = vpop.f32.mrf.mxu0
        %663 = vmatprep.mubr.f32.mxu0 0.0
        %664 = vmatmul.mubr.f32.gmra.mxu0 %v592
        %v665 = vpop.f32.mrf.mxu0
        %v666 = vadd.f32 %v586, %v665
        %v667 = vpop.f32.mrf.mxu0
        %668 = vdwg.mxu0
        %v669 = vlaneseq
        %v670 = vand.u32 %v669, 127
        %v671 = vadd.s32 %v670, 4294967295
        %vm672 = vcmp.ge.s32.totalorder %v671, 0
        %vm673 = vcmp.lt.s32.totalorder %v671, 16
        %vm674 = vmand %vm672, %vm673
        %v675 = vadd.s32 %v670, 1
        %vm676 = vcmp.ge.s32.totalorder %v675, 0
        %vm677 = vcmp.lt.s32.totalorder %v675, 16
        %vm678 = vmand %vm676, %vm677
        %v679 = vadd.s32 %v670, 4294967294
        %vm680 = vcmp.ge.s32.totalorder %v679, 0
        %vm681 = vcmp.lt.s32.totalorder %v679, 16
        %vm682 = vmand %vm680, %vm681
        %v683 = vadd.s32 %v670, 2
        %vm684 = vcmp.ge.s32.totalorder %v683, 0
        %vm685 = vcmp.lt.s32.totalorder %v683, 16
        %vm686 = vmand %vm684, %vm685
        %v687 = vadd.s32 %v670, 4294967292
        %vm688 = vcmp.ge.s32.totalorder %v687, 0
        %vm689 = vcmp.lt.s32.totalorder %v687, 16
        %vm690 = vmand %vm688, %vm689
        %v691 = vadd.s32 %v670, 4
        %vm692 = vcmp.ge.s32.totalorder %v691, 0
        %vm693 = vcmp.lt.s32.totalorder %v691, 16
        %vm694 = vmand %vm692, %vm693
        loop: start=0, step=1, limit=2
        $region97: #{_lambda_.1} parent=67 // loop_pre_header
          _
        $region98: #{_lambda_.1} parent=67 // loop_header
          %s696 = sphi 0, %s700
          %p697 = scmp.ge.s32.totalorder %s696, 2
          %v701 = vphi %v661, %v2709
          %v702 = vphi %v666, %v2710
          %v703 = vphi 0.0, %v2707
          %v704 = vphi 0.0, %v2708
        $region99: #{_lambda_.1} parent=67 // loop_header_branch
          %699 = sbr.rel (%p697) target = $region103
        $region100: #{_lambda_.1} parent=67 // loop_body
          %s705 = smul.u32 %s696, 3
          %s706 = smul.u32 %s705, 32
          %s707 = scalar_lea.vmem [#allocation6], %s706
          %v708 = vld [vmem:[%s707] sm:$0xff]
          %v709 = vld [vmem:[%s707 + $0x8] sm:$0xff]
          %v710 = vld [vmem:[%s707 + $0x10] sm:$0xff]
          %v711 = vld [vmem:[%s707 + $0x18] sm:$0xff]
          %s712 = scalar_lea.vmem [#allocation8], %s706
          %v713 = vld [vmem:[%s712] sm:$0xff]
          %v714 = vld [vmem:[%s712 + $0x8] sm:$0xff]
          %v715 = vld [vmem:[%s712 + $0x10] sm:$0xff]
          %v716 = vld [vmem:[%s712 + $0x18] sm:$0xff]
          %s717 = scalar_lea.vmem [#allocation9], %s706
          %v718 = vld [vmem:[%s717] sm:$0xff]
          %v719 = vld [vmem:[%s717 + $0x8] sm:$0xff]
          %v720 = vld [vmem:[%s717 + $0x10] sm:$0xff]
          %v721 = vld [vmem:[%s717 + $0x18] sm:$0xff]
          %s722 = scalar_lea.vmem [#allocation11], %s706
          %v723 = vld [vmem:[%s722] sm:$0xff]
          %v724 = vld [vmem:[%s722 + $0x8] sm:$0xff]
          %v725 = vld [vmem:[%s722 + $0x10] sm:$0xff]
          %v726 = vld [vmem:[%s722 + $0x18] sm:$0xff]
          %728 = vset.pattern.permute.xlu0 0
          %729 = vperm.xlu0 %728, %v713
          %v730 = vpop.permute.xlu0 %729
          %733 = vset.pattern.permute.xlu0 0
          %734 = vperm.xlu0 %733, %v714
          %v735 = vpop.permute.xlu0 %734
          %738 = vset.pattern.permute.xlu0 0
          %739 = vperm.xlu0 %738, %v715
          %v740 = vpop.permute.xlu0 %739
          %743 = vset.pattern.permute.xlu0 0
          %744 = vperm.xlu0 %743, %v716
          %v745 = vpop.permute.xlu0 %744
          %v748 = vsel %vm514, %v708, 0
          %v751 = vsel %vm514, %v709, 0
          %v754 = vsel %vm514, %v710, 0
          %v757 = vsel %vm514, %v711, 0
          %759 = vmatprep.subr.mxu0 0.0
          %760 = vmatpush1.msra.mxu0 0.0
          %761 = vmatprep.subr.mxu0 0.0
          %762 = vmatpush1.msra.mxu0 0.0
          %763 = vmatprep.subr.mxu0 0.0
          %764 = vmatpush1.msra.mxu0 0.0
          %765 = vmatprep.subr.mxu0 0.0
          %766 = vmatpush1.msra.mxu0 0.0
          %767 = vmatprep.subr.mxu0 0.0
          %768 = vmatpush1.msra.mxu0 0.0
          %769 = vmatprep.subr.mxu0 0.0
          %770 = vmatpush1.msra.mxu0 0.0
          %771 = vmatprep.subr.mxu0 0.0
          %772 = vmatpush1.msra.mxu0 0.0
          %773 = vmatprep.subr.mxu0 0.0
          %774 = vmatpush1.msra.mxu0 0.0
          %775 = vmatprep.subr.mxu0 0.0
          %776 = vmatpush1.msra.mxu0 0.0
          %777 = vmatprep.subr.mxu0 0.0
          %778 = vmatpush1.msra.mxu0 0.0
          %779 = vmatprep.subr.mxu0 0.0
          %780 = vmatpush1.msra.mxu0 0.0
          %781 = vmatprep.subr.mxu0 0.0
          %782 = vmatpush1.msra.mxu0 0.0
          %783 = vmatprep.subr.mxu0 0.0
          %784 = vmatpush1.msra.mxu0 0.0
          %785 = vmatprep.subr.mxu0 0.0
          %786 = vmatpush1.msra.mxu0 0.0
          %787 = vmatprep.subr.mxu0 0.0
          %788 = vmatpush1.msra.mxu0 %v702
          %789 = vmatprep.subr.mxu0 0.0
          %790 = vmatpush1.msra.mxu0 %v701
          %791 = vmatprep.subr.mxu0 0.0
          %792 = vmatpush2.msra.mxu0 0.0
          %793 = vmatprep.subr.mxu0 0.0
          %794 = vmatpush2.msra.mxu0 0.0
          %795 = vmatprep.subr.mxu0 0.0
          %796 = vmatpush2.msra.mxu0 0.0
          %797 = vmatprep.subr.mxu0 0.0
          %798 = vmatpush2.msra.mxu0 0.0
          %799 = vmatprep.subr.mxu0 0.0
          %800 = vmatpush2.msra.mxu0 0.0
          %801 = vmatprep.subr.mxu0 0.0
          %802 = vmatpush2.msra.mxu0 0.0
          %803 = vmatprep.subr.mxu0 0.0
          %804 = vmatpush2.msra.mxu0 0.0
          %805 = vmatprep.subr.mxu0 0.0
          %806 = vmatpush2.msra.mxu0 0.0
          %807 = vmatprep.subr.mxu0 0.0
          %808 = vmatpush2.msra.mxu0 0.0
          %809 = vmatprep.subr.mxu0 0.0
          %810 = vmatpush2.msra.mxu0 0.0
          %811 = vmatprep.subr.mxu0 0.0
          %812 = vmatpush2.msra.mxu0 0.0
          %813 = vmatprep.subr.mxu0 0.0
          %814 = vmatpush2.msra.mxu0 0.0
          %815 = vmatprep.subr.mxu0 0.0
          %816 = vmatpush2.msra.mxu0 0.0
          %817 = vmatprep.subr.mxu0 0.0
          %818 = vmatpush2.msra.mxu0 0.0
          %819 = vmatprep.subr.mxu0 0.0
          %820 = vmatpush2.msra.mxu0 0.0
          %821 = vmatprep.subr.mxu0 0.0
          %822 = vmatpush2.msra.mxu0 0.0
          %823 = vmatprep.mubr.f32.mxu0 0.0
          %824 = vmatmul.mubr.f32.gmra.mxu0 %v748
          %v825 = vpop.f32.mrf.mxu0
          %v826 = vadd.f32 %v730, %v825
          %v827 = vpop.f32.mrf.mxu0
          %828 = vmatprep.mubr.f32.mxu0 0.0
          %829 = vmatmul.mubr.f32.gmra.mxu0 %v751
          %v830 = vpop.f32.mrf.mxu0
          %v831 = vadd.f32 %v735, %v830
          %v832 = vpop.f32.mrf.mxu0
          %833 = vmatprep.mubr.f32.mxu0 0.0
          %834 = vmatmul.mubr.f32.gmra.mxu0 %v754
          %v835 = vpop.f32.mrf.mxu0
          %v836 = vadd.f32 %v740, %v835
          %v837 = vpop.f32.mrf.mxu0
          %838 = vmatprep.mubr.f32.mxu0 0.0
          %839 = vmatmul.mubr.f32.gmra.mxu0 %v757
          %v840 = vpop.f32.mrf.mxu0
          %v841 = vadd.f32 %v745, %v840
          %v842 = vpop.f32.mrf.mxu0
          %843 = vdwg.mxu0
          %vm844 = vcmp.ge.f32.partialorder %v826, 0.0
          %vm845 = vcmp.ge.f32.partialorder %v831, 0.0
          %vm846 = vcmp.ge.f32.partialorder %v836, 0.0
          %vm847 = vcmp.ge.f32.partialorder %v841, 0.0
          %848 = vset.pattern.permute.xlu0 3
          %849 = vperm.xlu0 %848, %v713
          %v850 = vpop.permute.xlu0 %849
          %852 = vset.pattern.permute.xlu0 3
          %853 = vperm.xlu0 %852, %v714
          %v854 = vpop.permute.xlu0 %853
          %856 = vset.pattern.permute.xlu0 3
          %857 = vperm.xlu0 %856, %v715
          %v858 = vpop.permute.xlu0 %857
          %860 = vset.pattern.permute.xlu0 3
          %861 = vperm.xlu0 %860, %v716
          %v862 = vpop.permute.xlu0 %861
          %v864 = vmul.f32 %v826, %v850
          %v865 = vmul.f32 %v831, %v854
          %v866 = vmul.f32 %v836, %v858
          %v867 = vmul.f32 %v841, %v862
          %v868 = vsel %vm844, %v826, %v864
          %v869 = vsel %vm845, %v831, %v865
          %v870 = vsel %vm846, %v836, %v866
          %v871 = vsel %vm847, %v841, %v867
          %v872 = vsel %vm514, %v868, 0.0
          %v873 = vsel %vm514, %v869, 0.0
          %v874 = vadd.f32 %v872, %v873
          %v875 = vsel %vm514, %v870, 0.0
          %v876 = vadd.f32 %v874, %v875
          %v877 = vsel %vm514, %v871, 0.0
          %v878 = vadd.f32 %v876, %v877
          %879 = vadd.xlane.f32.xlu0 %v878
          %v880 = vpop.xlane.xlu0 %879
          %v881 = vrot.slane %v880, 4
          %v882 = vadd.f32 %v880, %v881
          %v883 = vrot.slane %v882, 2
          %v884 = vadd.f32 %v882, %v883
          %v885 = vrot.slane %v884, 1
          %v886 = vadd.f32 %v884, %v885
          %s887 = vtos %v886
          %v888 = vrcp.pop 512.0
          %s889 = vtos %v888
          %s890 = smul.f32 %s887, %s889
          %v891 = vmul.f32 %v868, %v868
          %v892 = vmul.f32 %v869, %v869
          %v893 = vmul.f32 %v870, %v870
          %v894 = vmul.f32 %v871, %v871
          %v895 = vsel %vm514, %v891, 0.0
          %v896 = vsel %vm514, %v892, 0.0
          %v897 = vadd.f32 %v895, %v896
          %v898 = vsel %vm514, %v893, 0.0
          %v899 = vadd.f32 %v897, %v898
          %v900 = vsel %vm514, %v894, 0.0
          %v901 = vadd.f32 %v899, %v900
          %902 = vadd.xlane.f32.xlu0 %v901
          %v903 = vpop.xlane.xlu0 %902
          %v904 = vrot.slane %v903, 4
          %v905 = vadd.f32 %v903, %v904
          %v906 = vrot.slane %v905, 2
          %v907 = vadd.f32 %v905, %v906
          %v908 = vrot.slane %v907, 1
          %v909 = vadd.f32 %v907, %v908
          %s910 = vtos %v909
          %v911 = vrcp.pop 512.0
          %s912 = vtos %v911
          %s913 = smul.f32 %s910, %s912
          %s914 = smul.f32 %s890, %s890
          %s915 = ssub.f32 %s913, %s914
          %v916 = vstv %s890
          %v917 = vsub.f32 %v868, %v916
          %v918 = vsub.f32 %v869, %v916
          %v919 = vsub.f32 %v870, %v916
          %v920 = vsub.f32 %v871, %v916
          %s921 = sadd.f32 %s915, 1e-10
          %v922 = vstv %s921
          %v923 = vrsqrt.pop %v922
          %s924 = vtos %v923
          %v925 = vstv %s924
          %v926 = vmul.f32 %v917, %v925
          %v927 = vmul.f32 %v918, %v925
          %v928 = vmul.f32 %v919, %v925
          %v929 = vmul.f32 %v920, %v925
          %930 = vset.pattern.permute.xlu0 1
          %931 = vperm.xlu0 %930, %v713
          %v932 = vpop.permute.xlu0 %931
          %934 = vset.pattern.permute.xlu0 1
          %935 = vperm.xlu0 %934, %v714
          %v936 = vpop.permute.xlu0 %935
          %938 = vset.pattern.permute.xlu0 1
          %939 = vperm.xlu0 %938, %v715
          %v940 = vpop.permute.xlu0 %939
          %942 = vset.pattern.permute.xlu0 1
          %943 = vperm.xlu0 %942, %v716
          %v944 = vpop.permute.xlu0 %943
          %v946 = vmul.f32 %v926, %v932
          %v947 = vmul.f32 %v927, %v936
          %v948 = vmul.f32 %v928, %v940
          %v949 = vmul.f32 %v929, %v944
          %950 = vset.pattern.permute.xlu0 2
          %951 = vperm.xlu0 %950, %v713
          %v952 = vpop.permute.xlu0 %951
          %954 = vset.pattern.permute.xlu0 2
          %955 = vperm.xlu0 %954, %v714
          %v956 = vpop.permute.xlu0 %955
          %958 = vset.pattern.permute.xlu0 2
          %959 = vperm.xlu0 %958, %v715
          %v960 = vpop.permute.xlu0 %959
          %962 = vset.pattern.permute.xlu0 2
          %963 = vperm.xlu0 %962, %v716
          %v964 = vpop.permute.xlu0 %963
          %v966 = vadd.f32 %v946, %v952
          %v967 = vadd.f32 %v947, %v956
          %v968 = vadd.f32 %v948, %v960
          %v969 = vadd.f32 %v949, %v964
          %vm970 = vcmask 1047680
          %971 = vrot.lane.b32.xlu0 %v966, 16
          %v972 = vpop.permute.xlu0 %971
          %v973 = vsel %vm970, %v972, %v966
          %974 = vrot.lane.b32.xlu0 %v967, 16
          %v975 = vpop.permute.xlu0 %974
          %v976 = vsel %vm970, %v975, %v967
          %977 = vrot.lane.b32.xlu0 %v968, 16
          %v978 = vpop.permute.xlu0 %977
          %v979 = vsel %vm970, %v978, %v968
          %980 = vrot.lane.b32.xlu0 %v969, 16
          %v981 = vpop.permute.xlu0 %980
          %v982 = vsel %vm970, %v981, %v969
          %983 = vrot.lane.b32.xlu0 %v973, 16
          %v984 = vpop.permute.xlu0 %983
          %985 = vrot.lane.b32.xlu0 %v976, 16
          %v986 = vpop.permute.xlu0 %985
          %987 = vrot.lane.b32.xlu0 %v979, 16
          %v988 = vpop.permute.xlu0 %987
          %989 = vrot.lane.b32.xlu0 %v982, 16
          %v990 = vpop.permute.xlu0 %989
          %v991 = vsel %vm970, %v984, %v966
          %v992 = vsel %vm970, %v986, %v967
          %v993 = vsel %vm970, %v988, %v968
          %v994 = vsel %vm970, %v990, %v969
          %v995 = vsel %vm674, 1, 0
          %vm996 = vcmp.eq.s32.totalorder %v995, 1
          %1001 = vrot.lane.b32.xlu0 %v991, 113
          %v1002 = vpop.permute.xlu0 %1001
          %1003 = vrot.lane.b32.xlu0 %v992, 113
          %v1004 = vpop.permute.xlu0 %1003
          %1005 = vrot.lane.b32.xlu0 %v993, 113
          %v1006 = vpop.permute.xlu0 %1005
          %1007 = vrot.lane.b32.xlu0 %v994, 113
          %v1008 = vpop.permute.xlu0 %1007
          %v1013 = vsel %vm996, %v1002, 0.0
          %v1014 = vsel %vm996, %v1004, 0.0
          %v1015 = vsel %vm996, %v1006, 0.0
          %v1016 = vsel %vm996, %v1008, 0.0
          %1017 = vset.pattern.permute.xlu0 8
          %1018 = vperm.xlu0 %1017, %v713
          %v1019 = vpop.permute.xlu0 %1018
          %1021 = vset.pattern.permute.xlu0 8
          %1022 = vperm.xlu0 %1021, %v714
          %v1023 = vpop.permute.xlu0 %1022
          %1025 = vset.pattern.permute.xlu0 8
          %1026 = vperm.xlu0 %1025, %v715
          %v1027 = vpop.permute.xlu0 %1026
          %1029 = vset.pattern.permute.xlu0 8
          %1030 = vperm.xlu0 %1029, %v716
          %v1031 = vpop.permute.xlu0 %1030
          %v1033 = vmul.f32 %v1013, %v1019
          %v1034 = vmul.f32 %v1014, %v1023
          %v1035 = vmul.f32 %v1015, %v1027
          %v1036 = vmul.f32 %v1016, %v1031
          %v1037 = vadd.f32 %v1033, 0.0
          %v1038 = vadd.f32 %v1034, 0.0
          %v1039 = vadd.f32 %v1035, 0.0
          %v1040 = vadd.f32 %v1036, 0.0
          %1041 = vset.pattern.permute.xlu0 9
          %1042 = vperm.xlu0 %1041, %v713
          %v1043 = vpop.permute.xlu0 %1042
          %1045 = vset.pattern.permute.xlu0 9
          %1046 = vperm.xlu0 %1045, %v714
          %v1047 = vpop.permute.xlu0 %1046
          %1049 = vset.pattern.permute.xlu0 9
          %1050 = vperm.xlu0 %1049, %v715
          %v1051 = vpop.permute.xlu0 %1050
          %1053 = vset.pattern.permute.xlu0 9
          %1054 = vperm.xlu0 %1053, %v716
          %v1055 = vpop.permute.xlu0 %1054
          %v1057 = vmul.f32 %v966, %v1043
          %v1058 = vmul.f32 %v967, %v1047
          %v1059 = vmul.f32 %v968, %v1051
          %v1060 = vmul.f32 %v969, %v1055
          %v1061 = vadd.f32 %v1037, %v1057
          %v1062 = vadd.f32 %v1038, %v1058
          %v1063 = vadd.f32 %v1039, %v1059
          %v1064 = vadd.f32 %v1040, %v1060
          %v1065 = vsel %vm678, 1, 0
          %vm1066 = vcmp.eq.s32.totalorder %v1065, 1
          %1067 = vrot.lane.b32.xlu0 %v991, 127
          %v1068 = vpop.permute.xlu0 %1067
          %1069 = vrot.lane.b32.xlu0 %v992, 127
          %v1070 = vpop.permute.xlu0 %1069
          %1071 = vrot.lane.b32.xlu0 %v993, 127
          %v1072 = vpop.permute.xlu0 %1071
          %1073 = vrot.lane.b32.xlu0 %v994, 127
          %v1074 = vpop.permute.xlu0 %1073
          %v1079 = vsel %vm1066, %v1068, 0.0
          %v1080 = vsel %vm1066, %v1070, 0.0
          %v1081 = vsel %vm1066, %v1072, 0.0
          %v1082 = vsel %vm1066, %v1074, 0.0
          %1083 = vset.pattern.permute.xlu0 10
          %1084 = vperm.xlu0 %1083, %v713
          %v1085 = vpop.permute.xlu0 %1084
          %1087 = vset.pattern.permute.xlu0 10
          %1088 = vperm.xlu0 %1087, %v714
          %v1089 = vpop.permute.xlu0 %1088
          %1091 = vset.pattern.permute.xlu0 10
          %1092 = vperm.xlu0 %1091, %v715
          %v1093 = vpop.permute.xlu0 %1092
          %1095 = vset.pattern.permute.xlu0 10
          %1096 = vperm.xlu0 %1095, %v716
          %v1097 = vpop.permute.xlu0 %1096
          %v1099 = vmul.f32 %v1079, %v1085
          %v1100 = vmul.f32 %v1080, %v1089
          %v1101 = vmul.f32 %v1081, %v1093
          %v1102 = vmul.f32 %v1082, %v1097
          %v1103 = vadd.f32 %v1061, %v1099
          %v1104 = vadd.f32 %v1062, %v1100
          %v1105 = vadd.f32 %v1063, %v1101
          %v1106 = vadd.f32 %v1064, %v1102
          %1107 = vset.pattern.permute.xlu0 4
          %1108 = vperm.xlu0 %1107, %v713
          %v1109 = vpop.permute.xlu0 %1108
          %1111 = vset.pattern.permute.xlu0 4
          %1112 = vperm.xlu0 %1111, %v714
          %v1113 = vpop.permute.xlu0 %1112
          %1115 = vset.pattern.permute.xlu0 4
          %1116 = vperm.xlu0 %1115, %v715
          %v1117 = vpop.permute.xlu0 %1116
          %1119 = vset.pattern.permute.xlu0 4
          %1120 = vperm.xlu0 %1119, %v716
          %v1121 = vpop.permute.xlu0 %1120
          %v1123 = vadd.f32 %v1103, %v1109
          %v1124 = vadd.f32 %v1104, %v1113
          %v1125 = vadd.f32 %v1105, %v1117
          %v1126 = vadd.f32 %v1106, %v1121
          %vm1127 = vcmp.ge.f32.partialorder %v1123, 0.0
          %vm1128 = vcmp.ge.f32.partialorder %v1124, 0.0
          %vm1129 = vcmp.ge.f32.partialorder %v1125, 0.0
          %vm1130 = vcmp.ge.f32.partialorder %v1126, 0.0
          %1131 = vset.pattern.permute.xlu0 7
          %1132 = vperm.xlu0 %1131, %v713
          %v1133 = vpop.permute.xlu0 %1132
          %1135 = vset.pattern.permute.xlu0 7
          %1136 = vperm.xlu0 %1135, %v714
          %v1137 = vpop.permute.xlu0 %1136
          %1139 = vset.pattern.permute.xlu0 7
          %1140 = vperm.xlu0 %1139, %v715
          %v1141 = vpop.permute.xlu0 %1140
          %1143 = vset.pattern.permute.xlu0 7
          %1144 = vperm.xlu0 %1143, %v716
          %v1145 = vpop.permute.xlu0 %1144
          %v1147 = vmul.f32 %v1123, %v1133
          %v1148 = vmul.f32 %v1124, %v1137
          %v1149 = vmul.f32 %v1125, %v1141
          %v1150 = vmul.f32 %v1126, %v1145
          %v1151 = vsel %vm1127, %v1123, %v1147
          %v1152 = vsel %vm1128, %v1124, %v1148
          %v1153 = vsel %vm1129, %v1125, %v1149
          %v1154 = vsel %vm1130, %v1126, %v1150
          %v1155 = vsel %vm514, %v1151, 0.0
          %v1156 = vsel %vm514, %v1152, 0.0
          %v1157 = vadd.f32 %v1155, %v1156
          %v1158 = vsel %vm514, %v1153, 0.0
          %v1159 = vadd.f32 %v1157, %v1158
          %v1160 = vsel %vm514, %v1154, 0.0
          %v1161 = vadd.f32 %v1159, %v1160
          %1162 = vadd.xlane.f32.xlu0 %v1161
          %v1163 = vpop.xlane.xlu0 %1162
          %v1164 = vrot.slane %v1163, 4
          %v1165 = vadd.f32 %v1163, %v1164
          %v1166 = vrot.slane %v1165, 2
          %v1167 = vadd.f32 %v1165, %v1166
          %v1168 = vrot.slane %v1167, 1
          %v1169 = vadd.f32 %v1167, %v1168
          %s1170 = vtos %v1169
          %v1171 = vrcp.pop 512.0
          %s1172 = vtos %v1171
          %s1173 = smul.f32 %s1170, %s1172
          %v1174 = vmul.f32 %v1151, %v1151
          %v1175 = vmul.f32 %v1152, %v1152
          %v1176 = vmul.f32 %v1153, %v1153
          %v1177 = vmul.f32 %v1154, %v1154
          %v1178 = vsel %vm514, %v1174, 0.0
          %v1179 = vsel %vm514, %v1175, 0.0
          %v1180 = vadd.f32 %v1178, %v1179
          %v1181 = vsel %vm514, %v1176, 0.0
          %v1182 = vadd.f32 %v1180, %v1181
          %v1183 = vsel %vm514, %v1177, 0.0
          %v1184 = vadd.f32 %v1182, %v1183
          %1185 = vadd.xlane.f32.xlu0 %v1184
          %v1186 = vpop.xlane.xlu0 %1185
          %v1187 = vrot.slane %v1186, 4
          %v1188 = vadd.f32 %v1186, %v1187
          %v1189 = vrot.slane %v1188, 2
          %v1190 = vadd.f32 %v1188, %v1189
          %v1191 = vrot.slane %v1190, 1
          %v1192 = vadd.f32 %v1190, %v1191
          %s1193 = vtos %v1192
          %v1194 = vrcp.pop 512.0
          %s1195 = vtos %v1194
          %s1196 = smul.f32 %s1193, %s1195
          %s1197 = smul.f32 %s1173, %s1173
          %s1198 = ssub.f32 %s1196, %s1197
          %v1199 = vstv %s1173
          %v1200 = vsub.f32 %v1151, %v1199
          %v1201 = vsub.f32 %v1152, %v1199
          %v1202 = vsub.f32 %v1153, %v1199
          %v1203 = vsub.f32 %v1154, %v1199
          %s1204 = sadd.f32 %s1198, 1e-10
          %v1205 = vstv %s1204
          %v1206 = vrsqrt.pop %v1205
          %s1207 = vtos %v1206
          %v1208 = vstv %s1207
          %v1209 = vmul.f32 %v1200, %v1208
          %v1210 = vmul.f32 %v1201, %v1208
          %v1211 = vmul.f32 %v1202, %v1208
          %v1212 = vmul.f32 %v1203, %v1208
          %1213 = vset.pattern.permute.xlu0 5
          %1214 = vperm.xlu0 %1213, %v713
          %v1215 = vpop.permute.xlu0 %1214
          %1217 = vset.pattern.permute.xlu0 5
          %1218 = vperm.xlu0 %1217, %v714
          %v1219 = vpop.permute.xlu0 %1218
          %1221 = vset.pattern.permute.xlu0 5
          %1222 = vperm.xlu0 %1221, %v715
          %v1223 = vpop.permute.xlu0 %1222
          %1225 = vset.pattern.permute.xlu0 5
          %1226 = vperm.xlu0 %1225, %v716
          %v1227 = vpop.permute.xlu0 %1226
          %v1229 = vmul.f32 %v1209, %v1215
          %v1230 = vmul.f32 %v1210, %v1219
          %v1231 = vmul.f32 %v1211, %v1223
          %v1232 = vmul.f32 %v1212, %v1227
          %1233 = vset.pattern.permute.xlu0 6
          %1234 = vperm.xlu0 %1233, %v713
          %v1235 = vpop.permute.xlu0 %1234
          %1237 = vset.pattern.permute.xlu0 6
          %1238 = vperm.xlu0 %1237, %v714
          %v1239 = vpop.permute.xlu0 %1238
          %1241 = vset.pattern.permute.xlu0 6
          %1242 = vperm.xlu0 %1241, %v715
          %v1243 = vpop.permute.xlu0 %1242
          %1245 = vset.pattern.permute.xlu0 6
          %1246 = vperm.xlu0 %1245, %v716
          %v1247 = vpop.permute.xlu0 %1246
          %v1249 = vadd.f32 %v1229, %v1235
          %v1250 = vadd.f32 %v1230, %v1239
          %v1251 = vadd.f32 %v1231, %v1243
          %v1252 = vadd.f32 %v1232, %v1247
          %1254 = vset.pattern.permute.xlu0 0
          %1255 = vperm.xlu0 %1254, %v723
          %v1256 = vpop.permute.xlu0 %1255
          %1259 = vset.pattern.permute.xlu0 0
          %1260 = vperm.xlu0 %1259, %v724
          %v1261 = vpop.permute.xlu0 %1260
          %1264 = vset.pattern.permute.xlu0 0
          %1265 = vperm.xlu0 %1264, %v725
          %v1266 = vpop.permute.xlu0 %1265
          %1269 = vset.pattern.permute.xlu0 0
          %1270 = vperm.xlu0 %1269, %v726
          %v1271 = vpop.permute.xlu0 %1270
          %vm1273 = vcmask 261120
          %v1275 = vsel %vm1273, %v718, 0
          %v1278 = vsel %vm1273, %v719, 0
          %v1281 = vsel %vm1273, %v720, 0
          %v1284 = vsel %vm1273, %v721, 0
          %1286 = vmatprep.subr.mxu0 0.0
          %1287 = vmatpush1.msra.mxu0 0.0
          %1288 = vmatprep.subr.mxu0 0.0
          %1289 = vmatpush1.msra.mxu0 0.0
          %1290 = vmatprep.subr.mxu0 0.0
          %1291 = vmatpush1.msra.mxu0 0.0
          %1292 = vmatprep.subr.mxu0 0.0
          %1293 = vmatpush1.msra.mxu0 0.0
          %1294 = vmatprep.subr.mxu0 0.0
          %1295 = vmatpush1.msra.mxu0 0.0
          %1296 = vmatprep.subr.mxu0 0.0
          %1297 = vmatpush1.msra.mxu0 0.0
          %1298 = vmatprep.subr.mxu0 0.0
          %1299 = vmatpush1.msra.mxu0 0.0
          %1300 = vmatprep.subr.mxu0 0.0
          %1301 = vmatpush1.msra.mxu0 0.0
          %1302 = vmatprep.subr.mxu0 0.0
          %1303 = vmatpush1.msra.mxu0 0.0
          %1304 = vmatprep.subr.mxu0 0.0
          %1305 = vmatpush1.msra.mxu0 0.0
          %1306 = vmatprep.subr.mxu0 0.0
          %1307 = vmatpush1.msra.mxu0 0.0
          %1308 = vmatprep.subr.mxu0 0.0
          %1309 = vmatpush1.msra.mxu0 0.0
          %1310 = vmatprep.subr.mxu0 0.0
          %1311 = vmatpush1.msra.mxu0 %v1252
          %1312 = vmatprep.subr.mxu0 0.0
          %1313 = vmatpush1.msra.mxu0 %v1251
          %1314 = vmatprep.subr.mxu0 0.0
          %1315 = vmatpush1.msra.mxu0 %v1250
          %1316 = vmatprep.subr.mxu0 0.0
          %1317 = vmatpush1.msra.mxu0 %v1249
          %1318 = vmatprep.subr.mxu0 0.0
          %1319 = vmatpush2.msra.mxu0 0.0
          %1320 = vmatprep.subr.mxu0 0.0
          %1321 = vmatpush2.msra.mxu0 0.0
          %1322 = vmatprep.subr.mxu0 0.0
          %1323 = vmatpush2.msra.mxu0 0.0
          %1324 = vmatprep.subr.mxu0 0.0
          %1325 = vmatpush2.msra.mxu0 0.0
          %1326 = vmatprep.subr.mxu0 0.0
          %1327 = vmatpush2.msra.mxu0 0.0
          %1328 = vmatprep.subr.mxu0 0.0
          %1329 = vmatpush2.msra.mxu0 0.0
          %1330 = vmatprep.subr.mxu0 0.0
          %1331 = vmatpush2.msra.mxu0 0.0
          %1332 = vmatprep.subr.mxu0 0.0
          %1333 = vmatpush2.msra.mxu0 0.0
          %1334 = vmatprep.subr.mxu0 0.0
          %1335 = vmatpush2.msra.mxu0 0.0
          %1336 = vmatprep.subr.mxu0 0.0
          %1337 = vmatpush2.msra.mxu0 0.0
          %1338 = vmatprep.subr.mxu0 0.0
          %1339 = vmatpush2.msra.mxu0 0.0
          %1340 = vmatprep.subr.mxu0 0.0
          %1341 = vmatpush2.msra.mxu0 0.0
          %1342 = vmatprep.subr.mxu0 0.0
          %1343 = vmatpush2.msra.mxu0 0.0
          %1344 = vmatprep.subr.mxu0 0.0
          %1345 = vmatpush2.msra.mxu0 0.0
          %1346 = vmatprep.subr.mxu0 0.0
          %1347 = vmatpush2.msra.mxu0 0.0
          %1348 = vmatprep.subr.mxu0 0.0
          %1349 = vmatpush2.msra.mxu0 0.0
          %1350 = vmatprep.mubr.f32.mxu0 0.0
          %1351 = vmatmul.mubr.f32.gmra.mxu0 %v1275
          %v1352 = vpop.f32.mrf.mxu0
          %v1353 = vadd.f32 %v1256, %v1352
          %v1354 = vpop.f32.mrf.mxu0
          %1355 = vmatprep.mubr.f32.mxu0 0.0
          %1356 = vmatmul.mubr.f32.gmra.mxu0 %v1278
          %v1357 = vpop.f32.mrf.mxu0
          %v1358 = vadd.f32 %v1261, %v1357
          %v1359 = vpop.f32.mrf.mxu0
          %1360 = vmatprep.mubr.f32.mxu0 0.0
          %1361 = vmatmul.mubr.f32.gmra.mxu0 %v1281
          %v1362 = vpop.f32.mrf.mxu0
          %v1363 = vadd.f32 %v1266, %v1362
          %v1364 = vpop.f32.mrf.mxu0
          %1365 = vmatprep.mubr.f32.mxu0 0.0
          %1366 = vmatmul.mubr.f32.gmra.mxu0 %v1284
          %v1367 = vpop.f32.mrf.mxu0
          %v1368 = vadd.f32 %v1271, %v1367
          %v1369 = vpop.f32.mrf.mxu0
          %1370 = vdwg.mxu0
          %v1371 = vadd.f32 %v703, %v1353
          %v1372 = vadd.f32 %v704, %v1358
          %v1373 = vadd.f32 %v1363, %v701
          %v1374 = vadd.f32 %v1368, %v702
          %s1375 = sadd.s32 %s705, 1
          %s1376 = smul.u32 %s1375, 32
          %s1377 = scalar_lea.vmem [#allocation6], %s1376
          %v1378 = vld [vmem:[%s1377] sm:$0xff]
          %v1379 = vld [vmem:[%s1377 + $0x8] sm:$0xff]
          %v1380 = vld [vmem:[%s1377 + $0x10] sm:$0xff]
          %v1381 = vld [vmem:[%s1377 + $0x18] sm:$0xff]
          %s1382 = scalar_lea.vmem [#allocation8], %s1376
          %v1383 = vld [vmem:[%s1382] sm:$0xff]
          %v1384 = vld [vmem:[%s1382 + $0x8] sm:$0xff]
          %v1385 = vld [vmem:[%s1382 + $0x10] sm:$0xff]
          %v1386 = vld [vmem:[%s1382 + $0x18] sm:$0xff]
          %s1387 = scalar_lea.vmem [#allocation9], %s1376
          %v1388 = vld [vmem:[%s1387] sm:$0xff]
          %v1389 = vld [vmem:[%s1387 + $0x8] sm:$0xff]
          %v1390 = vld [vmem:[%s1387 + $0x10] sm:$0xff]
          %v1391 = vld [vmem:[%s1387 + $0x18] sm:$0xff]
          %s1392 = scalar_lea.vmem [#allocation11], %s1376
          %v1393 = vld [vmem:[%s1392] sm:$0xff]
          %v1394 = vld [vmem:[%s1392 + $0x8] sm:$0xff]
          %v1395 = vld [vmem:[%s1392 + $0x10] sm:$0xff]
          %v1396 = vld [vmem:[%s1392 + $0x18] sm:$0xff]
          %1398 = vset.pattern.permute.xlu0 0
          %1399 = vperm.xlu0 %1398, %v1383
          %v1400 = vpop.permute.xlu0 %1399
          %1403 = vset.pattern.permute.xlu0 0
          %1404 = vperm.xlu0 %1403, %v1384
          %v1405 = vpop.permute.xlu0 %1404
          %1408 = vset.pattern.permute.xlu0 0
          %1409 = vperm.xlu0 %1408, %v1385
          %v1410 = vpop.permute.xlu0 %1409
          %1413 = vset.pattern.permute.xlu0 0
          %1414 = vperm.xlu0 %1413, %v1386
          %v1415 = vpop.permute.xlu0 %1414
          %v1418 = vsel %vm514, %v1378, 0
          %v1421 = vsel %vm514, %v1379, 0
          %v1424 = vsel %vm514, %v1380, 0
          %v1427 = vsel %vm514, %v1381, 0
          %1429 = vmatprep.subr.mxu0 0.0
          %1430 = vmatpush1.msra.mxu0 0.0
          %1431 = vmatprep.subr.mxu0 0.0
          %1432 = vmatpush1.msra.mxu0 0.0
          %1433 = vmatprep.subr.mxu0 0.0
          %1434 = vmatpush1.msra.mxu0 0.0
          %1435 = vmatprep.subr.mxu0 0.0
          %1436 = vmatpush1.msra.mxu0 0.0
          %1437 = vmatprep.subr.mxu0 0.0
          %1438 = vmatpush1.msra.mxu0 0.0
          %1439 = vmatprep.subr.mxu0 0.0
          %1440 = vmatpush1.msra.mxu0 0.0
          %1441 = vmatprep.subr.mxu0 0.0
          %1442 = vmatpush1.msra.mxu0 0.0
          %1443 = vmatprep.subr.mxu0 0.0
          %1444 = vmatpush1.msra.mxu0 0.0
          %1445 = vmatprep.subr.mxu0 0.0
          %1446 = vmatpush1.msra.mxu0 0.0
          %1447 = vmatprep.subr.mxu0 0.0
          %1448 = vmatpush1.msra.mxu0 0.0
          %1449 = vmatprep.subr.mxu0 0.0
          %1450 = vmatpush1.msra.mxu0 0.0
          %1451 = vmatprep.subr.mxu0 0.0
          %1452 = vmatpush1.msra.mxu0 0.0
          %1453 = vmatprep.subr.mxu0 0.0
          %1454 = vmatpush1.msra.mxu0 0.0
          %1455 = vmatprep.subr.mxu0 0.0
          %1456 = vmatpush1.msra.mxu0 0.0
          %1457 = vmatprep.subr.mxu0 0.0
          %1458 = vmatpush1.msra.mxu0 %v1374
          %1459 = vmatprep.subr.mxu0 0.0
          %1460 = vmatpush1.msra.mxu0 %v1373
          %1461 = vmatprep.subr.mxu0 0.0
          %1462 = vmatpush2.msra.mxu0 0.0
          %1463 = vmatprep.subr.mxu0 0.0
          %1464 = vmatpush2.msra.mxu0 0.0
          %1465 = vmatprep.subr.mxu0 0.0
          %1466 = vmatpush2.msra.mxu0 0.0
          %1467 = vmatprep.subr.mxu0 0.0
          %1468 = vmatpush2.msra.mxu0 0.0
          %1469 = vmatprep.subr.mxu0 0.0
          %1470 = vmatpush2.msra.mxu0 0.0
          %1471 = vmatprep.subr.mxu0 0.0
          %1472 = vmatpush2.msra.mxu0 0.0
          %1473 = vmatprep.subr.mxu0 0.0
          %1474 = vmatpush2.msra.mxu0 0.0
          %1475 = vmatprep.subr.mxu0 0.0
          %1476 = vmatpush2.msra.mxu0 0.0
          %1477 = vmatprep.subr.mxu0 0.0
          %1478 = vmatpush2.msra.mxu0 0.0
          %1479 = vmatprep.subr.mxu0 0.0
          %1480 = vmatpush2.msra.mxu0 0.0
          %1481 = vmatprep.subr.mxu0 0.0
          %1482 = vmatpush2.msra.mxu0 0.0
          %1483 = vmatprep.subr.mxu0 0.0
          %1484 = vmatpush2.msra.mxu0 0.0
          %1485 = vmatprep.subr.mxu0 0.0
          %1486 = vmatpush2.msra.mxu0 0.0
          %1487 = vmatprep.subr.mxu0 0.0
          %1488 = vmatpush2.msra.mxu0 0.0
          %1489 = vmatprep.subr.mxu0 0.0
          %1490 = vmatpush2.msra.mxu0 0.0
          %1491 = vmatprep.subr.mxu0 0.0
          %1492 = vmatpush2.msra.mxu0 0.0
          %1493 = vmatprep.mubr.f32.mxu0 0.0
          %1494 = vmatmul.mubr.f32.gmra.mxu0 %v1418
          %v1495 = vpop.f32.mrf.mxu0
          %v1496 = vadd.f32 %v1400, %v1495
          %v1497 = vpop.f32.mrf.mxu0
          %1498 = vmatprep.mubr.f32.mxu0 0.0
          %1499 = vmatmul.mubr.f32.gmra.mxu0 %v1421
          %v1500 = vpop.f32.mrf.mxu0
          %v1501 = vadd.f32 %v1405, %v1500
          %v1502 = vpop.f32.mrf.mxu0
          %1503 = vmatprep.mubr.f32.mxu0 0.0
          %1504 = vmatmul.mubr.f32.gmra.mxu0 %v1424
          %v1505 = vpop.f32.mrf.mxu0
          %v1506 = vadd.f32 %v1410, %v1505
          %v1507 = vpop.f32.mrf.mxu0
          %1508 = vmatprep.mubr.f32.mxu0 0.0
          %1509 = vmatmul.mubr.f32.gmra.mxu0 %v1427
          %v1510 = vpop.f32.mrf.mxu0
          %v1511 = vadd.f32 %v1415, %v1510
          %v1512 = vpop.f32.mrf.mxu0
          %1513 = vdwg.mxu0
          %vm1514 = vcmp.ge.f32.partialorder %v1496, 0.0
          %vm1515 = vcmp.ge.f32.partialorder %v1501, 0.0
          %vm1516 = vcmp.ge.f32.partialorder %v1506, 0.0
          %vm1517 = vcmp.ge.f32.partialorder %v1511, 0.0
          %1518 = vset.pattern.permute.xlu0 3
          %1519 = vperm.xlu0 %1518, %v1383
          %v1520 = vpop.permute.xlu0 %1519
          %1522 = vset.pattern.permute.xlu0 3
          %1523 = vperm.xlu0 %1522, %v1384
          %v1524 = vpop.permute.xlu0 %1523
          %1526 = vset.pattern.permute.xlu0 3
          %1527 = vperm.xlu0 %1526, %v1385
          %v1528 = vpop.permute.xlu0 %1527
          %1530 = vset.pattern.permute.xlu0 3
          %1531 = vperm.xlu0 %1530, %v1386
          %v1532 = vpop.permute.xlu0 %1531
          %v1534 = vmul.f32 %v1496, %v1520
          %v1535 = vmul.f32 %v1501, %v1524
          %v1536 = vmul.f32 %v1506, %v1528
          %v1537 = vmul.f32 %v1511, %v1532
          %v1538 = vsel %vm1514, %v1496, %v1534
          %v1539 = vsel %vm1515, %v1501, %v1535
          %v1540 = vsel %vm1516, %v1506, %v1536
          %v1541 = vsel %vm1517, %v1511, %v1537
          %v1542 = vsel %vm514, %v1538, 0.0
          %v1543 = vsel %vm514, %v1539, 0.0
          %v1544 = vadd.f32 %v1542, %v1543
          %v1545 = vsel %vm514, %v1540, 0.0
          %v1546 = vadd.f32 %v1544, %v1545
          %v1547 = vsel %vm514, %v1541, 0.0
          %v1548 = vadd.f32 %v1546, %v1547
          %1549 = vadd.xlane.f32.xlu0 %v1548
          %v1550 = vpop.xlane.xlu0 %1549
          %v1551 = vrot.slane %v1550, 4
          %v1552 = vadd.f32 %v1550, %v1551
          %v1553 = vrot.slane %v1552, 2
          %v1554 = vadd.f32 %v1552, %v1553
          %v1555 = vrot.slane %v1554, 1
          %v1556 = vadd.f32 %v1554, %v1555
          %s1557 = vtos %v1556
          %v1558 = vrcp.pop 512.0
          %s1559 = vtos %v1558
          %s1560 = smul.f32 %s1557, %s1559
          %v1561 = vmul.f32 %v1538, %v1538
          %v1562 = vmul.f32 %v1539, %v1539
          %v1563 = vmul.f32 %v1540, %v1540
          %v1564 = vmul.f32 %v1541, %v1541
          %v1565 = vsel %vm514, %v1561, 0.0
          %v1566 = vsel %vm514, %v1562, 0.0
          %v1567 = vadd.f32 %v1565, %v1566
          %v1568 = vsel %vm514, %v1563, 0.0
          %v1569 = vadd.f32 %v1567, %v1568
          %v1570 = vsel %vm514, %v1564, 0.0
          %v1571 = vadd.f32 %v1569, %v1570
          %1572 = vadd.xlane.f32.xlu0 %v1571
          %v1573 = vpop.xlane.xlu0 %1572
          %v1574 = vrot.slane %v1573, 4
          %v1575 = vadd.f32 %v1573, %v1574
          %v1576 = vrot.slane %v1575, 2
          %v1577 = vadd.f32 %v1575, %v1576
          %v1578 = vrot.slane %v1577, 1
          %v1579 = vadd.f32 %v1577, %v1578
          %s1580 = vtos %v1579
          %v1581 = vrcp.pop 512.0
          %s1582 = vtos %v1581
          %s1583 = smul.f32 %s1580, %s1582
          %s1584 = smul.f32 %s1560, %s1560
          %s1585 = ssub.f32 %s1583, %s1584
          %v1586 = vstv %s1560
          %v1587 = vsub.f32 %v1538, %v1586
          %v1588 = vsub.f32 %v1539, %v1586
          %v1589 = vsub.f32 %v1540, %v1586
          %v1590 = vsub.f32 %v1541, %v1586
          %s1591 = sadd.f32 %s1585, 1e-10
          %v1592 = vstv %s1591
          %v1593 = vrsqrt.pop %v1592
          %s1594 = vtos %v1593
          %v1595 = vstv %s1594
          %v1596 = vmul.f32 %v1587, %v1595
          %v1597 = vmul.f32 %v1588, %v1595
          %v1598 = vmul.f32 %v1589, %v1595
          %v1599 = vmul.f32 %v1590, %v1595
          %1600 = vset.pattern.permute.xlu0 1
          %1601 = vperm.xlu0 %1600, %v1383
          %v1602 = vpop.permute.xlu0 %1601
          %1604 = vset.pattern.permute.xlu0 1
          %1605 = vperm.xlu0 %1604, %v1384
          %v1606 = vpop.permute.xlu0 %1605
          %1608 = vset.pattern.permute.xlu0 1
          %1609 = vperm.xlu0 %1608, %v1385
          %v1610 = vpop.permute.xlu0 %1609
          %1612 = vset.pattern.permute.xlu0 1
          %1613 = vperm.xlu0 %1612, %v1386
          %v1614 = vpop.permute.xlu0 %1613
          %v1616 = vmul.f32 %v1596, %v1602
          %v1617 = vmul.f32 %v1597, %v1606
          %v1618 = vmul.f32 %v1598, %v1610
          %v1619 = vmul.f32 %v1599, %v1614
          %1620 = vset.pattern.permute.xlu0 2
          %1621 = vperm.xlu0 %1620, %v1383
          %v1622 = vpop.permute.xlu0 %1621
          %1624 = vset.pattern.permute.xlu0 2
          %1625 = vperm.xlu0 %1624, %v1384
          %v1626 = vpop.permute.xlu0 %1625
          %1628 = vset.pattern.permute.xlu0 2
          %1629 = vperm.xlu0 %1628, %v1385
          %v1630 = vpop.permute.xlu0 %1629
          %1632 = vset.pattern.permute.xlu0 2
          %1633 = vperm.xlu0 %1632, %v1386
          %v1634 = vpop.permute.xlu0 %1633
          %v1636 = vadd.f32 %v1616, %v1622
          %v1637 = vadd.f32 %v1617, %v1626
          %v1638 = vadd.f32 %v1618, %v1630
          %v1639 = vadd.f32 %v1619, %v1634
          %1640 = vrot.lane.b32.xlu0 %v1636, 16
          %v1641 = vpop.permute.xlu0 %1640
          %v1642 = vsel %vm970, %v1641, %v1636
          %1643 = vrot.lane.b32.xlu0 %v1637, 16
          %v1644 = vpop.permute.xlu0 %1643
          %v1645 = vsel %vm970, %v1644, %v1637
          %1646 = vrot.lane.b32.xlu0 %v1638, 16
          %v1647 = vpop.permute.xlu0 %1646
          %v1648 = vsel %vm970, %v1647, %v1638
          %1649 = vrot.lane.b32.xlu0 %v1639, 16
          %v1650 = vpop.permute.xlu0 %1649
          %v1651 = vsel %vm970, %v1650, %v1639
          %1652 = vrot.lane.b32.xlu0 %v1642, 16
          %v1653 = vpop.permute.xlu0 %1652
          %1654 = vrot.lane.b32.xlu0 %v1645, 16
          %v1655 = vpop.permute.xlu0 %1654
          %1656 = vrot.lane.b32.xlu0 %v1648, 16
          %v1657 = vpop.permute.xlu0 %1656
          %1658 = vrot.lane.b32.xlu0 %v1651, 16
          %v1659 = vpop.permute.xlu0 %1658
          %v1660 = vsel %vm970, %v1653, %v1636
          %v1661 = vsel %vm970, %v1655, %v1637
          %v1662 = vsel %vm970, %v1657, %v1638
          %v1663 = vsel %vm970, %v1659, %v1639
          %v1664 = vsel %vm682, 1, 0
          %vm1665 = vcmp.eq.s32.totalorder %v1664, 1
          %1670 = vrot.lane.b32.xlu0 %v1660, 114
          %v1671 = vpop.permute.xlu0 %1670
          %1672 = vrot.lane.b32.xlu0 %v1661, 114
          %v1673 = vpop.permute.xlu0 %1672
          %1674 = vrot.lane.b32.xlu0 %v1662, 114
          %v1675 = vpop.permute.xlu0 %1674
          %1676 = vrot.lane.b32.xlu0 %v1663, 114
          %v1677 = vpop.permute.xlu0 %1676
          %v1682 = vsel %vm1665, %v1671, 0.0
          %v1683 = vsel %vm1665, %v1673, 0.0
          %v1684 = vsel %vm1665, %v1675, 0.0
          %v1685 = vsel %vm1665, %v1677, 0.0
          %1686 = vset.pattern.permute.xlu0 8
          %1687 = vperm.xlu0 %1686, %v1383
          %v1688 = vpop.permute.xlu0 %1687
          %1690 = vset.pattern.permute.xlu0 8
          %1691 = vperm.xlu0 %1690, %v1384
          %v1692 = vpop.permute.xlu0 %1691
          %1694 = vset.pattern.permute.xlu0 8
          %1695 = vperm.xlu0 %1694, %v1385
          %v1696 = vpop.permute.xlu0 %1695
          %1698 = vset.pattern.permute.xlu0 8
          %1699 = vperm.xlu0 %1698, %v1386
          %v1700 = vpop.permute.xlu0 %1699
          %v1702 = vmul.f32 %v1682, %v1688
          %v1703 = vmul.f32 %v1683, %v1692
          %v1704 = vmul.f32 %v1684, %v1696
          %v1705 = vmul.f32 %v1685, %v1700
          %v1706 = vadd.f32 %v1702, 0.0
          %v1707 = vadd.f32 %v1703, 0.0
          %v1708 = vadd.f32 %v1704, 0.0
          %v1709 = vadd.f32 %v1705, 0.0
          %1710 = vset.pattern.permute.xlu0 9
          %1711 = vperm.xlu0 %1710, %v1383
          %v1712 = vpop.permute.xlu0 %1711
          %1714 = vset.pattern.permute.xlu0 9
          %1715 = vperm.xlu0 %1714, %v1384
          %v1716 = vpop.permute.xlu0 %1715
          %1718 = vset.pattern.permute.xlu0 9
          %1719 = vperm.xlu0 %1718, %v1385
          %v1720 = vpop.permute.xlu0 %1719
          %1722 = vset.pattern.permute.xlu0 9
          %1723 = vperm.xlu0 %1722, %v1386
          %v1724 = vpop.permute.xlu0 %1723
          %v1726 = vmul.f32 %v1636, %v1712
          %v1727 = vmul.f32 %v1637, %v1716
          %v1728 = vmul.f32 %v1638, %v1720
          %v1729 = vmul.f32 %v1639, %v1724
          %v1730 = vadd.f32 %v1706, %v1726
          %v1731 = vadd.f32 %v1707, %v1727
          %v1732 = vadd.f32 %v1708, %v1728
          %v1733 = vadd.f32 %v1709, %v1729
          %v1734 = vsel %vm686, 1, 0
          %vm1735 = vcmp.eq.s32.totalorder %v1734, 1
          %1736 = vrot.lane.b32.xlu0 %v1660, 126
          %v1737 = vpop.permute.xlu0 %1736
          %1738 = vrot.lane.b32.xlu0 %v1661, 126
          %v1739 = vpop.permute.xlu0 %1738
          %1740 = vrot.lane.b32.xlu0 %v1662, 126
          %v1741 = vpop.permute.xlu0 %1740
          %1742 = vrot.lane.b32.xlu0 %v1663, 126
          %v1743 = vpop.permute.xlu0 %1742
          %v1748 = vsel %vm1735, %v1737, 0.0
          %v1749 = vsel %vm1735, %v1739, 0.0
          %v1750 = vsel %vm1735, %v1741, 0.0
          %v1751 = vsel %vm1735, %v1743, 0.0
          %1752 = vset.pattern.permute.xlu0 10
          %1753 = vperm.xlu0 %1752, %v1383
          %v1754 = vpop.permute.xlu0 %1753
          %1756 = vset.pattern.permute.xlu0 10
          %1757 = vperm.xlu0 %1756, %v1384
          %v1758 = vpop.permute.xlu0 %1757
          %1760 = vset.pattern.permute.xlu0 10
          %1761 = vperm.xlu0 %1760, %v1385
          %v1762 = vpop.permute.xlu0 %1761
          %1764 = vset.pattern.permute.xlu0 10
          %1765 = vperm.xlu0 %1764, %v1386
          %v1766 = vpop.permute.xlu0 %1765
          %v1768 = vmul.f32 %v1748, %v1754
          %v1769 = vmul.f32 %v1749, %v1758
          %v1770 = vmul.f32 %v1750, %v1762
          %v1771 = vmul.f32 %v1751, %v1766
          %v1772 = vadd.f32 %v1730, %v1768
          %v1773 = vadd.f32 %v1731, %v1769
          %v1774 = vadd.f32 %v1732, %v1770
          %v1775 = vadd.f32 %v1733, %v1771
          %1776 = vset.pattern.permute.xlu0 4
          %1777 = vperm.xlu0 %1776, %v1383
          %v1778 = vpop.permute.xlu0 %1777
          %1780 = vset.pattern.permute.xlu0 4
          %1781 = vperm.xlu0 %1780, %v1384
          %v1782 = vpop.permute.xlu0 %1781
          %1784 = vset.pattern.permute.xlu0 4
          %1785 = vperm.xlu0 %1784, %v1385
          %v1786 = vpop.permute.xlu0 %1785
          %1788 = vset.pattern.permute.xlu0 4
          %1789 = vperm.xlu0 %1788, %v1386
          %v1790 = vpop.permute.xlu0 %1789
          %v1792 = vadd.f32 %v1772, %v1778
          %v1793 = vadd.f32 %v1773, %v1782
          %v1794 = vadd.f32 %v1774, %v1786
          %v1795 = vadd.f32 %v1775, %v1790
          %vm1796 = vcmp.ge.f32.partialorder %v1792, 0.0
          %vm1797 = vcmp.ge.f32.partialorder %v1793, 0.0
          %vm1798 = vcmp.ge.f32.partialorder %v1794, 0.0
          %vm1799 = vcmp.ge.f32.partialorder %v1795, 0.0
          %1800 = vset.pattern.permute.xlu0 7
          %1801 = vperm.xlu0 %1800, %v1383
          %v1802 = vpop.permute.xlu0 %1801
          %1804 = vset.pattern.permute.xlu0 7
          %1805 = vperm.xlu0 %1804, %v1384
          %v1806 = vpop.permute.xlu0 %1805
          %1808 = vset.pattern.permute.xlu0 7
          %1809 = vperm.xlu0 %1808, %v1385
          %v1810 = vpop.permute.xlu0 %1809
          %1812 = vset.pattern.permute.xlu0 7
          %1813 = vperm.xlu0 %1812, %v1386
          %v1814 = vpop.permute.xlu0 %1813
          %v1816 = vmul.f32 %v1792, %v1802
          %v1817 = vmul.f32 %v1793, %v1806
          %v1818 = vmul.f32 %v1794, %v1810
          %v1819 = vmul.f32 %v1795, %v1814
          %v1820 = vsel %vm1796, %v1792, %v1816
          %v1821 = vsel %vm1797, %v1793, %v1817
          %v1822 = vsel %vm1798, %v1794, %v1818
          %v1823 = vsel %vm1799, %v1795, %v1819
          %v1824 = vsel %vm514, %v1820, 0.0
          %v1825 = vsel %vm514, %v1821, 0.0
          %v1826 = vadd.f32 %v1824, %v1825
          %v1827 = vsel %vm514, %v1822, 0.0
          %v1828 = vadd.f32 %v1826, %v1827
          %v1829 = vsel %vm514, %v1823, 0.0
          %v1830 = vadd.f32 %v1828, %v1829
          %1831 = vadd.xlane.f32.xlu0 %v1830
          %v1832 = vpop.xlane.xlu0 %1831
          %v1833 = vrot.slane %v1832, 4
          %v1834 = vadd.f32 %v1832, %v1833
          %v1835 = vrot.slane %v1834, 2
          %v1836 = vadd.f32 %v1834, %v1835
          %v1837 = vrot.slane %v1836, 1
          %v1838 = vadd.f32 %v1836, %v1837
          %s1839 = vtos %v1838
          %v1840 = vrcp.pop 512.0
          %s1841 = vtos %v1840
          %s1842 = smul.f32 %s1839, %s1841
          %v1843 = vmul.f32 %v1820, %v1820
          %v1844 = vmul.f32 %v1821, %v1821
          %v1845 = vmul.f32 %v1822, %v1822
          %v1846 = vmul.f32 %v1823, %v1823
          %v1847 = vsel %vm514, %v1843, 0.0
          %v1848 = vsel %vm514, %v1844, 0.0
          %v1849 = vadd.f32 %v1847, %v1848
          %v1850 = vsel %vm514, %v1845, 0.0
          %v1851 = vadd.f32 %v1849, %v1850
          %v1852 = vsel %vm514, %v1846, 0.0
          %v1853 = vadd.f32 %v1851, %v1852
          %1854 = vadd.xlane.f32.xlu0 %v1853
          %v1855 = vpop.xlane.xlu0 %1854
          %v1856 = vrot.slane %v1855, 4
          %v1857 = vadd.f32 %v1855, %v1856
          %v1858 = vrot.slane %v1857, 2
          %v1859 = vadd.f32 %v1857, %v1858
          %v1860 = vrot.slane %v1859, 1
          %v1861 = vadd.f32 %v1859, %v1860
          %s1862 = vtos %v1861
          %v1863 = vrcp.pop 512.0
          %s1864 = vtos %v1863
          %s1865 = smul.f32 %s1862, %s1864
          %s1866 = smul.f32 %s1842, %s1842
          %s1867 = ssub.f32 %s1865, %s1866
          %v1868 = vstv %s1842
          %v1869 = vsub.f32 %v1820, %v1868
          %v1870 = vsub.f32 %v1821, %v1868
          %v1871 = vsub.f32 %v1822, %v1868
          %v1872 = vsub.f32 %v1823, %v1868
          %s1873 = sadd.f32 %s1867, 1e-10
          %v1874 = vstv %s1873
          %v1875 = vrsqrt.pop %v1874
          %s1876 = vtos %v1875
          %v1877 = vstv %s1876
          %v1878 = vmul.f32 %v1869, %v1877
          %v1879 = vmul.f32 %v1870, %v1877
          %v1880 = vmul.f32 %v1871, %v1877
          %v1881 = vmul.f32 %v1872, %v1877
          %1882 = vset.pattern.permute.xlu0 5
          %1883 = vperm.xlu0 %1882, %v1383
          %v1884 = vpop.permute.xlu0 %1883
          %1886 = vset.pattern.permute.xlu0 5
          %1887 = vperm.xlu0 %1886, %v1384
          %v1888 = vpop.permute.xlu0 %1887
          %1890 = vset.pattern.permute.xlu0 5
          %1891 = vperm.xlu0 %1890, %v1385
          %v1892 = vpop.permute.xlu0 %1891
          %1894 = vset.pattern.permute.xlu0 5
          %1895 = vperm.xlu0 %1894, %v1386
          %v1896 = vpop.permute.xlu0 %1895
          %v1898 = vmul.f32 %v1878, %v1884
          %v1899 = vmul.f32 %v1879, %v1888
          %v1900 = vmul.f32 %v1880, %v1892
          %v1901 = vmul.f32 %v1881, %v1896
          %1902 = vset.pattern.permute.xlu0 6
          %1903 = vperm.xlu0 %1902, %v1383
          %v1904 = vpop.permute.xlu0 %1903
          %1906 = vset.pattern.permute.xlu0 6
          %1907 = vperm.xlu0 %1906, %v1384
          %v1908 = vpop.permute.xlu0 %1907
          %1910 = vset.pattern.permute.xlu0 6
          %1911 = vperm.xlu0 %1910, %v1385
          %v1912 = vpop.permute.xlu0 %1911
          %1914 = vset.pattern.permute.xlu0 6
          %1915 = vperm.xlu0 %1914, %v1386
          %v1916 = vpop.permute.xlu0 %1915
          %v1918 = vadd.f32 %v1898, %v1904
          %v1919 = vadd.f32 %v1899, %v1908
          %v1920 = vadd.f32 %v1900, %v1912
          %v1921 = vadd.f32 %v1901, %v1916
          %1923 = vset.pattern.permute.xlu0 0
          %1924 = vperm.xlu0 %1923, %v1393
          %v1925 = vpop.permute.xlu0 %1924
          %1928 = vset.pattern.permute.xlu0 0
          %1929 = vperm.xlu0 %1928, %v1394
          %v1930 = vpop.permute.xlu0 %1929
          %1933 = vset.pattern.permute.xlu0 0
          %1934 = vperm.xlu0 %1933, %v1395
          %v1935 = vpop.permute.xlu0 %1934
          %1938 = vset.pattern.permute.xlu0 0
          %1939 = vperm.xlu0 %1938, %v1396
          %v1940 = vpop.permute.xlu0 %1939
          %v1943 = vsel %vm1273, %v1388, 0
          %v1946 = vsel %vm1273, %v1389, 0
          %v1949 = vsel %vm1273, %v1390, 0
          %v1952 = vsel %vm1273, %v1391, 0
          %1954 = vmatprep.subr.mxu0 0.0
          %1955 = vmatpush1.msra.mxu0 0.0
          %1956 = vmatprep.subr.mxu0 0.0
          %1957 = vmatpush1.msra.mxu0 0.0
          %1958 = vmatprep.subr.mxu0 0.0
          %1959 = vmatpush1.msra.mxu0 0.0
          %1960 = vmatprep.subr.mxu0 0.0
          %1961 = vmatpush1.msra.mxu0 0.0
          %1962 = vmatprep.subr.mxu0 0.0
          %1963 = vmatpush1.msra.mxu0 0.0
          %1964 = vmatprep.subr.mxu0 0.0
          %1965 = vmatpush1.msra.mxu0 0.0
          %1966 = vmatprep.subr.mxu0 0.0
          %1967 = vmatpush1.msra.mxu0 0.0
          %1968 = vmatprep.subr.mxu0 0.0
          %1969 = vmatpush1.msra.mxu0 0.0
          %1970 = vmatprep.subr.mxu0 0.0
          %1971 = vmatpush1.msra.mxu0 0.0
          %1972 = vmatprep.subr.mxu0 0.0
          %1973 = vmatpush1.msra.mxu0 0.0
          %1974 = vmatprep.subr.mxu0 0.0
          %1975 = vmatpush1.msra.mxu0 0.0
          %1976 = vmatprep.subr.mxu0 0.0
          %1977 = vmatpush1.msra.mxu0 0.0
          %1978 = vmatprep.subr.mxu0 0.0
          %1979 = vmatpush1.msra.mxu0 %v1921
          %1980 = vmatprep.subr.mxu0 0.0
          %1981 = vmatpush1.msra.mxu0 %v1920
          %1982 = vmatprep.subr.mxu0 0.0
          %1983 = vmatpush1.msra.mxu0 %v1919
          %1984 = vmatprep.subr.mxu0 0.0
          %1985 = vmatpush1.msra.mxu0 %v1918
          %1986 = vmatprep.subr.mxu0 0.0
          %1987 = vmatpush2.msra.mxu0 0.0
          %1988 = vmatprep.subr.mxu0 0.0
          %1989 = vmatpush2.msra.mxu0 0.0
          %1990 = vmatprep.subr.mxu0 0.0
          %1991 = vmatpush2.msra.mxu0 0.0
          %1992 = vmatprep.subr.mxu0 0.0
          %1993 = vmatpush2.msra.mxu0 0.0
          %1994 = vmatprep.subr.mxu0 0.0
          %1995 = vmatpush2.msra.mxu0 0.0
          %1996 = vmatprep.subr.mxu0 0.0
          %1997 = vmatpush2.msra.mxu0 0.0
          %1998 = vmatprep.subr.mxu0 0.0
          %1999 = vmatpush2.msra.mxu0 0.0
          %2000 = vmatprep.subr.mxu0 0.0
          %2001 = vmatpush2.msra.mxu0 0.0
          %2002 = vmatprep.subr.mxu0 0.0
          %2003 = vmatpush2.msra.mxu0 0.0
          %2004 = vmatprep.subr.mxu0 0.0
          %2005 = vmatpush2.msra.mxu0 0.0
          %2006 = vmatprep.subr.mxu0 0.0
          %2007 = vmatpush2.msra.mxu0 0.0
          %2008 = vmatprep.subr.mxu0 0.0
          %2009 = vmatpush2.msra.mxu0 0.0
          %2010 = vmatprep.subr.mxu0 0.0
          %2011 = vmatpush2.msra.mxu0 0.0
          %2012 = vmatprep.subr.mxu0 0.0
          %2013 = vmatpush2.msra.mxu0 0.0
          %2014 = vmatprep.subr.mxu0 0.0
          %2015 = vmatpush2.msra.mxu0 0.0
          %2016 = vmatprep.subr.mxu0 0.0
          %2017 = vmatpush2.msra.mxu0 0.0
          %2018 = vmatprep.mubr.f32.mxu0 0.0
          %2019 = vmatmul.mubr.f32.gmra.mxu0 %v1943
          %v2020 = vpop.f32.mrf.mxu0
          %v2021 = vadd.f32 %v1925, %v2020
          %v2022 = vpop.f32.mrf.mxu0
          %2023 = vmatprep.mubr.f32.mxu0 0.0
          %2024 = vmatmul.mubr.f32.gmra.mxu0 %v1946
          %v2025 = vpop.f32.mrf.mxu0
          %v2026 = vadd.f32 %v1930, %v2025
          %v2027 = vpop.f32.mrf.mxu0
          %2028 = vmatprep.mubr.f32.mxu0 0.0
          %2029 = vmatmul.mubr.f32.gmra.mxu0 %v1949
          %v2030 = vpop.f32.mrf.mxu0
          %v2031 = vadd.f32 %v1935, %v2030
          %v2032 = vpop.f32.mrf.mxu0
          %2033 = vmatprep.mubr.f32.mxu0 0.0
          %2034 = vmatmul.mubr.f32.gmra.mxu0 %v1952
          %v2035 = vpop.f32.mrf.mxu0
          %v2036 = vadd.f32 %v1940, %v2035
          %v2037 = vpop.f32.mrf.mxu0
          %2038 = vdwg.mxu0
          %v2039 = vadd.f32 %v1371, %v2021
          %v2040 = vadd.f32 %v1372, %v2026
          %v2041 = vadd.f32 %v2031, %v1373
          %v2042 = vadd.f32 %v2036, %v1374
          %s2043 = sadd.s32 %s705, 2
          %s2044 = smul.u32 %s2043, 32
          %s2045 = scalar_lea.vmem [#allocation6], %s2044
          %v2046 = vld [vmem:[%s2045] sm:$0xff]
          %v2047 = vld [vmem:[%s2045 + $0x8] sm:$0xff]
          %v2048 = vld [vmem:[%s2045 + $0x10] sm:$0xff]
          %v2049 = vld [vmem:[%s2045 + $0x18] sm:$0xff]
          %s2050 = scalar_lea.vmem [#allocation8], %s2044
          %v2051 = vld [vmem:[%s2050] sm:$0xff]
          %v2052 = vld [vmem:[%s2050 + $0x8] sm:$0xff]
          %v2053 = vld [vmem:[%s2050 + $0x10] sm:$0xff]
          %v2054 = vld [vmem:[%s2050 + $0x18] sm:$0xff]
          %s2055 = scalar_lea.vmem [#allocation9], %s2044
          %v2056 = vld [vmem:[%s2055] sm:$0xff]
          %v2057 = vld [vmem:[%s2055 + $0x8] sm:$0xff]
          %v2058 = vld [vmem:[%s2055 + $0x10] sm:$0xff]
          %v2059 = vld [vmem:[%s2055 + $0x18] sm:$0xff]
          %s2060 = scalar_lea.vmem [#allocation11], %s2044
          %v2061 = vld [vmem:[%s2060] sm:$0xff]
          %v2062 = vld [vmem:[%s2060 + $0x8] sm:$0xff]
          %v2063 = vld [vmem:[%s2060 + $0x10] sm:$0xff]
          %v2064 = vld [vmem:[%s2060 + $0x18] sm:$0xff]
          %2066 = vset.pattern.permute.xlu0 0
          %2067 = vperm.xlu0 %2066, %v2051
          %v2068 = vpop.permute.xlu0 %2067
          %2071 = vset.pattern.permute.xlu0 0
          %2072 = vperm.xlu0 %2071, %v2052
          %v2073 = vpop.permute.xlu0 %2072
          %2076 = vset.pattern.permute.xlu0 0
          %2077 = vperm.xlu0 %2076, %v2053
          %v2078 = vpop.permute.xlu0 %2077
          %2081 = vset.pattern.permute.xlu0 0
          %2082 = vperm.xlu0 %2081, %v2054
          %v2083 = vpop.permute.xlu0 %2082
          %v2086 = vsel %vm514, %v2046, 0
          %v2089 = vsel %vm514, %v2047, 0
          %v2092 = vsel %vm514, %v2048, 0
          %v2095 = vsel %vm514, %v2049, 0
          %2097 = vmatprep.subr.mxu0 0.0
          %2098 = vmatpush1.msra.mxu0 0.0
          %2099 = vmatprep.subr.mxu0 0.0
          %2100 = vmatpush1.msra.mxu0 0.0
          %2101 = vmatprep.subr.mxu0 0.0
          %2102 = vmatpush1.msra.mxu0 0.0
          %2103 = vmatprep.subr.mxu0 0.0
          %2104 = vmatpush1.msra.mxu0 0.0
          %2105 = vmatprep.subr.mxu0 0.0
          %2106 = vmatpush1.msra.mxu0 0.0
          %2107 = vmatprep.subr.mxu0 0.0
          %2108 = vmatpush1.msra.mxu0 0.0
          %2109 = vmatprep.subr.mxu0 0.0
          %2110 = vmatpush1.msra.mxu0 0.0
          %2111 = vmatprep.subr.mxu0 0.0
          %2112 = vmatpush1.msra.mxu0 0.0
          %2113 = vmatprep.subr.mxu0 0.0
          %2114 = vmatpush1.msra.mxu0 0.0
          %2115 = vmatprep.subr.mxu0 0.0
          %2116 = vmatpush1.msra.mxu0 0.0
          %2117 = vmatprep.subr.mxu0 0.0
          %2118 = vmatpush1.msra.mxu0 0.0
          %2119 = vmatprep.subr.mxu0 0.0
          %2120 = vmatpush1.msra.mxu0 0.0
          %2121 = vmatprep.subr.mxu0 0.0
          %2122 = vmatpush1.msra.mxu0 0.0
          %2123 = vmatprep.subr.mxu0 0.0
          %2124 = vmatpush1.msra.mxu0 0.0
          %2125 = vmatprep.subr.mxu0 0.0
          %2126 = vmatpush1.msra.mxu0 %v2042
          %2127 = vmatprep.subr.mxu0 0.0
          %2128 = vmatpush1.msra.mxu0 %v2041
          %2129 = vmatprep.subr.mxu0 0.0
          %2130 = vmatpush2.msra.mxu0 0.0
          %2131 = vmatprep.subr.mxu0 0.0
          %2132 = vmatpush2.msra.mxu0 0.0
          %2133 = vmatprep.subr.mxu0 0.0
          %2134 = vmatpush2.msra.mxu0 0.0
          %2135 = vmatprep.subr.mxu0 0.0
          %2136 = vmatpush2.msra.mxu0 0.0
          %2137 = vmatprep.subr.mxu0 0.0
          %2138 = vmatpush2.msra.mxu0 0.0
          %2139 = vmatprep.subr.mxu0 0.0
          %2140 = vmatpush2.msra.mxu0 0.0
          %2141 = vmatprep.subr.mxu0 0.0
          %2142 = vmatpush2.msra.mxu0 0.0
          %2143 = vmatprep.subr.mxu0 0.0
          %2144 = vmatpush2.msra.mxu0 0.0
          %2145 = vmatprep.subr.mxu0 0.0
          %2146 = vmatpush2.msra.mxu0 0.0
          %2147 = vmatprep.subr.mxu0 0.0
          %2148 = vmatpush2.msra.mxu0 0.0
          %2149 = vmatprep.subr.mxu0 0.0
          %2150 = vmatpush2.msra.mxu0 0.0
          %2151 = vmatprep.subr.mxu0 0.0
          %2152 = vmatpush2.msra.mxu0 0.0
          %2153 = vmatprep.subr.mxu0 0.0
          %2154 = vmatpush2.msra.mxu0 0.0
          %2155 = vmatprep.subr.mxu0 0.0
          %2156 = vmatpush2.msra.mxu0 0.0
          %2157 = vmatprep.subr.mxu0 0.0
          %2158 = vmatpush2.msra.mxu0 0.0
          %2159 = vmatprep.subr.mxu0 0.0
          %2160 = vmatpush2.msra.mxu0 0.0
          %2161 = vmatprep.mubr.f32.mxu0 0.0
          %2162 = vmatmul.mubr.f32.gmra.mxu0 %v2086
          %v2163 = vpop.f32.mrf.mxu0
          %v2164 = vadd.f32 %v2068, %v2163
          %v2165 = vpop.f32.mrf.mxu0
          %2166 = vmatprep.mubr.f32.mxu0 0.0
          %2167 = vmatmul.mubr.f32.gmra.mxu0 %v2089
          %v2168 = vpop.f32.mrf.mxu0
          %v2169 = vadd.f32 %v2073, %v2168
          %v2170 = vpop.f32.mrf.mxu0
          %2171 = vmatprep.mubr.f32.mxu0 0.0
          %2172 = vmatmul.mubr.f32.gmra.mxu0 %v2092
          %v2173 = vpop.f32.mrf.mxu0
          %v2174 = vadd.f32 %v2078, %v2173
          %v2175 = vpop.f32.mrf.mxu0
          %2176 = vmatprep.mubr.f32.mxu0 0.0
          %2177 = vmatmul.mubr.f32.gmra.mxu0 %v2095
          %v2178 = vpop.f32.mrf.mxu0
          %v2179 = vadd.f32 %v2083, %v2178
          %v2180 = vpop.f32.mrf.mxu0
          %2181 = vdwg.mxu0
          %vm2182 = vcmp.ge.f32.partialorder %v2164, 0.0
          %vm2183 = vcmp.ge.f32.partialorder %v2169, 0.0
          %vm2184 = vcmp.ge.f32.partialorder %v2174, 0.0
          %vm2185 = vcmp.ge.f32.partialorder %v2179, 0.0
          %2186 = vset.pattern.permute.xlu0 3
          %2187 = vperm.xlu0 %2186, %v2051
          %v2188 = vpop.permute.xlu0 %2187
          %2190 = vset.pattern.permute.xlu0 3
          %2191 = vperm.xlu0 %2190, %v2052
          %v2192 = vpop.permute.xlu0 %2191
          %2194 = vset.pattern.permute.xlu0 3
          %2195 = vperm.xlu0 %2194, %v2053
          %v2196 = vpop.permute.xlu0 %2195
          %2198 = vset.pattern.permute.xlu0 3
          %2199 = vperm.xlu0 %2198, %v2054
          %v2200 = vpop.permute.xlu0 %2199
          %v2202 = vmul.f32 %v2164, %v2188
          %v2203 = vmul.f32 %v2169, %v2192
          %v2204 = vmul.f32 %v2174, %v2196
          %v2205 = vmul.f32 %v2179, %v2200
          %v2206 = vsel %vm2182, %v2164, %v2202
          %v2207 = vsel %vm2183, %v2169, %v2203
          %v2208 = vsel %vm2184, %v2174, %v2204
          %v2209 = vsel %vm2185, %v2179, %v2205
          %v2210 = vsel %vm514, %v2206, 0.0
          %v2211 = vsel %vm514, %v2207, 0.0
          %v2212 = vadd.f32 %v2210, %v2211
          %v2213 = vsel %vm514, %v2208, 0.0
          %v2214 = vadd.f32 %v2212, %v2213
          %v2215 = vsel %vm514, %v2209, 0.0
          %v2216 = vadd.f32 %v2214, %v2215
          %2217 = vadd.xlane.f32.xlu0 %v2216
          %v2218 = vpop.xlane.xlu0 %2217
          %v2219 = vrot.slane %v2218, 4
          %v2220 = vadd.f32 %v2218, %v2219
          %v2221 = vrot.slane %v2220, 2
          %v2222 = vadd.f32 %v2220, %v2221
          %v2223 = vrot.slane %v2222, 1
          %v2224 = vadd.f32 %v2222, %v2223
          %s2225 = vtos %v2224
          %v2226 = vrcp.pop 512.0
          %s2227 = vtos %v2226
          %s2228 = smul.f32 %s2225, %s2227
          %v2229 = vmul.f32 %v2206, %v2206
          %v2230 = vmul.f32 %v2207, %v2207
          %v2231 = vmul.f32 %v2208, %v2208
          %v2232 = vmul.f32 %v2209, %v2209
          %v2233 = vsel %vm514, %v2229, 0.0
          %v2234 = vsel %vm514, %v2230, 0.0
          %v2235 = vadd.f32 %v2233, %v2234
          %v2236 = vsel %vm514, %v2231, 0.0
          %v2237 = vadd.f32 %v2235, %v2236
          %v2238 = vsel %vm514, %v2232, 0.0
          %v2239 = vadd.f32 %v2237, %v2238
          %2240 = vadd.xlane.f32.xlu0 %v2239
          %v2241 = vpop.xlane.xlu0 %2240
          %v2242 = vrot.slane %v2241, 4
          %v2243 = vadd.f32 %v2241, %v2242
          %v2244 = vrot.slane %v2243, 2
          %v2245 = vadd.f32 %v2243, %v2244
          %v2246 = vrot.slane %v2245, 1
          %v2247 = vadd.f32 %v2245, %v2246
          %s2248 = vtos %v2247
          %v2249 = vrcp.pop 512.0
          %s2250 = vtos %v2249
          %s2251 = smul.f32 %s2248, %s2250
          %s2252 = smul.f32 %s2228, %s2228
          %s2253 = ssub.f32 %s2251, %s2252
          %v2254 = vstv %s2228
          %v2255 = vsub.f32 %v2206, %v2254
          %v2256 = vsub.f32 %v2207, %v2254
          %v2257 = vsub.f32 %v2208, %v2254
          %v2258 = vsub.f32 %v2209, %v2254
          %s2259 = sadd.f32 %s2253, 1e-10
          %v2260 = vstv %s2259
          %v2261 = vrsqrt.pop %v2260
          %s2262 = vtos %v2261
          %v2263 = vstv %s2262
          %v2264 = vmul.f32 %v2255, %v2263
          %v2265 = vmul.f32 %v2256, %v2263
          %v2266 = vmul.f32 %v2257, %v2263
          %v2267 = vmul.f32 %v2258, %v2263
          %2268 = vset.pattern.permute.xlu0 1
          %2269 = vperm.xlu0 %2268, %v2051
          %v2270 = vpop.permute.xlu0 %2269
          %2272 = vset.pattern.permute.xlu0 1
          %2273 = vperm.xlu0 %2272, %v2052
          %v2274 = vpop.permute.xlu0 %2273
          %2276 = vset.pattern.permute.xlu0 1
          %2277 = vperm.xlu0 %2276, %v2053
          %v2278 = vpop.permute.xlu0 %2277
          %2280 = vset.pattern.permute.xlu0 1
          %2281 = vperm.xlu0 %2280, %v2054
          %v2282 = vpop.permute.xlu0 %2281
          %v2284 = vmul.f32 %v2264, %v2270
          %v2285 = vmul.f32 %v2265, %v2274
          %v2286 = vmul.f32 %v2266, %v2278
          %v2287 = vmul.f32 %v2267, %v2282
          %2288 = vset.pattern.permute.xlu0 2
          %2289 = vperm.xlu0 %2288, %v2051
          %v2290 = vpop.permute.xlu0 %2289
          %2292 = vset.pattern.permute.xlu0 2
          %2293 = vperm.xlu0 %2292, %v2052
          %v2294 = vpop.permute.xlu0 %2293
          %2296 = vset.pattern.permute.xlu0 2
          %2297 = vperm.xlu0 %2296, %v2053
          %v2298 = vpop.permute.xlu0 %2297
          %2300 = vset.pattern.permute.xlu0 2
          %2301 = vperm.xlu0 %2300, %v2054
          %v2302 = vpop.permute.xlu0 %2301
          %v2304 = vadd.f32 %v2284, %v2290
          %v2305 = vadd.f32 %v2285, %v2294
          %v2306 = vadd.f32 %v2286, %v2298
          %v2307 = vadd.f32 %v2287, %v2302
          %2308 = vrot.lane.b32.xlu0 %v2304, 16
          %v2309 = vpop.permute.xlu0 %2308
          %v2310 = vsel %vm970, %v2309, %v2304
          %2311 = vrot.lane.b32.xlu0 %v2305, 16
          %v2312 = vpop.permute.xlu0 %2311
          %v2313 = vsel %vm970, %v2312, %v2305
          %2314 = vrot.lane.b32.xlu0 %v2306, 16
          %v2315 = vpop.permute.xlu0 %2314
          %v2316 = vsel %vm970, %v2315, %v2306
          %2317 = vrot.lane.b32.xlu0 %v2307, 16
          %v2318 = vpop.permute.xlu0 %2317
          %v2319 = vsel %vm970, %v2318, %v2307
          %2320 = vrot.lane.b32.xlu0 %v2310, 16
          %v2321 = vpop.permute.xlu0 %2320
          %2322 = vrot.lane.b32.xlu0 %v2313, 16
          %v2323 = vpop.permute.xlu0 %2322
          %2324 = vrot.lane.b32.xlu0 %v2316, 16
          %v2325 = vpop.permute.xlu0 %2324
          %2326 = vrot.lane.b32.xlu0 %v2319, 16
          %v2327 = vpop.permute.xlu0 %2326
          %v2328 = vsel %vm970, %v2321, %v2304
          %v2329 = vsel %vm970, %v2323, %v2305
          %v2330 = vsel %vm970, %v2325, %v2306
          %v2331 = vsel %vm970, %v2327, %v2307
          %v2332 = vsel %vm690, 1, 0
          %vm2333 = vcmp.eq.s32.totalorder %v2332, 1
          %2338 = vrot.lane.b32.xlu0 %v2328, 116
          %v2339 = vpop.permute.xlu0 %2338
          %2340 = vrot.lane.b32.xlu0 %v2329, 116
          %v2341 = vpop.permute.xlu0 %2340
          %2342 = vrot.lane.b32.xlu0 %v2330, 116
          %v2343 = vpop.permute.xlu0 %2342
          %2344 = vrot.lane.b32.xlu0 %v2331, 116
          %v2345 = vpop.permute.xlu0 %2344
          %v2350 = vsel %vm2333, %v2339, 0.0
          %v2351 = vsel %vm2333, %v2341, 0.0
          %v2352 = vsel %vm2333, %v2343, 0.0
          %v2353 = vsel %vm2333, %v2345, 0.0
          %2354 = vset.pattern.permute.xlu0 8
          %2355 = vperm.xlu0 %2354, %v2051
          %v2356 = vpop.permute.xlu0 %2355
          %2358 = vset.pattern.permute.xlu0 8
          %2359 = vperm.xlu0 %2358, %v2052
          %v2360 = vpop.permute.xlu0 %2359
          %2362 = vset.pattern.permute.xlu0 8
          %2363 = vperm.xlu0 %2362, %v2053
          %v2364 = vpop.permute.xlu0 %2363
          %2366 = vset.pattern.permute.xlu0 8
          %2367 = vperm.xlu0 %2366, %v2054
          %v2368 = vpop.permute.xlu0 %2367
          %v2370 = vmul.f32 %v2350, %v2356
          %v2371 = vmul.f32 %v2351, %v2360
          %v2372 = vmul.f32 %v2352, %v2364
          %v2373 = vmul.f32 %v2353, %v2368
          %v2374 = vadd.f32 %v2370, 0.0
          %v2375 = vadd.f32 %v2371, 0.0
          %v2376 = vadd.f32 %v2372, 0.0
          %v2377 = vadd.f32 %v2373, 0.0
          %2378 = vset.pattern.permute.xlu0 9
          %2379 = vperm.xlu0 %2378, %v2051
          %v2380 = vpop.permute.xlu0 %2379
          %2382 = vset.pattern.permute.xlu0 9
          %2383 = vperm.xlu0 %2382, %v2052
          %v2384 = vpop.permute.xlu0 %2383
          %2386 = vset.pattern.permute.xlu0 9
          %2387 = vperm.xlu0 %2386, %v2053
          %v2388 = vpop.permute.xlu0 %2387
          %2390 = vset.pattern.permute.xlu0 9
          %2391 = vperm.xlu0 %2390, %v2054
          %v2392 = vpop.permute.xlu0 %2391
          %v2394 = vmul.f32 %v2304, %v2380
          %v2395 = vmul.f32 %v2305, %v2384
          %v2396 = vmul.f32 %v2306, %v2388
          %v2397 = vmul.f32 %v2307, %v2392
          %v2398 = vadd.f32 %v2374, %v2394
          %v2399 = vadd.f32 %v2375, %v2395
          %v2400 = vadd.f32 %v2376, %v2396
          %v2401 = vadd.f32 %v2377, %v2397
          %v2402 = vsel %vm694, 1, 0
          %vm2403 = vcmp.eq.s32.totalorder %v2402, 1
          %2404 = vrot.lane.b32.xlu0 %v2328, 124
          %v2405 = vpop.permute.xlu0 %2404
          %2406 = vrot.lane.b32.xlu0 %v2329, 124
          %v2407 = vpop.permute.xlu0 %2406
          %2408 = vrot.lane.b32.xlu0 %v2330, 124
          %v2409 = vpop.permute.xlu0 %2408
          %2410 = vrot.lane.b32.xlu0 %v2331, 124
          %v2411 = vpop.permute.xlu0 %2410
          %v2416 = vsel %vm2403, %v2405, 0.0
          %v2417 = vsel %vm2403, %v2407, 0.0
          %v2418 = vsel %vm2403, %v2409, 0.0
          %v2419 = vsel %vm2403, %v2411, 0.0
          %2420 = vset.pattern.permute.xlu0 10
          %2421 = vperm.xlu0 %2420, %v2051
          %v2422 = vpop.permute.xlu0 %2421
          %2424 = vset.pattern.permute.xlu0 10
          %2425 = vperm.xlu0 %2424, %v2052
          %v2426 = vpop.permute.xlu0 %2425
          %2428 = vset.pattern.permute.xlu0 10
          %2429 = vperm.xlu0 %2428, %v2053
          %v2430 = vpop.permute.xlu0 %2429
          %2432 = vset.pattern.permute.xlu0 10
          %2433 = vperm.xlu0 %2432, %v2054
          %v2434 = vpop.permute.xlu0 %2433
          %v2436 = vmul.f32 %v2416, %v2422
          %v2437 = vmul.f32 %v2417, %v2426
          %v2438 = vmul.f32 %v2418, %v2430
          %v2439 = vmul.f32 %v2419, %v2434
          %v2440 = vadd.f32 %v2398, %v2436
          %v2441 = vadd.f32 %v2399, %v2437
          %v2442 = vadd.f32 %v2400, %v2438
          %v2443 = vadd.f32 %v2401, %v2439
          %2444 = vset.pattern.permute.xlu0 4
          %2445 = vperm.xlu0 %2444, %v2051
          %v2446 = vpop.permute.xlu0 %2445
          %2448 = vset.pattern.permute.xlu0 4
          %2449 = vperm.xlu0 %2448, %v2052
          %v2450 = vpop.permute.xlu0 %2449
          %2452 = vset.pattern.permute.xlu0 4
          %2453 = vperm.xlu0 %2452, %v2053
          %v2454 = vpop.permute.xlu0 %2453
          %2456 = vset.pattern.permute.xlu0 4
          %2457 = vperm.xlu0 %2456, %v2054
          %v2458 = vpop.permute.xlu0 %2457
          %v2460 = vadd.f32 %v2440, %v2446
          %v2461 = vadd.f32 %v2441, %v2450
          %v2462 = vadd.f32 %v2442, %v2454
          %v2463 = vadd.f32 %v2443, %v2458
          %vm2464 = vcmp.ge.f32.partialorder %v2460, 0.0
          %vm2465 = vcmp.ge.f32.partialorder %v2461, 0.0
          %vm2466 = vcmp.ge.f32.partialorder %v2462, 0.0
          %vm2467 = vcmp.ge.f32.partialorder %v2463, 0.0
          %2468 = vset.pattern.permute.xlu0 7
          %2469 = vperm.xlu0 %2468, %v2051
          %v2470 = vpop.permute.xlu0 %2469
          %2472 = vset.pattern.permute.xlu0 7
          %2473 = vperm.xlu0 %2472, %v2052
          %v2474 = vpop.permute.xlu0 %2473
          %2476 = vset.pattern.permute.xlu0 7
          %2477 = vperm.xlu0 %2476, %v2053
          %v2478 = vpop.permute.xlu0 %2477
          %2480 = vset.pattern.permute.xlu0 7
          %2481 = vperm.xlu0 %2480, %v2054
          %v2482 = vpop.permute.xlu0 %2481
          %v2484 = vmul.f32 %v2460, %v2470
          %v2485 = vmul.f32 %v2461, %v2474
          %v2486 = vmul.f32 %v2462, %v2478
          %v2487 = vmul.f32 %v2463, %v2482
          %v2488 = vsel %vm2464, %v2460, %v2484
          %v2489 = vsel %vm2465, %v2461, %v2485
          %v2490 = vsel %vm2466, %v2462, %v2486
          %v2491 = vsel %vm2467, %v2463, %v2487
          %v2492 = vsel %vm514, %v2488, 0.0
          %v2493 = vsel %vm514, %v2489, 0.0
          %v2494 = vadd.f32 %v2492, %v2493
          %v2495 = vsel %vm514, %v2490, 0.0
          %v2496 = vadd.f32 %v2494, %v2495
          %v2497 = vsel %vm514, %v2491, 0.0
          %v2498 = vadd.f32 %v2496, %v2497
          %2499 = vadd.xlane.f32.xlu0 %v2498
          %v2500 = vpop.xlane.xlu0 %2499
          %v2501 = vrot.slane %v2500, 4
          %v2502 = vadd.f32 %v2500, %v2501
          %v2503 = vrot.slane %v2502, 2
          %v2504 = vadd.f32 %v2502, %v2503
          %v2505 = vrot.slane %v2504, 1
          %v2506 = vadd.f32 %v2504, %v2505
          %s2507 = vtos %v2506
          %v2508 = vrcp.pop 512.0
          %s2509 = vtos %v2508
          %s2510 = smul.f32 %s2507, %s2509
          %v2511 = vmul.f32 %v2488, %v2488
          %v2512 = vmul.f32 %v2489, %v2489
          %v2513 = vmul.f32 %v2490, %v2490
          %v2514 = vmul.f32 %v2491, %v2491
          %v2515 = vsel %vm514, %v2511, 0.0
          %v2516 = vsel %vm514, %v2512, 0.0
          %v2517 = vadd.f32 %v2515, %v2516
          %v2518 = vsel %vm514, %v2513, 0.0
          %v2519 = vadd.f32 %v2517, %v2518
          %v2520 = vsel %vm514, %v2514, 0.0
          %v2521 = vadd.f32 %v2519, %v2520
          %2522 = vadd.xlane.f32.xlu0 %v2521
          %v2523 = vpop.xlane.xlu0 %2522
          %v2524 = vrot.slane %v2523, 4
          %v2525 = vadd.f32 %v2523, %v2524
          %v2526 = vrot.slane %v2525, 2
          %v2527 = vadd.f32 %v2525, %v2526
          %v2528 = vrot.slane %v2527, 1
          %v2529 = vadd.f32 %v2527, %v2528
          %s2530 = vtos %v2529
          %v2531 = vrcp.pop 512.0
          %s2532 = vtos %v2531
          %s2533 = smul.f32 %s2530, %s2532
          %s2534 = smul.f32 %s2510, %s2510
          %s2535 = ssub.f32 %s2533, %s2534
          %v2536 = vstv %s2510
          %v2537 = vsub.f32 %v2488, %v2536
          %v2538 = vsub.f32 %v2489, %v2536
          %v2539 = vsub.f32 %v2490, %v2536
          %v2540 = vsub.f32 %v2491, %v2536
          %s2541 = sadd.f32 %s2535, 1e-10
          %v2542 = vstv %s2541
          %v2543 = vrsqrt.pop %v2542
          %s2544 = vtos %v2543
          %v2545 = vstv %s2544
          %v2546 = vmul.f32 %v2537, %v2545
          %v2547 = vmul.f32 %v2538, %v2545
          %v2548 = vmul.f32 %v2539, %v2545
          %v2549 = vmul.f32 %v2540, %v2545
          %2550 = vset.pattern.permute.xlu0 5
          %2551 = vperm.xlu0 %2550, %v2051
          %v2552 = vpop.permute.xlu0 %2551
          %2554 = vset.pattern.permute.xlu0 5
          %2555 = vperm.xlu0 %2554, %v2052
          %v2556 = vpop.permute.xlu0 %2555
          %2558 = vset.pattern.permute.xlu0 5
          %2559 = vperm.xlu0 %2558, %v2053
          %v2560 = vpop.permute.xlu0 %2559
          %2562 = vset.pattern.permute.xlu0 5
          %2563 = vperm.xlu0 %2562, %v2054
          %v2564 = vpop.permute.xlu0 %2563
          %v2566 = vmul.f32 %v2546, %v2552
          %v2567 = vmul.f32 %v2547, %v2556
          %v2568 = vmul.f32 %v2548, %v2560
          %v2569 = vmul.f32 %v2549, %v2564
          %2570 = vset.pattern.permute.xlu0 6
          %2571 = vperm.xlu0 %2570, %v2051
          %v2572 = vpop.permute.xlu0 %2571
          %2574 = vset.pattern.permute.xlu0 6
          %2575 = vperm.xlu0 %2574, %v2052
          %v2576 = vpop.permute.xlu0 %2575
          %2578 = vset.pattern.permute.xlu0 6
          %2579 = vperm.xlu0 %2578, %v2053
          %v2580 = vpop.permute.xlu0 %2579
          %2582 = vset.pattern.permute.xlu0 6
          %2583 = vperm.xlu0 %2582, %v2054
          %v2584 = vpop.permute.xlu0 %2583
          %v2586 = vadd.f32 %v2566, %v2572
          %v2587 = vadd.f32 %v2567, %v2576
          %v2588 = vadd.f32 %v2568, %v2580
          %v2589 = vadd.f32 %v2569, %v2584
          %2591 = vset.pattern.permute.xlu0 0
          %2592 = vperm.xlu0 %2591, %v2061
          %v2593 = vpop.permute.xlu0 %2592
          %2596 = vset.pattern.permute.xlu0 0
          %2597 = vperm.xlu0 %2596, %v2062
          %v2598 = vpop.permute.xlu0 %2597
          %2601 = vset.pattern.permute.xlu0 0
          %2602 = vperm.xlu0 %2601, %v2063
          %v2603 = vpop.permute.xlu0 %2602
          %2606 = vset.pattern.permute.xlu0 0
          %2607 = vperm.xlu0 %2606, %v2064
          %v2608 = vpop.permute.xlu0 %2607
          %v2611 = vsel %vm1273, %v2056, 0
          %v2614 = vsel %vm1273, %v2057, 0
          %v2617 = vsel %vm1273, %v2058, 0
          %v2620 = vsel %vm1273, %v2059, 0
          %2622 = vmatprep.subr.mxu0 0.0
          %2623 = vmatpush1.msra.mxu0 0.0
          %2624 = vmatprep.subr.mxu0 0.0
          %2625 = vmatpush1.msra.mxu0 0.0
          %2626 = vmatprep.subr.mxu0 0.0
          %2627 = vmatpush1.msra.mxu0 0.0
          %2628 = vmatprep.subr.mxu0 0.0
          %2629 = vmatpush1.msra.mxu0 0.0
          %2630 = vmatprep.subr.mxu0 0.0
          %2631 = vmatpush1.msra.mxu0 0.0
          %2632 = vmatprep.subr.mxu0 0.0
          %2633 = vmatpush1.msra.mxu0 0.0
          %2634 = vmatprep.subr.mxu0 0.0
          %2635 = vmatpush1.msra.mxu0 0.0
          %2636 = vmatprep.subr.mxu0 0.0
          %2637 = vmatpush1.msra.mxu0 0.0
          %2638 = vmatprep.subr.mxu0 0.0
          %2639 = vmatpush1.msra.mxu0 0.0
          %2640 = vmatprep.subr.mxu0 0.0
          %2641 = vmatpush1.msra.mxu0 0.0
          %2642 = vmatprep.subr.mxu0 0.0
          %2643 = vmatpush1.msra.mxu0 0.0
          %2644 = vmatprep.subr.mxu0 0.0
          %2645 = vmatpush1.msra.mxu0 0.0
          %2646 = vmatprep.subr.mxu0 0.0
          %2647 = vmatpush1.msra.mxu0 %v2589
          %2648 = vmatprep.subr.mxu0 0.0
          %2649 = vmatpush1.msra.mxu0 %v2588
          %2650 = vmatprep.subr.mxu0 0.0
          %2651 = vmatpush1.msra.mxu0 %v2587
          %2652 = vmatprep.subr.mxu0 0.0
          %2653 = vmatpush1.msra.mxu0 %v2586
          %2654 = vmatprep.subr.mxu0 0.0
          %2655 = vmatpush2.msra.mxu0 0.0
          %2656 = vmatprep.subr.mxu0 0.0
          %2657 = vmatpush2.msra.mxu0 0.0
          %2658 = vmatprep.subr.mxu0 0.0
          %2659 = vmatpush2.msra.mxu0 0.0
          %2660 = vmatprep.subr.mxu0 0.0
          %2661 = vmatpush2.msra.mxu0 0.0
          %2662 = vmatprep.subr.mxu0 0.0
          %2663 = vmatpush2.msra.mxu0 0.0
          %2664 = vmatprep.subr.mxu0 0.0
          %2665 = vmatpush2.msra.mxu0 0.0
          %2666 = vmatprep.subr.mxu0 0.0
          %2667 = vmatpush2.msra.mxu0 0.0
          %2668 = vmatprep.subr.mxu0 0.0
          %2669 = vmatpush2.msra.mxu0 0.0
          %2670 = vmatprep.subr.mxu0 0.0
          %2671 = vmatpush2.msra.mxu0 0.0
          %2672 = vmatprep.subr.mxu0 0.0
          %2673 = vmatpush2.msra.mxu0 0.0
          %2674 = vmatprep.subr.mxu0 0.0
          %2675 = vmatpush2.msra.mxu0 0.0
          %2676 = vmatprep.subr.mxu0 0.0
          %2677 = vmatpush2.msra.mxu0 0.0
          %2678 = vmatprep.subr.mxu0 0.0
          %2679 = vmatpush2.msra.mxu0 0.0
          %2680 = vmatprep.subr.mxu0 0.0
          %2681 = vmatpush2.msra.mxu0 0.0
          %2682 = vmatprep.subr.mxu0 0.0
          %2683 = vmatpush2.msra.mxu0 0.0
          %2684 = vmatprep.subr.mxu0 0.0
          %2685 = vmatpush2.msra.mxu0 0.0
          %2686 = vmatprep.mubr.f32.mxu0 0.0
          %2687 = vmatmul.mubr.f32.gmra.mxu0 %v2611
          %v2688 = vpop.f32.mrf.mxu0
          %v2689 = vadd.f32 %v2593, %v2688
          %v2690 = vpop.f32.mrf.mxu0
          %2691 = vmatprep.mubr.f32.mxu0 0.0
          %2692 = vmatmul.mubr.f32.gmra.mxu0 %v2614
          %v2693 = vpop.f32.mrf.mxu0
          %v2694 = vadd.f32 %v2598, %v2693
          %v2695 = vpop.f32.mrf.mxu0
          %2696 = vmatprep.mubr.f32.mxu0 0.0
          %2697 = vmatmul.mubr.f32.gmra.mxu0 %v2617
          %v2698 = vpop.f32.mrf.mxu0
          %v2699 = vadd.f32 %v2603, %v2698
          %v2700 = vpop.f32.mrf.mxu0
          %2701 = vmatprep.mubr.f32.mxu0 0.0
          %2702 = vmatmul.mubr.f32.gmra.mxu0 %v2620
          %v2703 = vpop.f32.mrf.mxu0
          %v2704 = vadd.f32 %v2608, %v2703
          %v2705 = vpop.f32.mrf.mxu0
          %2706 = vdwg.mxu0
          %v2707 = vadd.f32 %v2039, %v2689
          %v2708 = vadd.f32 %v2040, %v2694
          %v2709 = vadd.f32 %v2699, %v2041
          %v2710 = vadd.f32 %v2704, %v2042
        $region101: #{_lambda_.1} parent=67 // loop_footer
          %s700 = sadd.s32 1, %s696
        $region102: #{_lambda_.1} parent=67 // loop_footer_branch
          %695 = sbr.rel target = $region98
        $region103: #{_lambda_.1} parent=67 // loop_exit
          _
        %vm2711 = vcmp.ge.f32.partialorder %v703, 0.0
        %vm2712 = vcmp.ge.f32.partialorder %v704, 0.0
        %v2713 = vld [vmem:[#allocation2] sm:$0x1]
        %v2715 = vlaneseq
        %v2716 = vshrl.u32 %v2715, 7
        %v2717 = vsub.s32 0, %v2716
        %v2718 = vrot.slane %v2713, %v2717
        %2719 = vset.pattern.permute.xlu0 0
        %2720 = vperm.xlu0 %2719, %v2718
        %v2721 = vpop.permute.xlu0 %2720
        %v2723 = vmul.f32 %v703, %v2721
        %v2724 = vmul.f32 %v704, %v2721
        %v2725 = vsel %vm2711, %v703, %v2723
        %v2726 = vsel %vm2712, %v704, %v2724
        %v2727 = vld [vmem:[#allocation12] sm:$0xff]
        %v2728 = vld [vmem:[#allocation14] sm:$0xff]
        %2730 = vset.pattern.permute.xlu0 0
        %2731 = vperm.xlu0 %2730, %v2728
        %v2732 = vpop.permute.xlu0 %2731
        %v2735 = vsel %vm514, %v2727, 0
        %2737 = vmatprep.subr.mxu0 0.0
        %2738 = vmatpush1.msra.mxu0 0.0
        %2739 = vmatprep.subr.mxu0 0.0
        %2740 = vmatpush1.msra.mxu0 0.0
        %2741 = vmatprep.subr.mxu0 0.0
        %2742 = vmatpush1.msra.mxu0 0.0
        %2743 = vmatprep.subr.mxu0 0.0
        %2744 = vmatpush1.msra.mxu0 0.0
        %2745 = vmatprep.subr.mxu0 0.0
        %2746 = vmatpush1.msra.mxu0 0.0
        %2747 = vmatprep.subr.mxu0 0.0
        %2748 = vmatpush1.msra.mxu0 0.0
        %2749 = vmatprep.subr.mxu0 0.0
        %2750 = vmatpush1.msra.mxu0 0.0
        %2751 = vmatprep.subr.mxu0 0.0
        %2752 = vmatpush1.msra.mxu0 0.0
        %2753 = vmatprep.subr.mxu0 0.0
        %2754 = vmatpush1.msra.mxu0 0.0
        %2755 = vmatprep.subr.mxu0 0.0
        %2756 = vmatpush1.msra.mxu0 0.0
        %2757 = vmatprep.subr.mxu0 0.0
        %2758 = vmatpush1.msra.mxu0 0.0
        %2759 = vmatprep.subr.mxu0 0.0
        %2760 = vmatpush1.msra.mxu0 0.0
        %2761 = vmatprep.subr.mxu0 0.0
        %2762 = vmatpush1.msra.mxu0 0.0
        %2763 = vmatprep.subr.mxu0 0.0
        %2764 = vmatpush1.msra.mxu0 0.0
        %2765 = vmatprep.subr.mxu0 0.0
        %2766 = vmatpush1.msra.mxu0 %v2726
        %2767 = vmatprep.subr.mxu0 0.0
        %2768 = vmatpush1.msra.mxu0 %v2725
        %2769 = vmatprep.subr.mxu0 0.0
        %2770 = vmatpush2.msra.mxu0 0.0
        %2771 = vmatprep.subr.mxu0 0.0
        %2772 = vmatpush2.msra.mxu0 0.0
        %2773 = vmatprep.subr.mxu0 0.0
        %2774 = vmatpush2.msra.mxu0 0.0
        %2775 = vmatprep.subr.mxu0 0.0
        %2776 = vmatpush2.msra.mxu0 0.0
        %2777 = vmatprep.subr.mxu0 0.0
        %2778 = vmatpush2.msra.mxu0 0.0
        %2779 = vmatprep.subr.mxu0 0.0
        %2780 = vmatpush2.msra.mxu0 0.0
        %2781 = vmatprep.subr.mxu0 0.0
        %2782 = vmatpush2.msra.mxu0 0.0
        %2783 = vmatprep.subr.mxu0 0.0
        %2784 = vmatpush2.msra.mxu0 0.0
        %2785 = vmatprep.subr.mxu0 0.0
        %2786 = vmatpush2.msra.mxu0 0.0
        %2787 = vmatprep.subr.mxu0 0.0
        %2788 = vmatpush2.msra.mxu0 0.0
        %2789 = vmatprep.subr.mxu0 0.0
        %2790 = vmatpush2.msra.mxu0 0.0
        %2791 = vmatprep.subr.mxu0 0.0
        %2792 = vmatpush2.msra.mxu0 0.0
        %2793 = vmatprep.subr.mxu0 0.0
        %2794 = vmatpush2.msra.mxu0 0.0
        %2795 = vmatprep.subr.mxu0 0.0
        %2796 = vmatpush2.msra.mxu0 0.0
        %2797 = vmatprep.subr.mxu0 0.0
        %2798 = vmatpush2.msra.mxu0 0.0
        %2799 = vmatprep.subr.mxu0 0.0
        %2800 = vmatpush2.msra.mxu0 0.0
        %2801 = vmatprep.mubr.f32.mxu0 0.0
        %2802 = vmatmul.mubr.f32.gmra.mxu0 %v2735
        %v2803 = vpop.f32.mrf.mxu0
        %v2804 = vadd.f32 %v2732, %v2803
        %v2805 = vpop.f32.mrf.mxu0
        %2806 = vdwg.mxu0
        %2807 = vst.msk [vmem:[%s506] sm:$0xff] %vm514, %v2804
        %s2808 = sand.u32 %s297, 1
        %s2809 = scalar_lea.sflag [#allocation5], %s2808
        %s2810 = sand.u32 %s297, 1
        %s2811 = smul.addr %s2810, 8
        %s2812 = scalar_lea.vmem [#allocation15], %s2811
        // Predicated region
        $region104: #{_lambda_.1} parent=67 // pred_check
          %p2813 = pneg %p307
        $region105: #{_lambda_.1} parent=67 // pred_check_branch
          %2815 = sbr.rel (%p2813) target = $region107
        $region106: #{_lambda_.1} parent=67 // pred_region
          %s2817 = ssub.s32 128, 128
          %2818 = vsyncadd %s2809, %s2817
          %s2819 = smul.addr %s32, 128
          %s2820 = scalar_lea.hbm %s12, %s2819
          %s2822 = sshll.u32 %s2812, 4
          %s2823 = int_to_ptr.vmem [resolvable:$true] %s2822
          %2825 = dma.vmem_to_hbm [thread:$0]  %s2823, 128, %s2820, %s2809
        $region107: #{_lambda_.1} parent=67 // pred_fallthru
          _
      $region68: #{_lambda_.1} parent=5 // pred_fallthru
        _
      %p2826 = scmp.le.s32.totalorder 2, %s27
      // Predicated region
      $region108: #{_lambda_.1} parent=5 // pred_check
        %p2827 = pneg %p2826
      $region109: #{_lambda_.1} parent=5 // pred_check_branch
        %2829 = sbr.rel (%p2827) target = $region111
      $region110: #{_lambda_.1} parent=5 // pred_region
        %s2830 = ssub.s32 %s27, 2
        // Predicated region
        $region112: #{_lambda_.1} parent=110 // pred_check
          %p2831 = pneg %p313
        $region113: #{_lambda_.1} parent=110 // pred_check_branch
          %2833 = sbr.rel (%p2831) target = $region115
        $region114: #{_lambda_.1} parent=110 // pred_region
          %s2834 = sand.u32 %s298, 1
          %s2835 = scalar_lea.sflag [#allocation5], %s2834
          %s2836 = sand.u32 %s298, 1
          %s2837 = smul.addr %s2836, 8
          %s2838 = scalar_lea.vmem [#allocation15], %s2837
          %2839 = dma.done %s2835, 128
        $region115: #{_lambda_.1} parent=110 // pred_fallthru
          _
      $region111: #{_lambda_.1} parent=5 // pred_fallthru
        _
    $region6: #{_lambda_.1} parent=1 // loop_footer
      %s31 = sadd.s32 1, %s27
    $region7: #{_lambda_.1} parent=1 // loop_footer_branch
      %26 = sbr.rel target = $region3
    $region8: #{_lambda_.1} parent=1 // loop_exit
      _
    %2840 = vsyncpa [#allocation4], 1
    %s2841 = scalar_lea.sflag [#allocation4], 1
    %2842 = vsyncpa %s2841, 1
    %2843 = vsyncpa [#allocation7], 1
    %2844 = vsyncpa [#allocation10], 1
    %2845 = vsyncpa [#allocation13], 1
    %2846 = vsyncpa [#allocation5], 1
    %s2847 = scalar_lea.sflag [#allocation5], 1
    %2848 = vsyncpa %s2847, 1

</llo_original>
